<compile_context>
chip_gen: v5e
topology: v5e:2x2
jax: 0.10.0
libtpu: 0.0.40
codegen_flags: <defaults>
</compile_context>

<pallas_src>
import jax
import jax.numpy as jnp
import numpy as np
from jax.experimental import pallas as pl
from jax.experimental.pallas import tpu as pltpu


def _ipow(v, p):
    """x**p with cheap special cases (small integer powers stay on the VPU)."""
    if p == 1.0:
        return v
    if p == 0.0:
        return jnp.ones_like(v)
    if p == 2.0:
        return v * v
    if p == 3.0:
        return v * v * v
    if p == 4.0:
        v2 = v * v
        return v2 * v2
    if p == 0.5:
        return jnp.sqrt(v)
    return v ** p


def _device_kind():
    try:
        return jax.devices()[0].device_kind.lower()
    except Exception:
        return ""


def _num_tensorcores():
    """TensorCores per chip: 2 on v7x (megacore), 1 on v5e / v6e."""
    return 2 if "v7" in _device_kind() else 1


def _vmem_capacity_bytes():
    try:
        return int(pltpu.get_tpu_info().vmem_capacity_bytes)
    except Exception:
        return (64 if "v7" in _device_kind() else 128) * 1024 * 1024


def _choose_tb(N, H, W, P, in_itemsize, vmem_cap, table_bytes):
    """Images per block: fill the MXU M-dim, bounded by the real VMEM footprint."""
    kind = _device_kind()
    is_v5e = ("v5 lite" in kind) or ("v5e" in kind) or ("v5litepod" in kind)
    m_target = 128 if is_v5e else 256                      # MXU tile: 128 (v5e) / 256
    tb_target = max(1, -(-m_target // max(1, min(H, W))))
    # Footprint per image in the block: 2 inputs x 2 pipeline buffers x block
    # + ~10 f32-sized live temporaries (z, a_re/a_im, t_re/t_im, b_re/b_im, x_mag, vals).
    per_image = H * W * (2 * 2 * in_itemsize + 10 * 4)
    budget = max(per_image, vmem_cap - 2 * table_bytes - (8 << 20))
    tb_cap = max(1, budget // per_image)
    tb = int(max(1, min(tb_target, tb_cap, -(-N // P))))
    if (H % 8) or (W % 8):
        tb = 1   # keep in-kernel reshapes as free layout merges / plain 2-D ops
    return tb


def _make_ffl_kernel(alpha, beta, TB, H, W, S, N, N_pad, share_dft, compute_dtype):
    def kernel(*refs):
        if share_dft:                              # H == W: one DFT table for both axes
            x_ref, y_ref, cw_ref, swn_ref, out_ref, acc_ref = refs
        else:
            x_ref, y_ref, cw_ref, swn_ref, ch_ref, shn_ref, out_ref, acc_ref = refs

        p = pl.program_id(0)
        s = pl.program_id(1)

        @pl.when(s == 0)
        def _():
            acc_ref[...] = jnp.zeros_like(acc_ref)

        cw, swn = cw_ref[...], swn_ref[...]        # (W, W):  cos,  -sin
        ch, shn = (cw, swn) if share_dft else (ch_ref[...], shn_ref[...])   # (H, H)

        def fft2_mag_t(z_ref):
            """|FFT2| of TB stacked images, returned transposed per image: (TB*W, H)."""
            # Stage 1 (W axis): right-multiply by F_W = cos + i*(-sin).
            z = z_ref[...].reshape(TB * H, W).astype(compute_dtype)
            a_re = jnp.dot(z, cw, preferred_element_type=jnp.float32)     # (TB*H, W) f32
            a_im = jnp.dot(z, swn, preferred_element_type=jnp.float32)
            # Per-image transpose of the last two dims (XLU); no transpose-back needed
            # since the loss is a permutation-invariant mean over all bins.
            if TB == 1:
                t_re = a_re.T.astype(compute_dtype)                       # (W, H)
                t_im = a_im.T.astype(compute_dtype)
            else:
                t_re = jnp.transpose(a_re.reshape(TB, H, W), (0, 2, 1)
                                     ).reshape(TB * W, H).astype(compute_dtype)
                t_im = jnp.transpose(a_im.reshape(TB, H, W), (0, 2, 1)
                                     ).reshape(TB * W, H).astype(compute_dtype)
            # Stage 2 (H axis): right-multiply by F_H = cos + i*(-sin).
            b_re = (jnp.dot(t_re, ch, preferred_element_type=jnp.float32)
                    - jnp.dot(t_im, shn, preferred_element_type=jnp.float32))
            b_im = (jnp.dot(t_re, shn, preferred_element_type=jnp.float32)
                    + jnp.dot(t_im, ch, preferred_element_type=jnp.float32))
            return jnp.sqrt(b_re * b_re + b_im * b_im)                    # (TB*W, H) f32

        x_mag = fft2_mag_t(x_ref)
        y_mag = fft2_mag_t(y_ref)

        diff = jnp.abs(x_mag - y_mag)
        vals = _ipow(diff, alpha) * _ipow(x_mag, beta)                    # (TB*W, H) f32

        # Per-step cross-lane (XLU) reduce; accumulate only a (TB*W, 1) column.
        col = jnp.sum(vals, axis=1, keepdims=True)

        if N_pad != N:
            # Mask zero-padded tail images (exact for any alpha/beta, incl. 0**0 = 1).
            base = (p * S + s) * TB
            valid_rows = jnp.clip(N - base, 0, TB) * W
            row_ids = jax.lax.broadcasted_iota(jnp.int32, (TB * W, 1), 0)
            col = jnp.where(row_ids < valid_rows, col, 0.0)

        acc_ref[...] += col

        @pl.when(s == S - 1)
        def _():
            out_ref[...] = jnp.sum(acc_ref[...], axis=0, keepdims=True)   # (1, 1) partial

    return kernel


def pyffl_loss(x, y, alpha=1.0, beta=1.0, use_bf16_mxu=True):
    """Pallas TPU forward pass of PyFFLLoss. x, y: (B, C, H, W)."""
    B, C, H, W = x.shape
    N = B * C
    compute_dtype = jnp.bfloat16 if use_bf16_mxu else jnp.float32
    c_size = jnp.dtype(compute_dtype).itemsize
    in_size = jnp.dtype(x.dtype).itemsize

    xr = x.reshape(N, H, W)            # keep HBM dtype; cast to compute dtype in-kernel
    yr = y.reshape(N, H, W)

    # ---- DFT tables (exact int64/float64 phase reduction on host; -sin baked in) -----
    def dft_tables(L):
        k = np.arange(L, dtype=np.int64)                   # exact for any practical L
        ang = (np.outer(k, k) % L).astype(np.float64) * (2.0 * np.pi / L)
        return (jnp.asarray(np.cos(ang), dtype=compute_dtype),
                jnp.asarray(-np.sin(ang), dtype=compute_dtype))

    cw, swn = dft_tables(W)
    share_dft = (H == W)
    if share_dft:
        tables = (cw, swn)
        table_bytes = 2 * W * W * c_size
    else:
        ch, shn = dft_tables(H)
        tables = (cw, swn, ch, shn)
        table_bytes = 2 * (W * W + H * H) * c_size

    # ---- grid / tile selection --------------------------------------------------------
    vmem_cap = _vmem_capacity_bytes()
    P = max(1, min(_num_tensorcores(), N))                 # 1 on v5e/v6e, 2 on v7x
    TB = _choose_tb(N, H, W, P, in_size, vmem_cap, table_bytes)
    S = -(-N // (P * TB))
    N_pad = P * S * TB
    if N_pad != N:
        pad = jnp.zeros((N_pad - N, H, W), dtype=xr.dtype)
        xr = jnp.concatenate([xr, pad], axis=0)
        yr = jnp.concatenate([yr, pad], axis=0)

    block_bytes = TB * H * W * (2 * 2 * in_size + 10 * 4)
    est_bytes = block_bytes + 2 * table_bytes + TB * W * 4
    vmem_limit = int(min(max(32 << 20, 2 * est_bytes), vmem_cap - (2 << 20)))

    kernel = _make_ffl_kernel(float(alpha), float(beta), TB, H, W, S, N, N_pad,
                              share_dft, compute_dtype)

    img_spec = pl.BlockSpec((TB, H, W), lambda p, s: (p * S + s, 0, 0))
    out_spec = pl.BlockSpec((1, 1), lambda p, s: (p, 0))

    def run(single_buffer_tables):
        def table_spec(L):
            if single_buffer_tables:
                # Constant index_map -> nothing to pipeline; don't reserve a 2nd buffer.
                return pl.BlockSpec((L, L), lambda p, s: (0, 0),
                                    pipeline_mode=pl.Buffered(1))
            return pl.BlockSpec((L, L), lambda p, s: (0, 0))

        in_specs = [img_spec, img_spec, table_spec(W), table_spec(W)]
        if not share_dft:
            in_specs += [table_spec(H), table_spec(H)]

        return pl.pallas_call(
            kernel,
            out_shape=jax.ShapeDtypeStruct((P, 1), jnp.float32),
            grid_spec=pltpu.PrefetchScalarGridSpec(
                num_scalar_prefetch=0,
                grid=(P, S),
                in_specs=in_specs,
                out_specs=out_spec,
                scratch_shapes=[pltpu.VMEM((TB * W, 1), jnp.float32)],
            ),
            compiler_params=pltpu.CompilerParams(
                dimension_semantics=("parallel", "arbitrary"),
                vmem_limit_bytes=vmem_limit,
            ),
        )(xr, yr, *tables)

    try:
        out = run(single_buffer_tables=True)
    except Exception:
        # pipeline_mode=pl.Buffered(1) unavailable on this jax: fall back to the
        # default double-buffered (still constant) table inputs.
        out = run(single_buffer_tables=False)

    # TODO(synk): for H, W >= ~512 on v7x (64 MiB VMEM) add a W-column-tiled grid axis so
    # the stage-1/stage-2 temporaries are tiled instead of full (H, W) blocks.
    # TODO(synk): for W < 64, lane-pack k=128//W images side by side (I_k (x) F_W) to fill
    # the MXU lanes; skipped to avoid the extra wrapper-side HBM transpose of the inputs.
    return jnp.sum(out) / jnp.float32(N * H * W)


def pyffl_loss_ref(x, y, alpha=1.0, beta=1.0):
    """Pure-JAX reference matching the PyTorch module."""
    xf = jnp.abs(jnp.fft.fftn(x, axes=(-2, -1)))
    yf = jnp.abs(jnp.fft.fftn(y, axes=(-2, -1)))
    diff = jnp.abs(xf - yf)
    return jnp.mean(diff ** alpha * xf ** beta)


if __name__ == "__main__":
    B, C, H, W = 2, 4, 16, 16
    key = jax.random.PRNGKey(0)
    kx, ky = jax.random.split(key)
    x = jax.random.normal(kx, (B, C, H, W), dtype=jnp.float32)
    y = jax.random.normal(ky, (B, C, H, W), dtype=jnp.float32)

    ref = jax.block_until_ready(pyffl_loss_ref(x, y, alpha=1.0, beta=1.0))

    # Default fast path: bf16 MXU matmuls, f32 accumulation / elementwise math.
    loss_bf16 = jax.block_until_ready(pyffl_loss(x, y, alpha=1.0, beta=1.0))
    np.testing.assert_allclose(np.asarray(loss_bf16), np.asarray(ref), rtol=5e-2)

    # Full-precision path (tight tolerance).
    loss_f32 = jax.block_until_ready(
        pyffl_loss(x, y, alpha=1.0, beta=1.0, use_bf16_mxu=False))
    np.testing.assert_allclose(np.asarray(loss_f32), np.asarray(ref),
                               rtol=1e-3, atol=1e-3)

    print("KERNEL_OK")
</pallas_src>

<mosaic_0001>
module attributes {stable_mosaic.version = 11 : i64} {
  func.func @kernel(%arg0: i32, %arg1: i32, %arg2: memref<8x16x16xf32, #tpu.memory_space<vmem>>, %arg3: memref<8x16x16xf32, #tpu.memory_space<vmem>>, %arg4: memref<16x16xbf16, #tpu.memory_space<vmem>>, %arg5: memref<16x16xbf16, #tpu.memory_space<vmem>>, %arg6: memref<1x1xf32, #tpu.memory_space<vmem>>, %arg7: memref<128x1xf32, #tpu.memory_space<vmem>>) attributes {dimension_semantics = [#tpu.dimension_semantics<parallel>, #tpu.dimension_semantics<arbitrary>], iteration_bounds = array<i64: 1, 1>, scalar_prefetch = 0 : i64, scratch_operands = 1 : i64, tpu.core_type = #tpu.core_type<tc>, window_params = [{transform_indices = @transform_0, window_bounds = array<i64: 8, 16, 16>}, {transform_indices = @transform_1, window_bounds = array<i64: 8, 16, 16>}, {pipeline_mode = #tpu.pipeline_mode<synchronous>, transform_indices = @transform_2, window_bounds = array<i64: 16, 16>}, {pipeline_mode = #tpu.pipeline_mode<synchronous>, transform_indices = @transform_3, window_bounds = array<i64: 16, 16>}, {transform_indices = @transform_4, window_bounds = array<i64: 1, 1>}]} {
    %c0_i32 = arith.constant 0 : i32
    %0 = arith.cmpi eq, %arg1, %c0_i32 : i32
    %1 = arith.extui %0 : i1 to i32
    %c0_i32_0 = arith.constant 0 : i32
    %2 = arith.cmpi ne, %1, %c0_i32_0 : i32
    scf.if %2 {
      %cst_28 = arith.constant 0.000000e+00 : f32
      %62 = vector.broadcast %cst_28 : f32 to vector<128x1xf32>
      %c0_29 = arith.constant 0 : index
      %c0_30 = arith.constant 0 : index
      %63 = vector.load %arg7[%c0_29, %c0_30] : memref<128x1xf32, #tpu.memory_space<vmem>>, vector<128x1xf32>
      tpu.vector_store %arg7[%c0_29, %c0_30], %62 {strides = array<i32>} : memref<128x1xf32, #tpu.memory_space<vmem>>, vector<128x1xf32>,
    } else {
    }
    %c0 = arith.constant 0 : index
    %c0_1 = arith.constant 0 : index
    %3 = vector.load %arg4[%c0, %c0_1] : memref<16x16xbf16, #tpu.memory_space<vmem>>, vector<16x16xbf16>
    %c0_2 = arith.constant 0 : index
    %c0_3 = arith.constant 0 : index
    %4 = vector.load %arg5[%c0_2, %c0_3] : memref<16x16xbf16, #tpu.memory_space<vmem>>, vector<16x16xbf16>
    %c0_4 = arith.constant 0 : index
    %c0_5 = arith.constant 0 : index
    %c0_6 = arith.constant 0 : index
    %5 = vector.load %arg2[%c0_4, %c0_5, %c0_6] : memref<8x16x16xf32, #tpu.memory_space<vmem>>, vector<8x16x16xf32>
    %6 = vector.shape_cast %5 : vector<8x16x16xf32> to vector<128x16xf32>
    %7 = arith.truncf %6 : vector<128x16xf32> to vector<128x16xbf16>
    %cst = arith.constant dense<0.000000e+00> : vector<128x16xf32>
    %8 = tpu.matmul %7, %3, %cst {dimension_numbers = #tpu.dot_dimension_numbers<[1], [0], [0], [1], [0, 0, 1, 1], [], []>} : vector<128x16xbf16>, vector<16x16xbf16>, vector<128x16xf32> -> vector<128x16xf32>
    %cst_7 = arith.constant dense<0.000000e+00> : vector<128x16xf32>
    %9 = tpu.matmul %7, %4, %cst_7 {dimension_numbers = #tpu.dot_dimension_numbers<[1], [0], [0], [1], [0, 0, 1, 1], [], []>} : vector<128x16xbf16>, vector<16x16xbf16>, vector<128x16xf32> -> vector<128x16xf32>
    %10 = vector.shape_cast %8 : vector<128x16xf32> to vector<8x16x16xf32>
    %11 = tpu.transpose %10, [0, 2, 1] : vector<8x16x16xf32> -> vector<8x16x16xf32>
    %12 = vector.shape_cast %11 : vector<8x16x16xf32> to vector<128x16xf32>
    %13 = arith.truncf %12 : vector<128x16xf32> to vector<128x16xbf16>
    %14 = vector.shape_cast %9 : vector<128x16xf32> to vector<8x16x16xf32>
    %15 = tpu.transpose %14, [0, 2, 1] : vector<8x16x16xf32> -> vector<8x16x16xf32>
    %16 = vector.shape_cast %15 : vector<8x16x16xf32> to vector<128x16xf32>
    %17 = arith.truncf %16 : vector<128x16xf32> to vector<128x16xbf16>
    %cst_8 = arith.constant dense<0.000000e+00> : vector<128x16xf32>
    %18 = tpu.matmul %13, %3, %cst_8 {dimension_numbers = #tpu.dot_dimension_numbers<[1], [0], [0], [1], [0, 0, 1, 1], [], []>} : vector<128x16xbf16>, vector<16x16xbf16>, vector<128x16xf32> -> vector<128x16xf32>
    %cst_9 = arith.constant dense<0.000000e+00> : vector<128x16xf32>
    %19 = tpu.matmul %17, %4, %cst_9 {dimension_numbers = #tpu.dot_dimension_numbers<[1], [0], [0], [1], [0, 0, 1, 1], [], []>} : vector<128x16xbf16>, vector<16x16xbf16>, vector<128x16xf32> -> vector<128x16xf32>
    %20 = arith.subf %18, %19 : vector<128x16xf32>
    %cst_10 = arith.constant dense<0.000000e+00> : vector<128x16xf32>
    %21 = tpu.matmul %13, %4, %cst_10 {dimension_numbers = #tpu.dot_dimension_numbers<[1], [0], [0], [1], [0, 0, 1, 1], [], []>} : vector<128x16xbf16>, vector<16x16xbf16>, vector<128x16xf32> -> vector<128x16xf32>
    %cst_11 = arith.constant dense<0.000000e+00> : vector<128x16xf32>
    %22 = tpu.matmul %17, %3, %cst_11 {dimension_numbers = #tpu.dot_dimension_numbers<[1], [0], [0], [1], [0, 0, 1, 1], [], []>} : vector<128x16xbf16>, vector<16x16xbf16>, vector<128x16xf32> -> vector<128x16xf32>
    %23 = arith.addf %21, %22 : vector<128x16xf32>
    %24 = arith.mulf %20, %20 : vector<128x16xf32>
    %25 = arith.mulf %23, %23 : vector<128x16xf32>
    %26 = arith.addf %24, %25 : vector<128x16xf32>
    %27 = math.sqrt %26 : vector<128x16xf32>
    %c0_12 = arith.constant 0 : index
    %c0_13 = arith.constant 0 : index
    %c0_14 = arith.constant 0 : index
    %28 = vector.load %arg3[%c0_12, %c0_13, %c0_14] : memref<8x16x16xf32, #tpu.memory_space<vmem>>, vector<8x16x16xf32>
    %29 = vector.shape_cast %28 : vector<8x16x16xf32> to vector<128x16xf32>
    %30 = arith.truncf %29 : vector<128x16xf32> to vector<128x16xbf16>
    %cst_15 = arith.constant dense<0.000000e+00> : vector<128x16xf32>
    %31 = tpu.matmul %30, %3, %cst_15 {dimension_numbers = #tpu.dot_dimension_numbers<[1], [0], [0], [1], [0, 0, 1, 1], [], []>} : vector<128x16xbf16>, vector<16x16xbf16>, vector<128x16xf32> -> vector<128x16xf32>
    %cst_16 = arith.constant dense<0.000000e+00> : vector<128x16xf32>
    %32 = tpu.matmul %30, %4, %cst_16 {dimension_numbers = #tpu.dot_dimension_numbers<[1], [0], [0], [1], [0, 0, 1, 1], [], []>} : vector<128x16xbf16>, vector<16x16xbf16>, vector<128x16xf32> -> vector<128x16xf32>
    %33 = vector.shape_cast %31 : vector<128x16xf32> to vector<8x16x16xf32>
    %34 = tpu.transpose %33, [0, 2, 1] : vector<8x16x16xf32> -> vector<8x16x16xf32>
    %35 = vector.shape_cast %34 : vector<8x16x16xf32> to vector<128x16xf32>
    %36 = arith.truncf %35 : vector<128x16xf32> to vector<128x16xbf16>
    %37 = vector.shape_cast %32 : vector<128x16xf32> to vector<8x16x16xf32>
    %38 = tpu.transpose %37, [0, 2, 1] : vector<8x16x16xf32> -> vector<8x16x16xf32>
    %39 = vector.shape_cast %38 : vector<8x16x16xf32> to vector<128x16xf32>
    %40 = arith.truncf %39 : vector<128x16xf32> to vector<128x16xbf16>
    %cst_17 = arith.constant dense<0.000000e+00> : vector<128x16xf32>
    %41 = tpu.matmul %36, %3, %cst_17 {dimension_numbers = #tpu.dot_dimension_numbers<[1], [0], [0], [1], [0, 0, 1, 1], [], []>} : vector<128x16xbf16>, vector<16x16xbf16>, vector<128x16xf32> -> vector<128x16xf32>
    %cst_18 = arith.constant dense<0.000000e+00> : vector<128x16xf32>
    %42 = tpu.matmul %40, %4, %cst_18 {dimension_numbers = #tpu.dot_dimension_numbers<[1], [0], [0], [1], [0, 0, 1, 1], [], []>} : vector<128x16xbf16>, vector<16x16xbf16>, vector<128x16xf32> -> vector<128x16xf32>
    %43 = arith.subf %41, %42 : vector<128x16xf32>
    %cst_19 = arith.constant dense<0.000000e+00> : vector<128x16xf32>
    %44 = tpu.matmul %36, %4, %cst_19 {dimension_numbers = #tpu.dot_dimension_numbers<[1], [0], [0], [1], [0, 0, 1, 1], [], []>} : vector<128x16xbf16>, vector<16x16xbf16>, vector<128x16xf32> -> vector<128x16xf32>
    %cst_20 = arith.constant dense<0.000000e+00> : vector<128x16xf32>
    %45 = tpu.matmul %40, %3, %cst_20 {dimension_numbers = #tpu.dot_dimension_numbers<[1], [0], [0], [1], [0, 0, 1, 1], [], []>} : vector<128x16xbf16>, vector<16x16xbf16>, vector<128x16xf32> -> vector<128x16xf32>
    %46 = arith.addf %44, %45 : vector<128x16xf32>
    %47 = arith.mulf %43, %43 : vector<128x16xf32>
    %48 = arith.mulf %46, %46 : vector<128x16xf32>
    %49 = arith.addf %47, %48 : vector<128x16xf32>
    %50 = math.sqrt %49 : vector<128x16xf32>
    %51 = arith.subf %27, %50 : vector<128x16xf32>
    %52 = math.absf %51 : vector<128x16xf32>
    %53 = arith.mulf %52, %27 : vector<128x16xf32>
    %cst_21 = arith.constant dense<0.000000e+00> : vector<128xf32>
    %54 = vector.multi_reduction <add>, %53, %cst_21 [1] : vector<128x16xf32> to vector<128xf32>
    %55 = vector.shape_cast %54 : vector<128xf32> to vector<128x1xf32>
    %c0_22 = arith.constant 0 : index
    %c0_23 = arith.constant 0 : index
    %56 = vector.load %arg7[%c0_22, %c0_23] : memref<128x1xf32, #tpu.memory_space<vmem>>, vector<128x1xf32>
    %57 = arith.addf %56, %55 : vector<128x1xf32>
    %c0_24 = arith.constant 0 : index
    %c0_25 = arith.constant 0 : index
    %58 = vector.load %arg7[%c0_24, %c0_25] : memref<128x1xf32, #tpu.memory_space<vmem>>, vector<128x1xf32>
    tpu.vector_store %arg7[%c0_24, %c0_25], %57 {strides = array<i32>} : memref<128x1xf32, #tpu.memory_space<vmem>>, vector<128x1xf32>,
    %c0_i32_26 = arith.constant 0 : i32
    %59 = arith.cmpi eq, %arg1, %c0_i32_26 : i32
    %60 = arith.extui %59 : i1 to i32
    %c0_i32_27 = arith.constant 0 : i32
    %61 = arith.cmpi ne, %60, %c0_i32_27 : i32
    scf.if %61 {
      %c0_28 = arith.constant 0 : index
      %c0_29 = arith.constant 0 : index
      %62 = vector.load %arg7[%c0_28, %c0_29] : memref<128x1xf32, #tpu.memory_space<vmem>>, vector<128x1xf32>
      %cst_30 = arith.constant dense<0.000000e+00> : vector<1xf32>
      %63 = vector.multi_reduction <add>, %62, %cst_30 [0] : vector<128x1xf32> to vector<1xf32>
      %64 = vector.shape_cast %63 : vector<1xf32> to vector<1x1xf32>
      %c0_31 = arith.constant 0 : index
      %c0_32 = arith.constant 0 : index
      %65 = vector.load %arg6[%c0_31, %c0_32] : memref<1x1xf32, #tpu.memory_space<vmem>>, vector<1x1xf32>
      tpu.vector_store %arg6[%c0_31, %c0_32], %64 {strides = array<i32>} : memref<1x1xf32, #tpu.memory_space<vmem>>, vector<1x1xf32>,
    } else {
    }
    return
  }
  func.func @transform_0(%arg0: i32, %arg1: i32) -> (i32, i32, i32) {
    %c1_i32 = arith.constant 1 : i32
    %0 = arith.muli %arg0, %c1_i32 : i32
    %1 = arith.addi %0, %arg1 : i32
    %c0_i32 = arith.constant 0 : i32
    %c0_i32_0 = arith.constant 0 : i32
    %c0_i32_1 = arith.constant 0 : i32
    return %1, %c0_i32, %c0_i32_0 : i32, i32, i32
  }
  func.func @transform_1(%arg0: i32, %arg1: i32) -> (i32, i32, i32) {
    %c1_i32 = arith.constant 1 : i32
    %0 = arith.muli %arg0, %c1_i32 : i32
    %1 = arith.addi %0, %arg1 : i32
    %c0_i32 = arith.constant 0 : i32
    %c0_i32_0 = arith.constant 0 : i32
    %c0_i32_1 = arith.constant 0 : i32
    return %1, %c0_i32, %c0_i32_0 : i32, i32, i32
  }
  func.func @transform_2(%arg0: i32, %arg1: i32) -> (i32, i32) {
    %c0_i32 = arith.constant 0 : i32
    %c0_i32_0 = arith.constant 0 : i32
    %c0_i32_1 = arith.constant 0 : i32
    return %c0_i32, %c0_i32_0 : i32, i32
  }
  func.func @transform_3(%arg0: i32, %arg1: i32) -> (i32, i32) {
    %c0_i32 = arith.constant 0 : i32
    %c0_i32_0 = arith.constant 0 : i32
    %c0_i32_1 = arith.constant 0 : i32
    return %c0_i32, %c0_i32_0 : i32, i32
  }
  func.func @transform_4(%arg0: i32, %arg1: i32) -> (i32, i32) {
    %c0_i32 = arith.constant 0 : i32
    %c0_i32_0 = arith.constant 0 : i32
    return %arg0, %c0_i32 : i32, i32
  }
}

module attributes {stable_mosaic.version = 11 : i64} {
  func.func @kernel(%arg0: i32, %arg1: i32, %arg2: memref<8x16x16xf32, #tpu.memory_space<vmem>>, %arg3: memref<8x16x16xf32, #tpu.memory_space<vmem>>, %arg4: memref<16x16xbf16, #tpu.memory_space<vmem>>, %arg5: memref<16x16xbf16, #tpu.memory_space<vmem>>, %arg6: memref<1x1xf32, #tpu.memory_space<vmem>>, %arg7: memref<128x1xf32, #tpu.memory_space<vmem>>) attributes {dimension_semantics = [#tpu.dimension_semantics<parallel>, #tpu.dimension_semantics<arbitrary>], iteration_bounds = array<i64: 1, 1>, scalar_prefetch = 0 : i64, scratch_operands = 1 : i64, tpu.core_type = #tpu.core_type<tc>, window_params = [{transform_indices = @transform_0, window_bounds = array<i64: 8, 16, 16>}, {transform_indices = @transform_1, window_bounds = array<i64: 8, 16, 16>}, {pipeline_mode = #tpu.pipeline_mode<synchronous>, transform_indices = @transform_2, window_bounds = array<i64: 16, 16>}, {pipeline_mode = #tpu.pipeline_mode<synchronous>, transform_indices = @transform_3, window_bounds = array<i64: 16, 16>}, {transform_indices = @transform_4, window_bounds = array<i64: 1, 1>}]} {
    %c0_i32 = arith.constant 0 : i32
    %0 = arith.cmpi eq, %arg1, %c0_i32 : i32
    %1 = arith.extui %0 : i1 to i32
    %c0_i32_0 = arith.constant 0 : i32
    %2 = arith.cmpi ne, %1, %c0_i32_0 : i32
    scf.if %2 {
      %cst_28 = arith.constant 0.000000e+00 : f32
      %62 = vector.broadcast %cst_28 : f32 to vector<128x1xf32>
      %c0_29 = arith.constant 0 : index
      %c0_30 = arith.constant 0 : index
      %63 = vector.load %arg7[%c0_29, %c0_30] : memref<128x1xf32, #tpu.memory_space<vmem>>, vector<128x1xf32>
      tpu.vector_store %arg7[%c0_29, %c0_30], %62 {strides = array<i32>} : memref<128x1xf32, #tpu.memory_space<vmem>>, vector<128x1xf32>,
    } else {
    }
    %c0 = arith.constant 0 : index
    %c0_1 = arith.constant 0 : index
    %3 = vector.load %arg4[%c0, %c0_1] : memref<16x16xbf16, #tpu.memory_space<vmem>>, vector<16x16xbf16>
    %c0_2 = arith.constant 0 : index
    %c0_3 = arith.constant 0 : index
    %4 = vector.load %arg5[%c0_2, %c0_3] : memref<16x16xbf16, #tpu.memory_space<vmem>>, vector<16x16xbf16>
    %c0_4 = arith.constant 0 : index
    %c0_5 = arith.constant 0 : index
    %c0_6 = arith.constant 0 : index
    %5 = vector.load %arg2[%c0_4, %c0_5, %c0_6] : memref<8x16x16xf32, #tpu.memory_space<vmem>>, vector<8x16x16xf32>
    %6 = vector.shape_cast %5 : vector<8x16x16xf32> to vector<128x16xf32>
    %7 = arith.truncf %6 : vector<128x16xf32> to vector<128x16xbf16>
    %cst = arith.constant dense<0.000000e+00> : vector<128x16xf32>
    %8 = tpu.matmul %7, %3, %cst {dimension_numbers = #tpu.dot_dimension_numbers<[1], [0], [0], [1], [0, 0, 1, 1], [], []>} : vector<128x16xbf16>, vector<16x16xbf16>, vector<128x16xf32> -> vector<128x16xf32>
    %cst_7 = arith.constant dense<0.000000e+00> : vector<128x16xf32>
    %9 = tpu.matmul %7, %4, %cst_7 {dimension_numbers = #tpu.dot_dimension_numbers<[1], [0], [0], [1], [0, 0, 1, 1], [], []>} : vector<128x16xbf16>, vector<16x16xbf16>, vector<128x16xf32> -> vector<128x16xf32>
    %10 = vector.shape_cast %8 : vector<128x16xf32> to vector<8x16x16xf32>
    %11 = tpu.transpose %10, [0, 2, 1] : vector<8x16x16xf32> -> vector<8x16x16xf32>
    %12 = vector.shape_cast %11 : vector<8x16x16xf32> to vector<128x16xf32>
    %13 = arith.truncf %12 : vector<128x16xf32> to vector<128x16xbf16>
    %14 = vector.shape_cast %9 : vector<128x16xf32> to vector<8x16x16xf32>
    %15 = tpu.transpose %14, [0, 2, 1] : vector<8x16x16xf32> -> vector<8x16x16xf32>
    %16 = vector.shape_cast %15 : vector<8x16x16xf32> to vector<128x16xf32>
    %17 = arith.truncf %16 : vector<128x16xf32> to vector<128x16xbf16>
    %cst_8 = arith.constant dense<0.000000e+00> : vector<128x16xf32>
    %18 = tpu.matmul %13, %3, %cst_8 {dimension_numbers = #tpu.dot_dimension_numbers<[1], [0], [0], [1], [0, 0, 1, 1], [], []>} : vector<128x16xbf16>, vector<16x16xbf16>, vector<128x16xf32> -> vector<128x16xf32>
    %cst_9 = arith.constant dense<0.000000e+00> : vector<128x16xf32>
    %19 = tpu.matmul %17, %4, %cst_9 {dimension_numbers = #tpu.dot_dimension_numbers<[1], [0], [0], [1], [0, 0, 1, 1], [], []>} : vector<128x16xbf16>, vector<16x16xbf16>, vector<128x16xf32> -> vector<128x16xf32>
    %20 = arith.subf %18, %19 : vector<128x16xf32>
    %cst_10 = arith.constant dense<0.000000e+00> : vector<128x16xf32>
    %21 = tpu.matmul %13, %4, %cst_10 {dimension_numbers = #tpu.dot_dimension_numbers<[1], [0], [0], [1], [0, 0, 1, 1], [], []>} : vector<128x16xbf16>, vector<16x16xbf16>, vector<128x16xf32> -> vector<128x16xf32>
    %cst_11 = arith.constant dense<0.000000e+00> : vector<128x16xf32>
    %22 = tpu.matmul %17, %3, %cst_11 {dimension_numbers = #tpu.dot_dimension_numbers<[1], [0], [0], [1], [0, 0, 1, 1], [], []>} : vector<128x16xbf16>, vector<16x16xbf16>, vector<128x16xf32> -> vector<128x16xf32>
    %23 = arith.addf %21, %22 : vector<128x16xf32>
    %24 = arith.mulf %20, %20 : vector<128x16xf32>
    %25 = arith.mulf %23, %23 : vector<128x16xf32>
    %26 = arith.addf %24, %25 : vector<128x16xf32>
    %27 = math.sqrt %26 : vector<128x16xf32>
    %c0_12 = arith.constant 0 : index
    %c0_13 = arith.constant 0 : index
    %c0_14 = arith.constant 0 : index
    %28 = vector.load %arg3[%c0_12, %c0_13, %c0_14] : memref<8x16x16xf32, #tpu.memory_space<vmem>>, vector<8x16x16xf32>
    %29 = vector.shape_cast %28 : vector<8x16x16xf32> to vector<128x16xf32>
    %30 = arith.truncf %29 : vector<128x16xf32> to vector<128x16xbf16>
    %cst_15 = arith.constant dense<0.000000e+00> : vector<128x16xf32>
    %31 = tpu.matmul %30, %3, %cst_15 {dimension_numbers = #tpu.dot_dimension_numbers<[1], [0], [0], [1], [0, 0, 1, 1], [], []>} : vector<128x16xbf16>, vector<16x16xbf16>, vector<128x16xf32> -> vector<128x16xf32>
    %cst_16 = arith.constant dense<0.000000e+00> : vector<128x16xf32>
    %32 = tpu.matmul %30, %4, %cst_16 {dimension_numbers = #tpu.dot_dimension_numbers<[1], [0], [0], [1], [0, 0, 1, 1], [], []>} : vector<128x16xbf16>, vector<16x16xbf16>, vector<128x16xf32> -> vector<128x16xf32>
    %33 = vector.shape_cast %31 : vector<128x16xf32> to vector<8x16x16xf32>
    %34 = tpu.transpose %33, [0, 2, 1] : vector<8x16x16xf32> -> vector<8x16x16xf32>
    %35 = vector.shape_cast %34 : vector<8x16x16xf32> to vector<128x16xf32>
    %36 = arith.truncf %35 : vector<128x16xf32> to vector<128x16xbf16>
    %37 = vector.shape_cast %32 : vector<128x16xf32> to vector<8x16x16xf32>
    %38 = tpu.transpose %37, [0, 2, 1] : vector<8x16x16xf32> -> vector<8x16x16xf32>
    %39 = vector.shape_cast %38 : vector<8x16x16xf32> to vector<128x16xf32>
    %40 = arith.truncf %39 : vector<128x16xf32> to vector<128x16xbf16>
    %cst_17 = arith.constant dense<0.000000e+00> : vector<128x16xf32>
    %41 = tpu.matmul %36, %3, %cst_17 {dimension_numbers = #tpu.dot_dimension_numbers<[1], [0], [0], [1], [0, 0, 1, 1], [], []>} : vector<128x16xbf16>, vector<16x16xbf16>, vector<128x16xf32> -> vector<128x16xf32>
    %cst_18 = arith.constant dense<0.000000e+00> : vector<128x16xf32>
    %42 = tpu.matmul %40, %4, %cst_18 {dimension_numbers = #tpu.dot_dimension_numbers<[1], [0], [0], [1], [0, 0, 1, 1], [], []>} : vector<128x16xbf16>, vector<16x16xbf16>, vector<128x16xf32> -> vector<128x16xf32>
    %43 = arith.subf %41, %42 : vector<128x16xf32>
    %cst_19 = arith.constant dense<0.000000e+00> : vector<128x16xf32>
    %44 = tpu.matmul %36, %4, %cst_19 {dimension_numbers = #tpu.dot_dimension_numbers<[1], [0], [0], [1], [0, 0, 1, 1], [], []>} : vector<128x16xbf16>, vector<16x16xbf16>, vector<128x16xf32> -> vector<128x16xf32>
    %cst_20 = arith.constant dense<0.000000e+00> : vector<128x16xf32>
    %45 = tpu.matmul %40, %3, %cst_20 {dimension_numbers = #tpu.dot_dimension_numbers<[1], [0], [0], [1], [0, 0, 1, 1], [], []>} : vector<128x16xbf16>, vector<16x16xbf16>, vector<128x16xf32> -> vector<128x16xf32>
    %46 = arith.addf %44, %45 : vector<128x16xf32>
    %47 = arith.mulf %43, %43 : vector<128x16xf32>
    %48 = arith.mulf %46, %46 : vector<128x16xf32>
    %49 = arith.addf %47, %48 : vector<128x16xf32>
    %50 = math.sqrt %49 : vector<128x16xf32>
    %51 = arith.subf %27, %50 : vector<128x16xf32>
    %52 = math.absf %51 : vector<128x16xf32>
    %53 = arith.mulf %52, %27 : vector<128x16xf32>
    %cst_21 = arith.constant dense<0.000000e+00> : vector<128xf32>
    %54 = vector.multi_reduction <add>, %53, %cst_21 [1] : vector<128x16xf32> to vector<128xf32>
    %55 = vector.shape_cast %54 : vector<128xf32> to vector<128x1xf32>
    %c0_22 = arith.constant 0 : index
    %c0_23 = arith.constant 0 : index
    %56 = vector.load %arg7[%c0_22, %c0_23] : memref<128x1xf32, #tpu.memory_space<vmem>>, vector<128x1xf32>
    %57 = arith.addf %56, %55 : vector<128x1xf32>
    %c0_24 = arith.constant 0 : index
    %c0_25 = arith.constant 0 : index
    %58 = vector.load %arg7[%c0_24, %c0_25] : memref<128x1xf32, #tpu.memory_space<vmem>>, vector<128x1xf32>
    tpu.vector_store %arg7[%c0_24, %c0_25], %57 {strides = array<i32>} : memref<128x1xf32, #tpu.memory_space<vmem>>, vector<128x1xf32>,
    %c0_i32_26 = arith.constant 0 : i32
    %59 = arith.cmpi eq, %arg1, %c0_i32_26 : i32
    %60 = arith.extui %59 : i1 to i32
    %c0_i32_27 = arith.constant 0 : i32
    %61 = arith.cmpi ne, %60, %c0_i32_27 : i32
    scf.if %61 {
      %c0_28 = arith.constant 0 : index
      %c0_29 = arith.constant 0 : index
      %62 = vector.load %arg7[%c0_28, %c0_29] : memref<128x1xf32, #tpu.memory_space<vmem>>, vector<128x1xf32>
      %cst_30 = arith.constant dense<0.000000e+00> : vector<1xf32>
      %63 = vector.multi_reduction <add>, %62, %cst_30 [0] : vector<128x1xf32> to vector<1xf32>
      %64 = vector.shape_cast %63 : vector<1xf32> to vector<1x1xf32>
      %c0_31 = arith.constant 0 : index
      %c0_32 = arith.constant 0 : index
      %65 = vector.load %arg6[%c0_31, %c0_32] : memref<1x1xf32, #tpu.memory_space<vmem>>, vector<1x1xf32>
      tpu.vector_store %arg6[%c0_31, %c0_32], %64 {strides = array<i32>} : memref<1x1xf32, #tpu.memory_space<vmem>>, vector<1x1xf32>,
    } else {
    }
    return
  }
  func.func @transform_0(%arg0: i32, %arg1: i32) -> (i32, i32, i32) {
    %c1_i32 = arith.constant 1 : i32
    %0 = arith.muli %arg0, %c1_i32 : i32
    %1 = arith.addi %0, %arg1 : i32
    %c0_i32 = arith.constant 0 : i32
    %c0_i32_0 = arith.constant 0 : i32
    %c0_i32_1 = arith.constant 0 : i32
    return %1, %c0_i32, %c0_i32_0 : i32, i32, i32
  }
  func.func @transform_1(%arg0: i32, %arg1: i32) -> (i32, i32, i32) {
    %c1_i32 = arith.constant 1 : i32
    %0 = arith.muli %arg0, %c1_i32 : i32
    %1 = arith.addi %0, %arg1 : i32
    %c0_i32 = arith.constant 0 : i32
    %c0_i32_0 = arith.constant 0 : i32
    %c0_i32_1 = arith.constant 0 : i32
    return %1, %c0_i32, %c0_i32_0 : i32, i32, i32
  }
  func.func @transform_2(%arg0: i32, %arg1: i32) -> (i32, i32) {
    %c0_i32 = arith.constant 0 : i32
    %c0_i32_0 = arith.constant 0 : i32
    %c0_i32_1 = arith.constant 0 : i32
    return %c0_i32, %c0_i32_0 : i32, i32
  }
  func.func @transform_3(%arg0: i32, %arg1: i32) -> (i32, i32) {
    %c0_i32 = arith.constant 0 : i32
    %c0_i32_0 = arith.constant 0 : i32
    %c0_i32_1 = arith.constant 0 : i32
    return %c0_i32, %c0_i32_0 : i32, i32
  }
  func.func @transform_4(%arg0: i32, %arg1: i32) -> (i32, i32) {
    %c0_i32 = arith.constant 0 : i32
    %c0_i32_0 = arith.constant 0 : i32
    return %arg0, %c0_i32 : i32, i32
  }
}

</mosaic_0001>

<llo_original>
// kernel: tpu_custom_call.1
$region0: #{tpu_custom_call.1}
  #allocation0 [shape = 'u32[]', space=smem, size = 0x4, offset = 0x4, fixed_abs, tag = 'smem constant byte address 0x4 - core index']
  #allocation1 [shape = 'u32[72,128]{1,0:T(1,128)}', space=vmem, size = 0x9000, scoped, tag = 'internal scratch']
  #allocation2 [shape = 'f32[128,1]{1,0:T(8,128)}', space=vmem, size = 0x10000, scoped, tag = 'scratch operand']
  %s0 = inlined_call_operand.hbm [shape: f32[8,16,16], index: 0, kind: input, shape index: {}]
  %s1 = inlined_call_operand.hbm [shape: f32[8,16,16], index: 1, kind: input, shape index: {}]
  %s2 = inlined_call_operand.hbm [shape: bf16[16,16], index: 2, kind: input, shape index: {}]
  %s3 = inlined_call_operand.hbm [shape: bf16[16,16], index: 3, kind: input, shape index: {}]
  %s4 = inlined_call_operand.hbm [shape: f32[1,1], index: 4, kind: output, shape index: {}]
  %s5 = sld [smem:[#allocation0]]
  $region50: #{tpu_custom_call.1} parent=0
    _
  %s7 = ssub.s32 1, %s5
  %s8 = scalar_select 0, %s7, %s5
  $region1: #{tpu_custom_call.1} parent=0
    #allocation3 [shape = 'u8[65536]{0}', space=vmem, size = 0x10000, scoped, tag = 'input window, operand 0, single buffered']
    #allocation4 [shape = 's32[1]{0}', space=sflag, size = 0x4, scoped, tag = 'scoped memory for tpu_custom_call.1']
    #allocation5 [shape = 's32[1]{0}', space=sflag, size = 0x4, scoped, tag = 'scoped memory for tpu_custom_call.1']
    #allocation6 [shape = 'u8[65536]{0}', space=vmem, size = 0x10000, scoped, tag = 'input window, operand 1, single buffered']
    #allocation7 [shape = 's32[1]{0}', space=sflag, size = 0x4, scoped, tag = 'scoped memory for tpu_custom_call.1']
    #allocation8 [shape = 'u8[4096]{0}', space=vmem, size = 0x1000, scoped, tag = 'input window, operand 2, single buffered']
    #allocation9 [shape = 'u8[4096]{0}', space=vmem, size = 0x1000, scoped, tag = 'input window, operand 3, single buffered']
    #allocation10 [shape = 's32[1]{0}', space=sflag, size = 0x4, scoped, tag = 'scoped memory for tpu_custom_call.1']
    #allocation11 [shape = 'u8[512]{0}', space=vmem, size = 0x400, scoped, tag = 'output window, operand 0, single buffered']
    %9 = vsyncpa [#allocation4], 0
    %10 = vsyncpa [#allocation7], 0
    %11 = vsyncpa [#allocation10], 0
    %12 = vsyncpa [#allocation5], 0
    // Predicated region
    $region2: #{tpu_custom_call.1} parent=1 // pred_check
      _
    $region3: #{tpu_custom_call.1} parent=1 // pred_check_branch
      %14 = sbr.rel (0) target = $region5
    $region4: #{tpu_custom_call.1} parent=1 // pred_region
      %s15 = sadd.s32 0, 0
      %s16 = smul.u32 8, %s15
      %18 = vsyncadd [#allocation4], 0
      %s19 = smul.addr %s16, 2
      %s20 = smul.addr %s19, 8
      %s21 = scalar_lea.hbm %s0, %s20
      %s22 = sshll.u32 %s21, 4
      %s23 = int_to_ptr.hbm [resolvable:$true] %s22
      %s24 = sshll.u32 [#allocation3], 4
      %s25 = int_to_ptr.vmem [resolvable:$true] %s24
      %30 = dma.hbm_to_vmem [thread:$0]  %s23, 2048, %s25, [#allocation4], 128, 128, 8
    $region5: #{tpu_custom_call.1} parent=1 // pred_fallthru
      _
    // Predicated region
    $region6: #{tpu_custom_call.1} parent=1 // pred_check
      _
    $region7: #{tpu_custom_call.1} parent=1 // pred_check_branch
      %32 = sbr.rel (0) target = $region9
    $region8: #{tpu_custom_call.1} parent=1 // pred_region
      %s33 = sadd.s32 0, 0
      %s34 = smul.u32 8, %s33
      %36 = vsyncadd [#allocation7], 0
      %s37 = smul.addr %s34, 2
      %s38 = smul.addr %s37, 8
      %s39 = scalar_lea.hbm %s1, %s38
      %s40 = sshll.u32 %s39, 4
      %s41 = int_to_ptr.hbm [resolvable:$true] %s40
      %s42 = sshll.u32 [#allocation6], 4
      %s43 = int_to_ptr.vmem [resolvable:$true] %s42
      %48 = dma.hbm_to_vmem [thread:$0]  %s41, 2048, %s43, [#allocation7], 128, 128, 8
    $region9: #{tpu_custom_call.1} parent=1 // pred_fallthru
      _
    // Predicated region
    $region10: #{tpu_custom_call.1} parent=1 // pred_check
      _
    $region11: #{tpu_custom_call.1} parent=1 // pred_check_branch
      %50 = sbr.rel (0) target = $region13
    $region12: #{tpu_custom_call.1} parent=1 // pred_region
      %52 = vsyncadd [#allocation7], 0
      %s53 = sshll.u32 %s2, 4
      %s54 = int_to_ptr.hbm [resolvable:$true] %s53
      %s55 = sshll.u32 [#allocation8], 4
      %s56 = int_to_ptr.vmem [resolvable:$true] %s55
      %61 = dma.hbm_to_vmem [thread:$0]  %s54, 128, %s56, [#allocation7], 64, 64, 4
    $region13: #{tpu_custom_call.1} parent=1 // pred_fallthru
      _
    // Predicated region
    $region14: #{tpu_custom_call.1} parent=1 // pred_check
      _
    $region15: #{tpu_custom_call.1} parent=1 // pred_check_branch
      %63 = sbr.rel (0) target = $region17
    $region16: #{tpu_custom_call.1} parent=1 // pred_region
      %65 = vsyncadd [#allocation10], 0
      %s66 = sshll.u32 %s3, 4
      %s67 = int_to_ptr.hbm [resolvable:$true] %s66
      %s68 = sshll.u32 [#allocation9], 4
      %s69 = int_to_ptr.vmem [resolvable:$true] %s68
      %74 = dma.hbm_to_vmem [thread:$0]  %s67, 128, %s69, [#allocation10], 64, 64, 4
    $region17: #{tpu_custom_call.1} parent=1 // pred_fallthru
      _
    // Predicated region
    $region18: #{tpu_custom_call.1} parent=1 // pred_check
      _
    $region19: #{tpu_custom_call.1} parent=1 // pred_check_branch
      %76 = sbr.rel (0) target = $region21
    $region20: #{tpu_custom_call.1} parent=1 // pred_region
      %78 = dma.done [#allocation4], 2048
    $region21: #{tpu_custom_call.1} parent=1 // pred_fallthru
      _
    // Predicated region
    $region22: #{tpu_custom_call.1} parent=1 // pred_check
      _
    $region23: #{tpu_custom_call.1} parent=1 // pred_check_branch
      %80 = sbr.rel (0) target = $region25
    $region24: #{tpu_custom_call.1} parent=1 // pred_region
      %82 = dma.done [#allocation7], 2048
    $region25: #{tpu_custom_call.1} parent=1 // pred_fallthru
      _
    // Predicated region
    $region26: #{tpu_custom_call.1} parent=1 // pred_check
      _
    $region27: #{tpu_custom_call.1} parent=1 // pred_check_branch
      %84 = sbr.rel (0) target = $region29
    $region28: #{tpu_custom_call.1} parent=1 // pred_region
      %86 = dma.done [#allocation7], 128
    $region29: #{tpu_custom_call.1} parent=1 // pred_fallthru
      _
    // Predicated region
    $region30: #{tpu_custom_call.1} parent=1 // pred_check
      _
    $region31: #{tpu_custom_call.1} parent=1 // pred_check_branch
      %88 = sbr.rel (0) target = $region33
    $region32: #{tpu_custom_call.1} parent=1 // pred_region
      %90 = dma.done [#allocation10], 128
    $region33: #{tpu_custom_call.1} parent=1 // pred_fallthru
      _
    %s91 = sadd.s32 0, 0
    %s92 = smul.u32 8, %s91
    %s93 = sadd.s32 0, 0
    %s94 = smul.u32 8, %s93
    %p96 = scmp.eq.s32.totalorder 0, 0
    // Predicated region
    $region34: #{tpu_custom_call.1} parent=1 // pred_check
      %p97 = pneg %p96
    $region35: #{tpu_custom_call.1} parent=1 // pred_check_branch
      %99 = sbr.rel (%p97) target = $region37
    $region36: #{tpu_custom_call.1} parent=1 // pred_region
      %vm100 = vcmask 7168
      %101 = vst.msk [vmem:[#allocation2] sm:$0xff] %vm100, 0.0
      %102 = vst.msk [vmem:[#allocation2 + $0x8] sm:$0xff] %vm100, 0.0
      %103 = vst.msk [vmem:[#allocation2 + $0x10] sm:$0xff] %vm100, 0.0
      %104 = vst.msk [vmem:[#allocation2 + $0x18] sm:$0xff] %vm100, 0.0
      %105 = vst.msk [vmem:[#allocation2 + $0x20] sm:$0xff] %vm100, 0.0
      %106 = vst.msk [vmem:[#allocation2 + $0x28] sm:$0xff] %vm100, 0.0
      %107 = vst.msk [vmem:[#allocation2 + $0x30] sm:$0xff] %vm100, 0.0
      %108 = vst.msk [vmem:[#allocation2 + $0x38] sm:$0xff] %vm100, 0.0
      %109 = vst.msk [vmem:[#allocation2 + $0x40] sm:$0xff] %vm100, 0.0
      %110 = vst.msk [vmem:[#allocation2 + $0x48] sm:$0xff] %vm100, 0.0
      %111 = vst.msk [vmem:[#allocation2 + $0x50] sm:$0xff] %vm100, 0.0
      %112 = vst.msk [vmem:[#allocation2 + $0x58] sm:$0xff] %vm100, 0.0
      %113 = vst.msk [vmem:[#allocation2 + $0x60] sm:$0xff] %vm100, 0.0
      %114 = vst.msk [vmem:[#allocation2 + $0x68] sm:$0xff] %vm100, 0.0
      %115 = vst.msk [vmem:[#allocation2 + $0x70] sm:$0xff] %vm100, 0.0
      %116 = vst.msk [vmem:[#allocation2 + $0x78] sm:$0xff] %vm100, 0.0
    $region37: #{tpu_custom_call.1} parent=1 // pred_fallthru
      _
    %v117 = vld [vmem:[#allocation8] sm:$0xf]
    %v118 = vld [vmem:[#allocation8 + $0x4] sm:$0xf]
    %v119 = vld [vmem:[#allocation9] sm:$0xf]
    %v120 = vld [vmem:[#allocation9 + $0x4] sm:$0xf]
    %v121 = vld [vmem:[#allocation3] sm:$0xff]
    %v122 = vld [vmem:[#allocation3 + $0x8] sm:$0xff]
    %v123 = vld [vmem:[#allocation3 + $0x10] sm:$0xff]
    %v124 = vld [vmem:[#allocation3 + $0x18] sm:$0xff]
    %v125 = vld [vmem:[#allocation3 + $0x20] sm:$0xff]
    %v126 = vld [vmem:[#allocation3 + $0x28] sm:$0xff]
    %v127 = vld [vmem:[#allocation3 + $0x30] sm:$0xff]
    %v128 = vld [vmem:[#allocation3 + $0x38] sm:$0xff]
    %v129 = vld [vmem:[#allocation3 + $0x40] sm:$0xff]
    %v130 = vld [vmem:[#allocation3 + $0x48] sm:$0xff]
    %v131 = vld [vmem:[#allocation3 + $0x50] sm:$0xff]
    %v132 = vld [vmem:[#allocation3 + $0x58] sm:$0xff]
    %v133 = vld [vmem:[#allocation3 + $0x60] sm:$0xff]
    %v134 = vld [vmem:[#allocation3 + $0x68] sm:$0xff]
    %v135 = vld [vmem:[#allocation3 + $0x70] sm:$0xff]
    %v136 = vld [vmem:[#allocation3 + $0x78] sm:$0xff]
    %v137 = vpack.c.bf16 %v122, %v121
    %v138 = vpack.c.bf16 %v124, %v123
    %v139 = vpack.c.bf16 %v126, %v125
    %v140 = vpack.c.bf16 %v128, %v127
    %v141 = vpack.c.bf16 %v130, %v129
    %v142 = vpack.c.bf16 %v132, %v131
    %v143 = vpack.c.bf16 %v134, %v133
    %v144 = vpack.c.bf16 %v136, %v135
    %v147 = vunpack.c.l.b16 %v117
    %v148 = vunpack.c.l.b16 %v118
    %v149 = vpack.c.b16 %v148, %v147
    %vm151 = vcmask 130048
    %v153 = vsel %vm151, %v137, 0
    %v156 = vsel %vm151, %v138, 0
    %v159 = vsel %vm151, %v139, 0
    %v162 = vsel %vm151, %v140, 0
    %v165 = vsel %vm151, %v141, 0
    %v168 = vsel %vm151, %v142, 0
    %v171 = vsel %vm151, %v143, 0
    %v174 = vsel %vm151, %v144, 0
    %176 = vmatpush.bf16.msra.mxu0 0
    %177 = vmatpush.bf16.msra.mxu0 0
    %178 = vmatpush.bf16.msra.mxu0 0
    %179 = vmatpush.bf16.msra.mxu0 0
    %180 = vmatpush.bf16.msra.mxu0 0
    %181 = vmatpush.bf16.msra.mxu0 0
    %182 = vmatpush.bf16.msra.mxu0 0
    %183 = vmatpush.bf16.msra.mxu0 %v149
    %184 = vmatmul.bf16.gmra.mxu0 %v153
    %v185 = vpop.f32.mrf.mxu0
    %v186 = vadd.f32 0.0, %v185
    %v187 = vpop.f32.mrf.mxu0
    %v188 = vadd.f32 0.0, %v187
    %189 = vmatmul.bf16.gmra.mxu0 %v156
    %v190 = vpop.f32.mrf.mxu0
    %v191 = vadd.f32 0.0, %v190
    %v192 = vpop.f32.mrf.mxu0
    %v193 = vadd.f32 0.0, %v192
    %194 = vmatmul.bf16.gmra.mxu0 %v159
    %v195 = vpop.f32.mrf.mxu0
    %v196 = vadd.f32 0.0, %v195
    %v197 = vpop.f32.mrf.mxu0
    %v198 = vadd.f32 0.0, %v197
    %199 = vmatmul.bf16.gmra.mxu0 %v162
    %v200 = vpop.f32.mrf.mxu0
    %v201 = vadd.f32 0.0, %v200
    %v202 = vpop.f32.mrf.mxu0
    %v203 = vadd.f32 0.0, %v202
    %204 = vmatmul.bf16.gmra.mxu0 %v165
    %v205 = vpop.f32.mrf.mxu0
    %v206 = vadd.f32 0.0, %v205
    %v207 = vpop.f32.mrf.mxu0
    %v208 = vadd.f32 0.0, %v207
    %209 = vmatmul.bf16.gmra.mxu0 %v168
    %v210 = vpop.f32.mrf.mxu0
    %v211 = vadd.f32 0.0, %v210
    %v212 = vpop.f32.mrf.mxu0
    %v213 = vadd.f32 0.0, %v212
    %214 = vmatmul.bf16.gmra.mxu0 %v171
    %v215 = vpop.f32.mrf.mxu0
    %v216 = vadd.f32 0.0, %v215
    %v217 = vpop.f32.mrf.mxu0
    %v218 = vadd.f32 0.0, %v217
    %219 = vmatmul.bf16.gmra.mxu0 %v174
    %v220 = vpop.f32.mrf.mxu0
    %v221 = vadd.f32 0.0, %v220
    %v222 = vpop.f32.mrf.mxu0
    %v223 = vadd.f32 0.0, %v222
    %224 = vdwg.mxu0
    %v227 = vunpack.c.l.b16 %v119
    %v228 = vunpack.c.l.b16 %v120
    %v229 = vpack.c.b16 %v228, %v227
    %231 = vmatpush.bf16.msra.mxu0 0
    %232 = vmatpush.bf16.msra.mxu0 0
    %233 = vmatpush.bf16.msra.mxu0 0
    %234 = vmatpush.bf16.msra.mxu0 0
    %235 = vmatpush.bf16.msra.mxu0 0
    %236 = vmatpush.bf16.msra.mxu0 0
    %237 = vmatpush.bf16.msra.mxu0 0
    %238 = vmatpush.bf16.msra.mxu0 %v229
    %239 = vmatmul.bf16.gmra.mxu0 %v153
    %v240 = vpop.f32.mrf.mxu0
    %v241 = vadd.f32 0.0, %v240
    %v242 = vpop.f32.mrf.mxu0
    %v243 = vadd.f32 0.0, %v242
    %244 = vmatmul.bf16.gmra.mxu0 %v156
    %v245 = vpop.f32.mrf.mxu0
    %v246 = vadd.f32 0.0, %v245
    %v247 = vpop.f32.mrf.mxu0
    %v248 = vadd.f32 0.0, %v247
    %249 = vmatmul.bf16.gmra.mxu0 %v159
    %v250 = vpop.f32.mrf.mxu0
    %v251 = vadd.f32 0.0, %v250
    %v252 = vpop.f32.mrf.mxu0
    %v253 = vadd.f32 0.0, %v252
    %254 = vmatmul.bf16.gmra.mxu0 %v162
    %v255 = vpop.f32.mrf.mxu0
    %v256 = vadd.f32 0.0, %v255
    %v257 = vpop.f32.mrf.mxu0
    %v258 = vadd.f32 0.0, %v257
    %259 = vmatmul.bf16.gmra.mxu0 %v165
    %v260 = vpop.f32.mrf.mxu0
    %v261 = vadd.f32 0.0, %v260
    %v262 = vpop.f32.mrf.mxu0
    %v263 = vadd.f32 0.0, %v262
    %264 = vmatmul.bf16.gmra.mxu0 %v168
    %v265 = vpop.f32.mrf.mxu0
    %v266 = vadd.f32 0.0, %v265
    %v267 = vpop.f32.mrf.mxu0
    %v268 = vadd.f32 0.0, %v267
    %269 = vmatmul.bf16.gmra.mxu0 %v171
    %v270 = vpop.f32.mrf.mxu0
    %v271 = vadd.f32 0.0, %v270
    %v272 = vpop.f32.mrf.mxu0
    %v273 = vadd.f32 0.0, %v272
    %274 = vmatmul.bf16.gmra.mxu0 %v174
    %v275 = vpop.f32.mrf.mxu0
    %v276 = vadd.f32 0.0, %v275
    %v277 = vpop.f32.mrf.mxu0
    %v278 = vadd.f32 0.0, %v277
    %279 = vdwg.mxu0
    %280 = vxpose.xlu0.b32.start [1/16] %v186, 128
    %281 = vxpose.xlu0.b32.cont [2/16] %v188, 128
    %282 = vxpose.xlu0.b32.cont [3/16] 0.0, 128
    %283 = vxpose.xlu0.b32.cont [4/16] 0.0, 128
    %284 = vxpose.xlu0.b32.cont [5/16] 0.0, 128
    %285 = vxpose.xlu0.b32.cont [6/16] 0.0, 128
    %286 = vxpose.xlu0.b32.cont [7/16] 0.0, 128
    %287 = vxpose.xlu0.b32.cont [8/16] 0.0, 128
    %288 = vxpose.xlu0.b32.cont [9/16] 0.0, 128
    %289 = vxpose.xlu0.b32.cont [10/16] 0.0, 128
    %290 = vxpose.xlu0.b32.cont [11/16] 0.0, 128
    %291 = vxpose.xlu0.b32.cont [12/16] 0.0, 128
    %292 = vxpose.xlu0.b32.cont [13/16] 0.0, 128
    %293 = vxpose.xlu0.b32.cont [14/16] 0.0, 128
    %294 = vxpose.xlu0.b32.cont [15/16] 0.0, 128
    %295 = vxpose.xlu0.b32.end [16/16] 0.0, 128
    %v296 = vpop.trf.xlu0
    %v297 = vpop.trf.xlu0
    %v298 = vpop.trf.xlu0
    %v299 = vpop.trf.xlu0
    %v300 = vpop.trf.xlu0
    %v301 = vpop.trf.xlu0
    %v302 = vpop.trf.xlu0
    %v303 = vpop.trf.xlu0
    %v304 = vpop.trf.xlu0
    %v305 = vpop.trf.xlu0
    %v306 = vpop.trf.xlu0
    %v307 = vpop.trf.xlu0
    %v308 = vpop.trf.xlu0
    %v309 = vpop.trf.xlu0
    %v310 = vpop.trf.xlu0
    %v311 = vpop.trf.xlu0
    %312 = vxpose.xlu0.b32.start [1/16] %v191, 128
    %313 = vxpose.xlu0.b32.cont [2/16] %v193, 128
    %314 = vxpose.xlu0.b32.cont [3/16] 0.0, 128
    %315 = vxpose.xlu0.b32.cont [4/16] 0.0, 128
    %316 = vxpose.xlu0.b32.cont [5/16] 0.0, 128
    %317 = vxpose.xlu0.b32.cont [6/16] 0.0, 128
    %318 = vxpose.xlu0.b32.cont [7/16] 0.0, 128
    %319 = vxpose.xlu0.b32.cont [8/16] 0.0, 128
    %320 = vxpose.xlu0.b32.cont [9/16] 0.0, 128
    %321 = vxpose.xlu0.b32.cont [10/16] 0.0, 128
    %322 = vxpose.xlu0.b32.cont [11/16] 0.0, 128
    %323 = vxpose.xlu0.b32.cont [12/16] 0.0, 128
    %324 = vxpose.xlu0.b32.cont [13/16] 0.0, 128
    %325 = vxpose.xlu0.b32.cont [14/16] 0.0, 128
    %326 = vxpose.xlu0.b32.cont [15/16] 0.0, 128
    %327 = vxpose.xlu0.b32.end [16/16] 0.0, 128
    %v328 = vpop.trf.xlu0
    %v329 = vpop.trf.xlu0
    %v330 = vpop.trf.xlu0
    %v331 = vpop.trf.xlu0
    %v332 = vpop.trf.xlu0
    %v333 = vpop.trf.xlu0
    %v334 = vpop.trf.xlu0
    %v335 = vpop.trf.xlu0
    %v336 = vpop.trf.xlu0
    %v337 = vpop.trf.xlu0
    %v338 = vpop.trf.xlu0
    %v339 = vpop.trf.xlu0
    %v340 = vpop.trf.xlu0
    %v341 = vpop.trf.xlu0
    %v342 = vpop.trf.xlu0
    %v343 = vpop.trf.xlu0
    %344 = vxpose.xlu0.b32.start [1/16] %v196, 128
    %345 = vxpose.xlu0.b32.cont [2/16] %v198, 128
    %346 = vxpose.xlu0.b32.cont [3/16] 0.0, 128
    %347 = vxpose.xlu0.b32.cont [4/16] 0.0, 128
    %348 = vxpose.xlu0.b32.cont [5/16] 0.0, 128
    %349 = vxpose.xlu0.b32.cont [6/16] 0.0, 128
    %350 = vxpose.xlu0.b32.cont [7/16] 0.0, 128
    %351 = vxpose.xlu0.b32.cont [8/16] 0.0, 128
    %352 = vxpose.xlu0.b32.cont [9/16] 0.0, 128
    %353 = vxpose.xlu0.b32.cont [10/16] 0.0, 128
    %354 = vxpose.xlu0.b32.cont [11/16] 0.0, 128
    %355 = vxpose.xlu0.b32.cont [12/16] 0.0, 128
    %356 = vxpose.xlu0.b32.cont [13/16] 0.0, 128
    %357 = vxpose.xlu0.b32.cont [14/16] 0.0, 128
    %358 = vxpose.xlu0.b32.cont [15/16] 0.0, 128
    %359 = vxpose.xlu0.b32.end [16/16] 0.0, 128
    %v360 = vpop.trf.xlu0
    %v361 = vpop.trf.xlu0
    %v362 = vpop.trf.xlu0
    %v363 = vpop.trf.xlu0
    %v364 = vpop.trf.xlu0
    %v365 = vpop.trf.xlu0
    %v366 = vpop.trf.xlu0
    %v367 = vpop.trf.xlu0
    %v368 = vpop.trf.xlu0
    %v369 = vpop.trf.xlu0
    %v370 = vpop.trf.xlu0
    %v371 = vpop.trf.xlu0
    %v372 = vpop.trf.xlu0
    %v373 = vpop.trf.xlu0
    %v374 = vpop.trf.xlu0
    %v375 = vpop.trf.xlu0
    %376 = vxpose.xlu0.b32.start [1/16] %v201, 128
    %377 = vxpose.xlu0.b32.cont [2/16] %v203, 128
    %378 = vxpose.xlu0.b32.cont [3/16] 0.0, 128
    %379 = vxpose.xlu0.b32.cont [4/16] 0.0, 128
    %380 = vxpose.xlu0.b32.cont [5/16] 0.0, 128
    %381 = vxpose.xlu0.b32.cont [6/16] 0.0, 128
    %382 = vxpose.xlu0.b32.cont [7/16] 0.0, 128
    %383 = vxpose.xlu0.b32.cont [8/16] 0.0, 128
    %384 = vxpose.xlu0.b32.cont [9/16] 0.0, 128
    %385 = vxpose.xlu0.b32.cont [10/16] 0.0, 128
    %386 = vxpose.xlu0.b32.cont [11/16] 0.0, 128
    %387 = vxpose.xlu0.b32.cont [12/16] 0.0, 128
    %388 = vxpose.xlu0.b32.cont [13/16] 0.0, 128
    %389 = vxpose.xlu0.b32.cont [14/16] 0.0, 128
    %390 = vxpose.xlu0.b32.cont [15/16] 0.0, 128
    %391 = vxpose.xlu0.b32.end [16/16] 0.0, 128
    %v392 = vpop.trf.xlu0
    %v393 = vpop.trf.xlu0
    %v394 = vpop.trf.xlu0
    %v395 = vpop.trf.xlu0
    %v396 = vpop.trf.xlu0
    %v397 = vpop.trf.xlu0
    %v398 = vpop.trf.xlu0
    %v399 = vpop.trf.xlu0
    %v400 = vpop.trf.xlu0
    %v401 = vpop.trf.xlu0
    %v402 = vpop.trf.xlu0
    %v403 = vpop.trf.xlu0
    %v404 = vpop.trf.xlu0
    %v405 = vpop.trf.xlu0
    %v406 = vpop.trf.xlu0
    %v407 = vpop.trf.xlu0
    %408 = vxpose.xlu0.b32.start [1/16] %v206, 128
    %409 = vxpose.xlu0.b32.cont [2/16] %v208, 128
    %410 = vxpose.xlu0.b32.cont [3/16] 0.0, 128
    %411 = vxpose.xlu0.b32.cont [4/16] 0.0, 128
    %412 = vxpose.xlu0.b32.cont [5/16] 0.0, 128
    %413 = vxpose.xlu0.b32.cont [6/16] 0.0, 128
    %414 = vxpose.xlu0.b32.cont [7/16] 0.0, 128
    %415 = vxpose.xlu0.b32.cont [8/16] 0.0, 128
    %416 = vxpose.xlu0.b32.cont [9/16] 0.0, 128
    %417 = vxpose.xlu0.b32.cont [10/16] 0.0, 128
    %418 = vxpose.xlu0.b32.cont [11/16] 0.0, 128
    %419 = vxpose.xlu0.b32.cont [12/16] 0.0, 128
    %420 = vxpose.xlu0.b32.cont [13/16] 0.0, 128
    %421 = vxpose.xlu0.b32.cont [14/16] 0.0, 128
    %422 = vxpose.xlu0.b32.cont [15/16] 0.0, 128
    %423 = vxpose.xlu0.b32.end [16/16] 0.0, 128
    %v424 = vpop.trf.xlu0
    %v425 = vpop.trf.xlu0
    %v426 = vpop.trf.xlu0
    %v427 = vpop.trf.xlu0
    %v428 = vpop.trf.xlu0
    %v429 = vpop.trf.xlu0
    %v430 = vpop.trf.xlu0
    %v431 = vpop.trf.xlu0
    %v432 = vpop.trf.xlu0
    %v433 = vpop.trf.xlu0
    %v434 = vpop.trf.xlu0
    %v435 = vpop.trf.xlu0
    %v436 = vpop.trf.xlu0
    %v437 = vpop.trf.xlu0
    %v438 = vpop.trf.xlu0
    %v439 = vpop.trf.xlu0
    %440 = vxpose.xlu0.b32.start [1/16] %v211, 128
    %441 = vxpose.xlu0.b32.cont [2/16] %v213, 128
    %442 = vxpose.xlu0.b32.cont [3/16] 0.0, 128
    %443 = vxpose.xlu0.b32.cont [4/16] 0.0, 128
    %444 = vxpose.xlu0.b32.cont [5/16] 0.0, 128
    %445 = vxpose.xlu0.b32.cont [6/16] 0.0, 128
    %446 = vxpose.xlu0.b32.cont [7/16] 0.0, 128
    %447 = vxpose.xlu0.b32.cont [8/16] 0.0, 128
    %448 = vxpose.xlu0.b32.cont [9/16] 0.0, 128
    %449 = vxpose.xlu0.b32.cont [10/16] 0.0, 128
    %450 = vxpose.xlu0.b32.cont [11/16] 0.0, 128
    %451 = vxpose.xlu0.b32.cont [12/16] 0.0, 128
    %452 = vxpose.xlu0.b32.cont [13/16] 0.0, 128
    %453 = vxpose.xlu0.b32.cont [14/16] 0.0, 128
    %454 = vxpose.xlu0.b32.cont [15/16] 0.0, 128
    %455 = vxpose.xlu0.b32.end [16/16] 0.0, 128
    %v456 = vpop.trf.xlu0
    %v457 = vpop.trf.xlu0
    %v458 = vpop.trf.xlu0
    %v459 = vpop.trf.xlu0
    %v460 = vpop.trf.xlu0
    %v461 = vpop.trf.xlu0
    %v462 = vpop.trf.xlu0
    %v463 = vpop.trf.xlu0
    %v464 = vpop.trf.xlu0
    %v465 = vpop.trf.xlu0
    %v466 = vpop.trf.xlu0
    %v467 = vpop.trf.xlu0
    %v468 = vpop.trf.xlu0
    %v469 = vpop.trf.xlu0
    %v470 = vpop.trf.xlu0
    %v471 = vpop.trf.xlu0
    %472 = vxpose.xlu0.b32.start [1/16] %v216, 128
    %473 = vxpose.xlu0.b32.cont [2/16] %v218, 128
    %474 = vxpose.xlu0.b32.cont [3/16] 0.0, 128
    %475 = vxpose.xlu0.b32.cont [4/16] 0.0, 128
    %476 = vxpose.xlu0.b32.cont [5/16] 0.0, 128
    %477 = vxpose.xlu0.b32.cont [6/16] 0.0, 128
    %478 = vxpose.xlu0.b32.cont [7/16] 0.0, 128
    %479 = vxpose.xlu0.b32.cont [8/16] 0.0, 128
    %480 = vxpose.xlu0.b32.cont [9/16] 0.0, 128
    %481 = vxpose.xlu0.b32.cont [10/16] 0.0, 128
    %482 = vxpose.xlu0.b32.cont [11/16] 0.0, 128
    %483 = vxpose.xlu0.b32.cont [12/16] 0.0, 128
    %484 = vxpose.xlu0.b32.cont [13/16] 0.0, 128
    %485 = vxpose.xlu0.b32.cont [14/16] 0.0, 128
    %486 = vxpose.xlu0.b32.cont [15/16] 0.0, 128
    %487 = vxpose.xlu0.b32.end [16/16] 0.0, 128
    %v488 = vpop.trf.xlu0
    %v489 = vpop.trf.xlu0
    %v490 = vpop.trf.xlu0
    %v491 = vpop.trf.xlu0
    %v492 = vpop.trf.xlu0
    %v493 = vpop.trf.xlu0
    %v494 = vpop.trf.xlu0
    %v495 = vpop.trf.xlu0
    %v496 = vpop.trf.xlu0
    %v497 = vpop.trf.xlu0
    %v498 = vpop.trf.xlu0
    %v499 = vpop.trf.xlu0
    %v500 = vpop.trf.xlu0
    %v501 = vpop.trf.xlu0
    %v502 = vpop.trf.xlu0
    %v503 = vpop.trf.xlu0
    %504 = vxpose.xlu0.b32.start [1/16] %v221, 128
    %505 = vxpose.xlu0.b32.cont [2/16] %v223, 128
    %506 = vxpose.xlu0.b32.cont [3/16] 0.0, 128
    %507 = vxpose.xlu0.b32.cont [4/16] 0.0, 128
    %508 = vxpose.xlu0.b32.cont [5/16] 0.0, 128
    %509 = vxpose.xlu0.b32.cont [6/16] 0.0, 128
    %510 = vxpose.xlu0.b32.cont [7/16] 0.0, 128
    %511 = vxpose.xlu0.b32.cont [8/16] 0.0, 128
    %512 = vxpose.xlu0.b32.cont [9/16] 0.0, 128
    %513 = vxpose.xlu0.b32.cont [10/16] 0.0, 128
    %514 = vxpose.xlu0.b32.cont [11/16] 0.0, 128
    %515 = vxpose.xlu0.b32.cont [12/16] 0.0, 128
    %516 = vxpose.xlu0.b32.cont [13/16] 0.0, 128
    %517 = vxpose.xlu0.b32.cont [14/16] 0.0, 128
    %518 = vxpose.xlu0.b32.cont [15/16] 0.0, 128
    %519 = vxpose.xlu0.b32.end [16/16] 0.0, 128
    %v520 = vpop.trf.xlu0
    %v521 = vpop.trf.xlu0
    %v522 = vpop.trf.xlu0
    %v523 = vpop.trf.xlu0
    %v524 = vpop.trf.xlu0
    %v525 = vpop.trf.xlu0
    %v526 = vpop.trf.xlu0
    %v527 = vpop.trf.xlu0
    %v528 = vpop.trf.xlu0
    %v529 = vpop.trf.xlu0
    %v530 = vpop.trf.xlu0
    %v531 = vpop.trf.xlu0
    %v532 = vpop.trf.xlu0
    %v533 = vpop.trf.xlu0
    %v534 = vpop.trf.xlu0
    %v535 = vpop.trf.xlu0
    %v536 = vpack.c.bf16 %v297, %v296
    %v537 = vpack.c.bf16 %v329, %v328
    %v538 = vpack.c.bf16 %v361, %v360
    %v539 = vpack.c.bf16 %v393, %v392
    %v540 = vpack.c.bf16 %v425, %v424
    %v541 = vpack.c.bf16 %v457, %v456
    %v542 = vpack.c.bf16 %v489, %v488
    %v543 = vpack.c.bf16 %v521, %v520
    %544 = vxpose.xlu0.b32.start [1/16] %v241, 128
    %545 = vxpose.xlu0.b32.cont [2/16] %v243, 128
    %546 = vxpose.xlu0.b32.cont [3/16] 0.0, 128
    %547 = vxpose.xlu0.b32.cont [4/16] 0.0, 128
    %548 = vxpose.xlu0.b32.cont [5/16] 0.0, 128
    %549 = vxpose.xlu0.b32.cont [6/16] 0.0, 128
    %550 = vxpose.xlu0.b32.cont [7/16] 0.0, 128
    %551 = vxpose.xlu0.b32.cont [8/16] 0.0, 128
    %552 = vxpose.xlu0.b32.cont [9/16] 0.0, 128
    %553 = vxpose.xlu0.b32.cont [10/16] 0.0, 128
    %554 = vxpose.xlu0.b32.cont [11/16] 0.0, 128
    %555 = vxpose.xlu0.b32.cont [12/16] 0.0, 128
    %556 = vxpose.xlu0.b32.cont [13/16] 0.0, 128
    %557 = vxpose.xlu0.b32.cont [14/16] 0.0, 128
    %558 = vxpose.xlu0.b32.cont [15/16] 0.0, 128
    %559 = vxpose.xlu0.b32.end [16/16] 0.0, 128
    %v560 = vpop.trf.xlu0
    %v561 = vpop.trf.xlu0
    %v562 = vpop.trf.xlu0
    %v563 = vpop.trf.xlu0
    %v564 = vpop.trf.xlu0
    %v565 = vpop.trf.xlu0
    %v566 = vpop.trf.xlu0
    %v567 = vpop.trf.xlu0
    %v568 = vpop.trf.xlu0
    %v569 = vpop.trf.xlu0
    %v570 = vpop.trf.xlu0
    %v571 = vpop.trf.xlu0
    %v572 = vpop.trf.xlu0
    %v573 = vpop.trf.xlu0
    %v574 = vpop.trf.xlu0
    %v575 = vpop.trf.xlu0
    %576 = vxpose.xlu0.b32.start [1/16] %v246, 128
    %577 = vxpose.xlu0.b32.cont [2/16] %v248, 128
    %578 = vxpose.xlu0.b32.cont [3/16] 0.0, 128
    %579 = vxpose.xlu0.b32.cont [4/16] 0.0, 128
    %580 = vxpose.xlu0.b32.cont [5/16] 0.0, 128
    %581 = vxpose.xlu0.b32.cont [6/16] 0.0, 128
    %582 = vxpose.xlu0.b32.cont [7/16] 0.0, 128
    %583 = vxpose.xlu0.b32.cont [8/16] 0.0, 128
    %584 = vxpose.xlu0.b32.cont [9/16] 0.0, 128
    %585 = vxpose.xlu0.b32.cont [10/16] 0.0, 128
    %586 = vxpose.xlu0.b32.cont [11/16] 0.0, 128
    %587 = vxpose.xlu0.b32.cont [12/16] 0.0, 128
    %588 = vxpose.xlu0.b32.cont [13/16] 0.0, 128
    %589 = vxpose.xlu0.b32.cont [14/16] 0.0, 128
    %590 = vxpose.xlu0.b32.cont [15/16] 0.0, 128
    %591 = vxpose.xlu0.b32.end [16/16] 0.0, 128
    %v592 = vpop.trf.xlu0
    %v593 = vpop.trf.xlu0
    %v594 = vpop.trf.xlu0
    %v595 = vpop.trf.xlu0
    %v596 = vpop.trf.xlu0
    %v597 = vpop.trf.xlu0
    %v598 = vpop.trf.xlu0
    %v599 = vpop.trf.xlu0
    %v600 = vpop.trf.xlu0
    %v601 = vpop.trf.xlu0
    %v602 = vpop.trf.xlu0
    %v603 = vpop.trf.xlu0
    %v604 = vpop.trf.xlu0
    %v605 = vpop.trf.xlu0
    %v606 = vpop.trf.xlu0
    %v607 = vpop.trf.xlu0
    %608 = vxpose.xlu0.b32.start [1/16] %v251, 128
    %609 = vxpose.xlu0.b32.cont [2/16] %v253, 128
    %610 = vxpose.xlu0.b32.cont [3/16] 0.0, 128
    %611 = vxpose.xlu0.b32.cont [4/16] 0.0, 128
    %612 = vxpose.xlu0.b32.cont [5/16] 0.0, 128
    %613 = vxpose.xlu0.b32.cont [6/16] 0.0, 128
    %614 = vxpose.xlu0.b32.cont [7/16] 0.0, 128
    %615 = vxpose.xlu0.b32.cont [8/16] 0.0, 128
    %616 = vxpose.xlu0.b32.cont [9/16] 0.0, 128
    %617 = vxpose.xlu0.b32.cont [10/16] 0.0, 128
    %618 = vxpose.xlu0.b32.cont [11/16] 0.0, 128
    %619 = vxpose.xlu0.b32.cont [12/16] 0.0, 128
    %620 = vxpose.xlu0.b32.cont [13/16] 0.0, 128
    %621 = vxpose.xlu0.b32.cont [14/16] 0.0, 128
    %622 = vxpose.xlu0.b32.cont [15/16] 0.0, 128
    %623 = vxpose.xlu0.b32.end [16/16] 0.0, 128
    %v624 = vpop.trf.xlu0
    %v625 = vpop.trf.xlu0
    %v626 = vpop.trf.xlu0
    %v627 = vpop.trf.xlu0
    %v628 = vpop.trf.xlu0
    %v629 = vpop.trf.xlu0
    %v630 = vpop.trf.xlu0
    %v631 = vpop.trf.xlu0
    %v632 = vpop.trf.xlu0
    %v633 = vpop.trf.xlu0
    %v634 = vpop.trf.xlu0
    %v635 = vpop.trf.xlu0
    %v636 = vpop.trf.xlu0
    %v637 = vpop.trf.xlu0
    %v638 = vpop.trf.xlu0
    %v639 = vpop.trf.xlu0
    %640 = vxpose.xlu0.b32.start [1/16] %v256, 128
    %641 = vxpose.xlu0.b32.cont [2/16] %v258, 128
    %642 = vxpose.xlu0.b32.cont [3/16] 0.0, 128
    %643 = vxpose.xlu0.b32.cont [4/16] 0.0, 128
    %644 = vxpose.xlu0.b32.cont [5/16] 0.0, 128
    %645 = vxpose.xlu0.b32.cont [6/16] 0.0, 128
    %646 = vxpose.xlu0.b32.cont [7/16] 0.0, 128
    %647 = vxpose.xlu0.b32.cont [8/16] 0.0, 128
    %648 = vxpose.xlu0.b32.cont [9/16] 0.0, 128
    %649 = vxpose.xlu0.b32.cont [10/16] 0.0, 128
    %650 = vxpose.xlu0.b32.cont [11/16] 0.0, 128
    %651 = vxpose.xlu0.b32.cont [12/16] 0.0, 128
    %652 = vxpose.xlu0.b32.cont [13/16] 0.0, 128
    %653 = vxpose.xlu0.b32.cont [14/16] 0.0, 128
    %654 = vxpose.xlu0.b32.cont [15/16] 0.0, 128
    %655 = vxpose.xlu0.b32.end [16/16] 0.0, 128
    %v656 = vpop.trf.xlu0
    %v657 = vpop.trf.xlu0
    %v658 = vpop.trf.xlu0
    %v659 = vpop.trf.xlu0
    %v660 = vpop.trf.xlu0
    %v661 = vpop.trf.xlu0
    %v662 = vpop.trf.xlu0
    %v663 = vpop.trf.xlu0
    %v664 = vpop.trf.xlu0
    %v665 = vpop.trf.xlu0
    %v666 = vpop.trf.xlu0
    %v667 = vpop.trf.xlu0
    %v668 = vpop.trf.xlu0
    %v669 = vpop.trf.xlu0
    %v670 = vpop.trf.xlu0
    %v671 = vpop.trf.xlu0
    %672 = vxpose.xlu0.b32.start [1/16] %v261, 128
    %673 = vxpose.xlu0.b32.cont [2/16] %v263, 128
    %674 = vxpose.xlu0.b32.cont [3/16] 0.0, 128
    %675 = vxpose.xlu0.b32.cont [4/16] 0.0, 128
    %676 = vxpose.xlu0.b32.cont [5/16] 0.0, 128
    %677 = vxpose.xlu0.b32.cont [6/16] 0.0, 128
    %678 = vxpose.xlu0.b32.cont [7/16] 0.0, 128
    %679 = vxpose.xlu0.b32.cont [8/16] 0.0, 128
    %680 = vxpose.xlu0.b32.cont [9/16] 0.0, 128
    %681 = vxpose.xlu0.b32.cont [10/16] 0.0, 128
    %682 = vxpose.xlu0.b32.cont [11/16] 0.0, 128
    %683 = vxpose.xlu0.b32.cont [12/16] 0.0, 128
    %684 = vxpose.xlu0.b32.cont [13/16] 0.0, 128
    %685 = vxpose.xlu0.b32.cont [14/16] 0.0, 128
    %686 = vxpose.xlu0.b32.cont [15/16] 0.0, 128
    %687 = vxpose.xlu0.b32.end [16/16] 0.0, 128
    %v688 = vpop.trf.xlu0
    %v689 = vpop.trf.xlu0
    %v690 = vpop.trf.xlu0
    %v691 = vpop.trf.xlu0
    %v692 = vpop.trf.xlu0
    %v693 = vpop.trf.xlu0
    %v694 = vpop.trf.xlu0
    %v695 = vpop.trf.xlu0
    %v696 = vpop.trf.xlu0
    %v697 = vpop.trf.xlu0
    %v698 = vpop.trf.xlu0
    %v699 = vpop.trf.xlu0
    %v700 = vpop.trf.xlu0
    %v701 = vpop.trf.xlu0
    %v702 = vpop.trf.xlu0
    %v703 = vpop.trf.xlu0
    %704 = vxpose.xlu0.b32.start [1/16] %v266, 128
    %705 = vxpose.xlu0.b32.cont [2/16] %v268, 128
    %706 = vxpose.xlu0.b32.cont [3/16] 0.0, 128
    %707 = vxpose.xlu0.b32.cont [4/16] 0.0, 128
    %708 = vxpose.xlu0.b32.cont [5/16] 0.0, 128
    %709 = vxpose.xlu0.b32.cont [6/16] 0.0, 128
    %710 = vxpose.xlu0.b32.cont [7/16] 0.0, 128
    %711 = vxpose.xlu0.b32.cont [8/16] 0.0, 128
    %712 = vxpose.xlu0.b32.cont [9/16] 0.0, 128
    %713 = vxpose.xlu0.b32.cont [10/16] 0.0, 128
    %714 = vxpose.xlu0.b32.cont [11/16] 0.0, 128
    %715 = vxpose.xlu0.b32.cont [12/16] 0.0, 128
    %716 = vxpose.xlu0.b32.cont [13/16] 0.0, 128
    %717 = vxpose.xlu0.b32.cont [14/16] 0.0, 128
    %718 = vxpose.xlu0.b32.cont [15/16] 0.0, 128
    %719 = vxpose.xlu0.b32.end [16/16] 0.0, 128
    %v720 = vpop.trf.xlu0
    %v721 = vpop.trf.xlu0
    %v722 = vpop.trf.xlu0
    %v723 = vpop.trf.xlu0
    %v724 = vpop.trf.xlu0
    %v725 = vpop.trf.xlu0
    %v726 = vpop.trf.xlu0
    %v727 = vpop.trf.xlu0
    %v728 = vpop.trf.xlu0
    %v729 = vpop.trf.xlu0
    %v730 = vpop.trf.xlu0
    %v731 = vpop.trf.xlu0
    %v732 = vpop.trf.xlu0
    %v733 = vpop.trf.xlu0
    %v734 = vpop.trf.xlu0
    %v735 = vpop.trf.xlu0
    %736 = vxpose.xlu0.b32.start [1/16] %v271, 128
    %737 = vxpose.xlu0.b32.cont [2/16] %v273, 128
    %738 = vxpose.xlu0.b32.cont [3/16] 0.0, 128
    %739 = vxpose.xlu0.b32.cont [4/16] 0.0, 128
    %740 = vxpose.xlu0.b32.cont [5/16] 0.0, 128
    %741 = vxpose.xlu0.b32.cont [6/16] 0.0, 128
    %742 = vxpose.xlu0.b32.cont [7/16] 0.0, 128
    %743 = vxpose.xlu0.b32.cont [8/16] 0.0, 128
    %744 = vxpose.xlu0.b32.cont [9/16] 0.0, 128
    %745 = vxpose.xlu0.b32.cont [10/16] 0.0, 128
    %746 = vxpose.xlu0.b32.cont [11/16] 0.0, 128
    %747 = vxpose.xlu0.b32.cont [12/16] 0.0, 128
    %748 = vxpose.xlu0.b32.cont [13/16] 0.0, 128
    %749 = vxpose.xlu0.b32.cont [14/16] 0.0, 128
    %750 = vxpose.xlu0.b32.cont [15/16] 0.0, 128
    %751 = vxpose.xlu0.b32.end [16/16] 0.0, 128
    %v752 = vpop.trf.xlu0
    %v753 = vpop.trf.xlu0
    %v754 = vpop.trf.xlu0
    %v755 = vpop.trf.xlu0
    %v756 = vpop.trf.xlu0
    %v757 = vpop.trf.xlu0
    %v758 = vpop.trf.xlu0
    %v759 = vpop.trf.xlu0
    %v760 = vpop.trf.xlu0
    %v761 = vpop.trf.xlu0
    %v762 = vpop.trf.xlu0
    %v763 = vpop.trf.xlu0
    %v764 = vpop.trf.xlu0
    %v765 = vpop.trf.xlu0
    %v766 = vpop.trf.xlu0
    %v767 = vpop.trf.xlu0
    %768 = vxpose.xlu0.b32.start [1/16] %v276, 128
    %769 = vxpose.xlu0.b32.cont [2/16] %v278, 128
    %770 = vxpose.xlu0.b32.cont [3/16] 0.0, 128
    %771 = vxpose.xlu0.b32.cont [4/16] 0.0, 128
    %772 = vxpose.xlu0.b32.cont [5/16] 0.0, 128
    %773 = vxpose.xlu0.b32.cont [6/16] 0.0, 128
    %774 = vxpose.xlu0.b32.cont [7/16] 0.0, 128
    %775 = vxpose.xlu0.b32.cont [8/16] 0.0, 128
    %776 = vxpose.xlu0.b32.cont [9/16] 0.0, 128
    %777 = vxpose.xlu0.b32.cont [10/16] 0.0, 128
    %778 = vxpose.xlu0.b32.cont [11/16] 0.0, 128
    %779 = vxpose.xlu0.b32.cont [12/16] 0.0, 128
    %780 = vxpose.xlu0.b32.cont [13/16] 0.0, 128
    %781 = vxpose.xlu0.b32.cont [14/16] 0.0, 128
    %782 = vxpose.xlu0.b32.cont [15/16] 0.0, 128
    %783 = vxpose.xlu0.b32.end [16/16] 0.0, 128
    %v784 = vpop.trf.xlu0
    %v785 = vpop.trf.xlu0
    %v786 = vpop.trf.xlu0
    %v787 = vpop.trf.xlu0
    %v788 = vpop.trf.xlu0
    %v789 = vpop.trf.xlu0
    %v790 = vpop.trf.xlu0
    %v791 = vpop.trf.xlu0
    %v792 = vpop.trf.xlu0
    %v793 = vpop.trf.xlu0
    %v794 = vpop.trf.xlu0
    %v795 = vpop.trf.xlu0
    %v796 = vpop.trf.xlu0
    %v797 = vpop.trf.xlu0
    %v798 = vpop.trf.xlu0
    %v799 = vpop.trf.xlu0
    %v800 = vpack.c.bf16 %v561, %v560
    %v801 = vpack.c.bf16 %v593, %v592
    %v802 = vpack.c.bf16 %v625, %v624
    %v803 = vpack.c.bf16 %v657, %v656
    %v804 = vpack.c.bf16 %v689, %v688
    %v805 = vpack.c.bf16 %v721, %v720
    %v806 = vpack.c.bf16 %v753, %v752
    %v807 = vpack.c.bf16 %v785, %v784
    %v809 = vsel %vm151, %v536, 0
    %v812 = vsel %vm151, %v537, 0
    %v815 = vsel %vm151, %v538, 0
    %v818 = vsel %vm151, %v539, 0
    %v821 = vsel %vm151, %v540, 0
    %v824 = vsel %vm151, %v541, 0
    %v827 = vsel %vm151, %v542, 0
    %v830 = vsel %vm151, %v543, 0
    %832 = vmatpush.bf16.msra.mxu0 0
    %833 = vmatpush.bf16.msra.mxu0 0
    %834 = vmatpush.bf16.msra.mxu0 0
    %835 = vmatpush.bf16.msra.mxu0 0
    %836 = vmatpush.bf16.msra.mxu0 0
    %837 = vmatpush.bf16.msra.mxu0 0
    %838 = vmatpush.bf16.msra.mxu0 0
    %839 = vmatpush.bf16.msra.mxu0 %v149
    %840 = vmatmul.bf16.gmra.mxu0 %v809
    %v841 = vpop.f32.mrf.mxu0
    %v842 = vadd.f32 0.0, %v841
    %v843 = vpop.f32.mrf.mxu0
    %v844 = vadd.f32 0.0, %v843
    %845 = vmatmul.bf16.gmra.mxu0 %v812
    %v846 = vpop.f32.mrf.mxu0
    %v847 = vadd.f32 0.0, %v846
    %v848 = vpop.f32.mrf.mxu0
    %v849 = vadd.f32 0.0, %v848
    %850 = vmatmul.bf16.gmra.mxu0 %v815
    %v851 = vpop.f32.mrf.mxu0
    %v852 = vadd.f32 0.0, %v851
    %v853 = vpop.f32.mrf.mxu0
    %v854 = vadd.f32 0.0, %v853
    %855 = vmatmul.bf16.gmra.mxu0 %v818
    %v856 = vpop.f32.mrf.mxu0
    %v857 = vadd.f32 0.0, %v856
    %v858 = vpop.f32.mrf.mxu0
    %v859 = vadd.f32 0.0, %v858
    %860 = vmatmul.bf16.gmra.mxu0 %v821
    %v861 = vpop.f32.mrf.mxu0
    %v862 = vadd.f32 0.0, %v861
    %v863 = vpop.f32.mrf.mxu0
    %v864 = vadd.f32 0.0, %v863
    %865 = vmatmul.bf16.gmra.mxu0 %v824
    %v866 = vpop.f32.mrf.mxu0
    %v867 = vadd.f32 0.0, %v866
    %v868 = vpop.f32.mrf.mxu0
    %v869 = vadd.f32 0.0, %v868
    %870 = vmatmul.bf16.gmra.mxu0 %v827
    %v871 = vpop.f32.mrf.mxu0
    %v872 = vadd.f32 0.0, %v871
    %v873 = vpop.f32.mrf.mxu0
    %v874 = vadd.f32 0.0, %v873
    %875 = vmatmul.bf16.gmra.mxu0 %v830
    %v876 = vpop.f32.mrf.mxu0
    %v877 = vadd.f32 0.0, %v876
    %v878 = vpop.f32.mrf.mxu0
    %v879 = vadd.f32 0.0, %v878
    %880 = vdwg.mxu0
    %v882 = vsel %vm151, %v800, 0
    %v885 = vsel %vm151, %v801, 0
    %v888 = vsel %vm151, %v802, 0
    %v891 = vsel %vm151, %v803, 0
    %v894 = vsel %vm151, %v804, 0
    %v897 = vsel %vm151, %v805, 0
    %v900 = vsel %vm151, %v806, 0
    %v903 = vsel %vm151, %v807, 0
    %905 = vmatpush.bf16.msra.mxu0 0
    %906 = vmatpush.bf16.msra.mxu0 0
    %907 = vmatpush.bf16.msra.mxu0 0
    %908 = vmatpush.bf16.msra.mxu0 0
    %909 = vmatpush.bf16.msra.mxu0 0
    %910 = vmatpush.bf16.msra.mxu0 0
    %911 = vmatpush.bf16.msra.mxu0 0
    %912 = vmatpush.bf16.msra.mxu0 %v229
    %913 = vmatmul.bf16.gmra.mxu0 %v882
    %v914 = vpop.f32.mrf.mxu0
    %v915 = vadd.f32 0.0, %v914
    %v916 = vpop.f32.mrf.mxu0
    %v917 = vadd.f32 0.0, %v916
    %918 = vmatmul.bf16.gmra.mxu0 %v885
    %v919 = vpop.f32.mrf.mxu0
    %v920 = vadd.f32 0.0, %v919
    %v921 = vpop.f32.mrf.mxu0
    %v922 = vadd.f32 0.0, %v921
    %923 = vmatmul.bf16.gmra.mxu0 %v888
    %v924 = vpop.f32.mrf.mxu0
    %v925 = vadd.f32 0.0, %v924
    %v926 = vpop.f32.mrf.mxu0
    %v927 = vadd.f32 0.0, %v926
    %928 = vmatmul.bf16.gmra.mxu0 %v891
    %v929 = vpop.f32.mrf.mxu0
    %v930 = vadd.f32 0.0, %v929
    %v931 = vpop.f32.mrf.mxu0
    %v932 = vadd.f32 0.0, %v931
    %933 = vmatmul.bf16.gmra.mxu0 %v894
    %v934 = vpop.f32.mrf.mxu0
    %v935 = vadd.f32 0.0, %v934
    %v936 = vpop.f32.mrf.mxu0
    %v937 = vadd.f32 0.0, %v936
    %938 = vmatmul.bf16.gmra.mxu0 %v897
    %v939 = vpop.f32.mrf.mxu0
    %v940 = vadd.f32 0.0, %v939
    %v941 = vpop.f32.mrf.mxu0
    %v942 = vadd.f32 0.0, %v941
    %943 = vmatmul.bf16.gmra.mxu0 %v900
    %v944 = vpop.f32.mrf.mxu0
    %v945 = vadd.f32 0.0, %v944
    %v946 = vpop.f32.mrf.mxu0
    %v947 = vadd.f32 0.0, %v946
    %948 = vmatmul.bf16.gmra.mxu0 %v903
    %v949 = vpop.f32.mrf.mxu0
    %v950 = vadd.f32 0.0, %v949
    %v951 = vpop.f32.mrf.mxu0
    %v952 = vadd.f32 0.0, %v951
    %953 = vdwg.mxu0
    %v954 = vsub.f32 %v842, %v915
    %v955 = vsub.f32 %v844, %v917
    %v956 = vsub.f32 %v847, %v920
    %v957 = vsub.f32 %v849, %v922
    %v958 = vsub.f32 %v852, %v925
    %v959 = vsub.f32 %v854, %v927
    %v960 = vsub.f32 %v857, %v930
    %v961 = vsub.f32 %v859, %v932
    %v962 = vsub.f32 %v862, %v935
    %v963 = vsub.f32 %v864, %v937
    %v964 = vsub.f32 %v867, %v940
    %v965 = vsub.f32 %v869, %v942
    %v966 = vsub.f32 %v872, %v945
    %v967 = vsub.f32 %v874, %v947
    %v968 = vsub.f32 %v877, %v950
    %v969 = vsub.f32 %v879, %v952
    %970 = vmatpush.bf16.msra.mxu0 0
    %971 = vmatpush.bf16.msra.mxu0 0
    %972 = vmatpush.bf16.msra.mxu0 0
    %973 = vmatpush.bf16.msra.mxu0 0
    %974 = vmatpush.bf16.msra.mxu0 0
    %975 = vmatpush.bf16.msra.mxu0 0
    %976 = vmatpush.bf16.msra.mxu0 0
    %977 = vmatpush.bf16.msra.mxu0 %v149
    %978 = vmatmul.bf16.gmra.mxu0 %v882
    %v979 = vpop.f32.mrf.mxu0
    %v980 = vadd.f32 0.0, %v979
    %v981 = vpop.f32.mrf.mxu0
    %v982 = vadd.f32 0.0, %v981
    %983 = vmatmul.bf16.gmra.mxu0 %v885
    %v984 = vpop.f32.mrf.mxu0
    %v985 = vadd.f32 0.0, %v984
    %v986 = vpop.f32.mrf.mxu0
    %v987 = vadd.f32 0.0, %v986
    %988 = vmatmul.bf16.gmra.mxu0 %v888
    %v989 = vpop.f32.mrf.mxu0
    %v990 = vadd.f32 0.0, %v989
    %v991 = vpop.f32.mrf.mxu0
    %v992 = vadd.f32 0.0, %v991
    %993 = vmatmul.bf16.gmra.mxu0 %v891
    %v994 = vpop.f32.mrf.mxu0
    %v995 = vadd.f32 0.0, %v994
    %v996 = vpop.f32.mrf.mxu0
    %v997 = vadd.f32 0.0, %v996
    %998 = vmatmul.bf16.gmra.mxu0 %v894
    %v999 = vpop.f32.mrf.mxu0
    %v1000 = vadd.f32 0.0, %v999
    %v1001 = vpop.f32.mrf.mxu0
    %v1002 = vadd.f32 0.0, %v1001
    %1003 = vmatmul.bf16.gmra.mxu0 %v897
    %v1004 = vpop.f32.mrf.mxu0
    %v1005 = vadd.f32 0.0, %v1004
    %v1006 = vpop.f32.mrf.mxu0
    %v1007 = vadd.f32 0.0, %v1006
    %1008 = vmatmul.bf16.gmra.mxu0 %v900
    %v1009 = vpop.f32.mrf.mxu0
    %v1010 = vadd.f32 0.0, %v1009
    %v1011 = vpop.f32.mrf.mxu0
    %v1012 = vadd.f32 0.0, %v1011
    %1013 = vmatmul.bf16.gmra.mxu0 %v903
    %v1014 = vpop.f32.mrf.mxu0
    %v1015 = vadd.f32 0.0, %v1014
    %v1016 = vpop.f32.mrf.mxu0
    %v1017 = vadd.f32 0.0, %v1016
    %1018 = vdwg.mxu0
    %1019 = vmatpush.bf16.msra.mxu0 0
    %1020 = vmatpush.bf16.msra.mxu0 0
    %1021 = vmatpush.bf16.msra.mxu0 0
    %1022 = vmatpush.bf16.msra.mxu0 0
    %1023 = vmatpush.bf16.msra.mxu0 0
    %1024 = vmatpush.bf16.msra.mxu0 0
    %1025 = vmatpush.bf16.msra.mxu0 0
    %1026 = vmatpush.bf16.msra.mxu0 %v229
    %1027 = vmatmul.bf16.gmra.mxu0 %v809
    %v1028 = vpop.f32.mrf.mxu0
    %v1029 = vadd.f32 %v980, %v1028
    %v1030 = vpop.f32.mrf.mxu0
    %v1031 = vadd.f32 %v982, %v1030
    %1032 = vmatmul.bf16.gmra.mxu0 %v812
    %v1033 = vpop.f32.mrf.mxu0
    %v1034 = vadd.f32 %v985, %v1033
    %v1035 = vpop.f32.mrf.mxu0
    %v1036 = vadd.f32 %v987, %v1035
    %1037 = vmatmul.bf16.gmra.mxu0 %v815
    %v1038 = vpop.f32.mrf.mxu0
    %v1039 = vadd.f32 %v990, %v1038
    %v1040 = vpop.f32.mrf.mxu0
    %v1041 = vadd.f32 %v992, %v1040
    %1042 = vmatmul.bf16.gmra.mxu0 %v818
    %v1043 = vpop.f32.mrf.mxu0
    %v1044 = vadd.f32 %v995, %v1043
    %v1045 = vpop.f32.mrf.mxu0
    %v1046 = vadd.f32 %v997, %v1045
    %1047 = vmatmul.bf16.gmra.mxu0 %v821
    %v1048 = vpop.f32.mrf.mxu0
    %v1049 = vadd.f32 %v1000, %v1048
    %v1050 = vpop.f32.mrf.mxu0
    %v1051 = vadd.f32 %v1002, %v1050
    %1052 = vmatmul.bf16.gmra.mxu0 %v824
    %v1053 = vpop.f32.mrf.mxu0
    %v1054 = vadd.f32 %v1005, %v1053
    %v1055 = vpop.f32.mrf.mxu0
    %v1056 = vadd.f32 %v1007, %v1055
    %1057 = vmatmul.bf16.gmra.mxu0 %v827
    %v1058 = vpop.f32.mrf.mxu0
    %v1059 = vadd.f32 %v1010, %v1058
    %v1060 = vpop.f32.mrf.mxu0
    %v1061 = vadd.f32 %v1012, %v1060
    %1062 = vmatmul.bf16.gmra.mxu0 %v830
    %v1063 = vpop.f32.mrf.mxu0
    %v1064 = vadd.f32 %v1015, %v1063
    %v1065 = vpop.f32.mrf.mxu0
    %v1066 = vadd.f32 %v1017, %v1065
    %1067 = vdwg.mxu0
    %v1068 = vmul.f32 %v954, %v954
    %v1069 = vmul.f32 %v955, %v955
    %v1070 = vmul.f32 %v956, %v956
    %v1071 = vmul.f32 %v957, %v957
    %v1072 = vmul.f32 %v958, %v958
    %v1073 = vmul.f32 %v959, %v959
    %v1074 = vmul.f32 %v960, %v960
    %v1075 = vmul.f32 %v961, %v961
    %v1076 = vmul.f32 %v962, %v962
    %v1077 = vmul.f32 %v963, %v963
    %v1078 = vmul.f32 %v964, %v964
    %v1079 = vmul.f32 %v965, %v965
    %v1080 = vmul.f32 %v966, %v966
    %v1081 = vmul.f32 %v967, %v967
    %v1082 = vmul.f32 %v968, %v968
    %v1083 = vmul.f32 %v969, %v969
    %v1084 = vmul.f32 %v1029, %v1029
    %v1085 = vmul.f32 %v1031, %v1031
    %v1086 = vmul.f32 %v1034, %v1034
    %v1087 = vmul.f32 %v1036, %v1036
    %v1088 = vmul.f32 %v1039, %v1039
    %v1089 = vmul.f32 %v1041, %v1041
    %v1090 = vmul.f32 %v1044, %v1044
    %v1091 = vmul.f32 %v1046, %v1046
    %v1092 = vmul.f32 %v1049, %v1049
    %v1093 = vmul.f32 %v1051, %v1051
    %v1094 = vmul.f32 %v1054, %v1054
    %v1095 = vmul.f32 %v1056, %v1056
    %v1096 = vmul.f32 %v1059, %v1059
    %v1097 = vmul.f32 %v1061, %v1061
    %v1098 = vmul.f32 %v1064, %v1064
    %v1099 = vmul.f32 %v1066, %v1066
    %v1100 = vadd.f32 %v1068, %v1084
    %v1101 = vadd.f32 %v1069, %v1085
    %v1102 = vadd.f32 %v1070, %v1086
    %v1103 = vadd.f32 %v1071, %v1087
    %v1104 = vadd.f32 %v1072, %v1088
    %v1105 = vadd.f32 %v1073, %v1089
    %v1106 = vadd.f32 %v1074, %v1090
    %v1107 = vadd.f32 %v1075, %v1091
    %v1108 = vadd.f32 %v1076, %v1092
    %v1109 = vadd.f32 %v1077, %v1093
    %v1110 = vadd.f32 %v1078, %v1094
    %v1111 = vadd.f32 %v1079, %v1095
    %v1112 = vadd.f32 %v1080, %v1096
    %v1113 = vadd.f32 %v1081, %v1097
    %v1114 = vadd.f32 %v1082, %v1098
    %v1115 = vadd.f32 %v1083, %v1099
    %v1116 = vrsqrt.pop %v1100
    %v1117 = vmul.f32 %v1116, %v1100
    %v1118 = vmul.f32 %v1117, %v1116
    %v1119 = vmul.f32 0.5, %v1118
    %v1120 = vsub.f32 1.5, %v1119
    %v1121 = vmul.f32 %v1116, %v1120
    %v1122 = vmul.f32 %v1100, %v1121
    %vm1123 = vcmp.eq.f32.partialorder %v1100, inf
    %v1124 = vsel %vm1123, %v1100, %v1122
    %vm1125 = vcmp.eq.f32.partialorder %v1100, 0.0
    %v1126 = vand.u32 %v1100, 2147483648
    %v1127 = vsel %vm1125, %v1126, %v1124
    %v1128 = vrsqrt.pop %v1101
    %v1129 = vmul.f32 %v1128, %v1101
    %v1130 = vmul.f32 %v1129, %v1128
    %v1131 = vmul.f32 0.5, %v1130
    %v1132 = vsub.f32 1.5, %v1131
    %v1133 = vmul.f32 %v1128, %v1132
    %v1134 = vmul.f32 %v1101, %v1133
    %vm1135 = vcmp.eq.f32.partialorder %v1101, inf
    %v1136 = vsel %vm1135, %v1101, %v1134
    %vm1137 = vcmp.eq.f32.partialorder %v1101, 0.0
    %v1138 = vand.u32 %v1101, 2147483648
    %v1139 = vsel %vm1137, %v1138, %v1136
    %v1140 = vrsqrt.pop %v1102
    %v1141 = vmul.f32 %v1140, %v1102
    %v1142 = vmul.f32 %v1141, %v1140
    %v1143 = vmul.f32 0.5, %v1142
    %v1144 = vsub.f32 1.5, %v1143
    %v1145 = vmul.f32 %v1140, %v1144
    %v1146 = vmul.f32 %v1102, %v1145
    %vm1147 = vcmp.eq.f32.partialorder %v1102, inf
    %v1148 = vsel %vm1147, %v1102, %v1146
    %vm1149 = vcmp.eq.f32.partialorder %v1102, 0.0
    %v1150 = vand.u32 %v1102, 2147483648
    %v1151 = vsel %vm1149, %v1150, %v1148
    %v1152 = vrsqrt.pop %v1103
    %v1153 = vmul.f32 %v1152, %v1103
    %v1154 = vmul.f32 %v1153, %v1152
    %v1155 = vmul.f32 0.5, %v1154
    %v1156 = vsub.f32 1.5, %v1155
    %v1157 = vmul.f32 %v1152, %v1156
    %v1158 = vmul.f32 %v1103, %v1157
    %vm1159 = vcmp.eq.f32.partialorder %v1103, inf
    %v1160 = vsel %vm1159, %v1103, %v1158
    %vm1161 = vcmp.eq.f32.partialorder %v1103, 0.0
    %v1162 = vand.u32 %v1103, 2147483648
    %v1163 = vsel %vm1161, %v1162, %v1160
    %v1164 = vrsqrt.pop %v1104
    %v1165 = vmul.f32 %v1164, %v1104
    %v1166 = vmul.f32 %v1165, %v1164
    %v1167 = vmul.f32 0.5, %v1166
    %v1168 = vsub.f32 1.5, %v1167
    %v1169 = vmul.f32 %v1164, %v1168
    %v1170 = vmul.f32 %v1104, %v1169
    %vm1171 = vcmp.eq.f32.partialorder %v1104, inf
    %v1172 = vsel %vm1171, %v1104, %v1170
    %vm1173 = vcmp.eq.f32.partialorder %v1104, 0.0
    %v1174 = vand.u32 %v1104, 2147483648
    %v1175 = vsel %vm1173, %v1174, %v1172
    %v1176 = vrsqrt.pop %v1105
    %v1177 = vmul.f32 %v1176, %v1105
    %v1178 = vmul.f32 %v1177, %v1176
    %v1179 = vmul.f32 0.5, %v1178
    %v1180 = vsub.f32 1.5, %v1179
    %v1181 = vmul.f32 %v1176, %v1180
    %v1182 = vmul.f32 %v1105, %v1181
    %vm1183 = vcmp.eq.f32.partialorder %v1105, inf
    %v1184 = vsel %vm1183, %v1105, %v1182
    %vm1185 = vcmp.eq.f32.partialorder %v1105, 0.0
    %v1186 = vand.u32 %v1105, 2147483648
    %v1187 = vsel %vm1185, %v1186, %v1184
    %v1188 = vrsqrt.pop %v1106
    %v1189 = vmul.f32 %v1188, %v1106
    %v1190 = vmul.f32 %v1189, %v1188
    %v1191 = vmul.f32 0.5, %v1190
    %v1192 = vsub.f32 1.5, %v1191
    %v1193 = vmul.f32 %v1188, %v1192
    %v1194 = vmul.f32 %v1106, %v1193
    %vm1195 = vcmp.eq.f32.partialorder %v1106, inf
    %v1196 = vsel %vm1195, %v1106, %v1194
    %vm1197 = vcmp.eq.f32.partialorder %v1106, 0.0
    %v1198 = vand.u32 %v1106, 2147483648
    %v1199 = vsel %vm1197, %v1198, %v1196
    %v1200 = vrsqrt.pop %v1107
    %v1201 = vmul.f32 %v1200, %v1107
    %v1202 = vmul.f32 %v1201, %v1200
    %v1203 = vmul.f32 0.5, %v1202
    %v1204 = vsub.f32 1.5, %v1203
    %v1205 = vmul.f32 %v1200, %v1204
    %v1206 = vmul.f32 %v1107, %v1205
    %vm1207 = vcmp.eq.f32.partialorder %v1107, inf
    %v1208 = vsel %vm1207, %v1107, %v1206
    %vm1209 = vcmp.eq.f32.partialorder %v1107, 0.0
    %v1210 = vand.u32 %v1107, 2147483648
    %v1211 = vsel %vm1209, %v1210, %v1208
    %v1212 = vrsqrt.pop %v1108
    %v1213 = vmul.f32 %v1212, %v1108
    %v1214 = vmul.f32 %v1213, %v1212
    %v1215 = vmul.f32 0.5, %v1214
    %v1216 = vsub.f32 1.5, %v1215
    %v1217 = vmul.f32 %v1212, %v1216
    %v1218 = vmul.f32 %v1108, %v1217
    %vm1219 = vcmp.eq.f32.partialorder %v1108, inf
    %v1220 = vsel %vm1219, %v1108, %v1218
    %vm1221 = vcmp.eq.f32.partialorder %v1108, 0.0
    %v1222 = vand.u32 %v1108, 2147483648
    %v1223 = vsel %vm1221, %v1222, %v1220
    %v1224 = vrsqrt.pop %v1109
    %v1225 = vmul.f32 %v1224, %v1109
    %v1226 = vmul.f32 %v1225, %v1224
    %v1227 = vmul.f32 0.5, %v1226
    %v1228 = vsub.f32 1.5, %v1227
    %v1229 = vmul.f32 %v1224, %v1228
    %v1230 = vmul.f32 %v1109, %v1229
    %vm1231 = vcmp.eq.f32.partialorder %v1109, inf
    %v1232 = vsel %vm1231, %v1109, %v1230
    %vm1233 = vcmp.eq.f32.partialorder %v1109, 0.0
    %v1234 = vand.u32 %v1109, 2147483648
    %v1235 = vsel %vm1233, %v1234, %v1232
    %v1236 = vrsqrt.pop %v1110
    %v1237 = vmul.f32 %v1236, %v1110
    %v1238 = vmul.f32 %v1237, %v1236
    %v1239 = vmul.f32 0.5, %v1238
    %v1240 = vsub.f32 1.5, %v1239
    %v1241 = vmul.f32 %v1236, %v1240
    %v1242 = vmul.f32 %v1110, %v1241
    %vm1243 = vcmp.eq.f32.partialorder %v1110, inf
    %v1244 = vsel %vm1243, %v1110, %v1242
    %vm1245 = vcmp.eq.f32.partialorder %v1110, 0.0
    %v1246 = vand.u32 %v1110, 2147483648
    %v1247 = vsel %vm1245, %v1246, %v1244
    %v1248 = vrsqrt.pop %v1111
    %v1249 = vmul.f32 %v1248, %v1111
    %v1250 = vmul.f32 %v1249, %v1248
    %v1251 = vmul.f32 0.5, %v1250
    %v1252 = vsub.f32 1.5, %v1251
    %v1253 = vmul.f32 %v1248, %v1252
    %v1254 = vmul.f32 %v1111, %v1253
    %vm1255 = vcmp.eq.f32.partialorder %v1111, inf
    %v1256 = vsel %vm1255, %v1111, %v1254
    %vm1257 = vcmp.eq.f32.partialorder %v1111, 0.0
    %v1258 = vand.u32 %v1111, 2147483648
    %v1259 = vsel %vm1257, %v1258, %v1256
    %v1260 = vrsqrt.pop %v1112
    %v1261 = vmul.f32 %v1260, %v1112
    %v1262 = vmul.f32 %v1261, %v1260
    %v1263 = vmul.f32 0.5, %v1262
    %v1264 = vsub.f32 1.5, %v1263
    %v1265 = vmul.f32 %v1260, %v1264
    %v1266 = vmul.f32 %v1112, %v1265
    %vm1267 = vcmp.eq.f32.partialorder %v1112, inf
    %v1268 = vsel %vm1267, %v1112, %v1266
    %vm1269 = vcmp.eq.f32.partialorder %v1112, 0.0
    %v1270 = vand.u32 %v1112, 2147483648
    %v1271 = vsel %vm1269, %v1270, %v1268
    %v1272 = vrsqrt.pop %v1113
    %v1273 = vmul.f32 %v1272, %v1113
    %v1274 = vmul.f32 %v1273, %v1272
    %v1275 = vmul.f32 0.5, %v1274
    %v1276 = vsub.f32 1.5, %v1275
    %v1277 = vmul.f32 %v1272, %v1276
    %v1278 = vmul.f32 %v1113, %v1277
    %vm1279 = vcmp.eq.f32.partialorder %v1113, inf
    %v1280 = vsel %vm1279, %v1113, %v1278
    %vm1281 = vcmp.eq.f32.partialorder %v1113, 0.0
    %v1282 = vand.u32 %v1113, 2147483648
    %v1283 = vsel %vm1281, %v1282, %v1280
    %v1284 = vrsqrt.pop %v1114
    %v1285 = vmul.f32 %v1284, %v1114
    %v1286 = vmul.f32 %v1285, %v1284
    %v1287 = vmul.f32 0.5, %v1286
    %v1288 = vsub.f32 1.5, %v1287
    %v1289 = vmul.f32 %v1284, %v1288
    %v1290 = vmul.f32 %v1114, %v1289
    %vm1291 = vcmp.eq.f32.partialorder %v1114, inf
    %v1292 = vsel %vm1291, %v1114, %v1290
    %vm1293 = vcmp.eq.f32.partialorder %v1114, 0.0
    %v1294 = vand.u32 %v1114, 2147483648
    %v1295 = vsel %vm1293, %v1294, %v1292
    %v1296 = vrsqrt.pop %v1115
    %v1297 = vmul.f32 %v1296, %v1115
    %v1298 = vmul.f32 %v1297, %v1296
    %v1299 = vmul.f32 0.5, %v1298
    %v1300 = vsub.f32 1.5, %v1299
    %v1301 = vmul.f32 %v1296, %v1300
    %v1302 = vmul.f32 %v1115, %v1301
    %vm1303 = vcmp.eq.f32.partialorder %v1115, inf
    %v1304 = vsel %vm1303, %v1115, %v1302
    %vm1305 = vcmp.eq.f32.partialorder %v1115, 0.0
    %v1306 = vand.u32 %v1115, 2147483648
    %v1307 = vsel %vm1305, %v1306, %v1304
    %v1308 = vld [vmem:[#allocation6] sm:$0xff]
    %v1309 = vld [vmem:[#allocation6 + $0x8] sm:$0xff]
    %v1310 = vld [vmem:[#allocation6 + $0x10] sm:$0xff]
    %v1311 = vld [vmem:[#allocation6 + $0x18] sm:$0xff]
    %v1312 = vld [vmem:[#allocation6 + $0x20] sm:$0xff]
    %v1313 = vld [vmem:[#allocation6 + $0x28] sm:$0xff]
    %v1314 = vld [vmem:[#allocation6 + $0x30] sm:$0xff]
    %v1315 = vld [vmem:[#allocation6 + $0x38] sm:$0xff]
    %v1316 = vld [vmem:[#allocation6 + $0x40] sm:$0xff]
    %v1317 = vld [vmem:[#allocation6 + $0x48] sm:$0xff]
    %v1318 = vld [vmem:[#allocation6 + $0x50] sm:$0xff]
    %v1319 = vld [vmem:[#allocation6 + $0x58] sm:$0xff]
    %v1320 = vld [vmem:[#allocation6 + $0x60] sm:$0xff]
    %v1321 = vld [vmem:[#allocation6 + $0x68] sm:$0xff]
    %v1322 = vld [vmem:[#allocation6 + $0x70] sm:$0xff]
    %v1323 = vld [vmem:[#allocation6 + $0x78] sm:$0xff]
    %v1324 = vpack.c.bf16 %v1309, %v1308
    %v1325 = vpack.c.bf16 %v1311, %v1310
    %v1326 = vpack.c.bf16 %v1313, %v1312
    %v1327 = vpack.c.bf16 %v1315, %v1314
    %v1328 = vpack.c.bf16 %v1317, %v1316
    %v1329 = vpack.c.bf16 %v1319, %v1318
    %v1330 = vpack.c.bf16 %v1321, %v1320
    %v1331 = vpack.c.bf16 %v1323, %v1322
    %v1333 = vsel %vm151, %v1324, 0
    %v1336 = vsel %vm151, %v1325, 0
    %v1339 = vsel %vm151, %v1326, 0
    %v1342 = vsel %vm151, %v1327, 0
    %v1345 = vsel %vm151, %v1328, 0
    %v1348 = vsel %vm151, %v1329, 0
    %v1351 = vsel %vm151, %v1330, 0
    %v1354 = vsel %vm151, %v1331, 0
    %1356 = vmatpush.bf16.msra.mxu0 0
    %1357 = vmatpush.bf16.msra.mxu0 0
    %1358 = vmatpush.bf16.msra.mxu0 0
    %1359 = vmatpush.bf16.msra.mxu0 0
    %1360 = vmatpush.bf16.msra.mxu0 0
    %1361 = vmatpush.bf16.msra.mxu0 0
    %1362 = vmatpush.bf16.msra.mxu0 0
    %1363 = vmatpush.bf16.msra.mxu0 %v149
    %1364 = vmatmul.bf16.gmra.mxu0 %v1333
    %v1365 = vpop.f32.mrf.mxu0
    %v1366 = vadd.f32 0.0, %v1365
    %v1367 = vpop.f32.mrf.mxu0
    %v1368 = vadd.f32 0.0, %v1367
    %1369 = vmatmul.bf16.gmra.mxu0 %v1336
    %v1370 = vpop.f32.mrf.mxu0
    %v1371 = vadd.f32 0.0, %v1370
    %v1372 = vpop.f32.mrf.mxu0
    %v1373 = vadd.f32 0.0, %v1372
    %1374 = vmatmul.bf16.gmra.mxu0 %v1339
    %v1375 = vpop.f32.mrf.mxu0
    %v1376 = vadd.f32 0.0, %v1375
    %v1377 = vpop.f32.mrf.mxu0
    %v1378 = vadd.f32 0.0, %v1377
    %1379 = vmatmul.bf16.gmra.mxu0 %v1342
    %v1380 = vpop.f32.mrf.mxu0
    %v1381 = vadd.f32 0.0, %v1380
    %v1382 = vpop.f32.mrf.mxu0
    %v1383 = vadd.f32 0.0, %v1382
    %1384 = vmatmul.bf16.gmra.mxu0 %v1345
    %v1385 = vpop.f32.mrf.mxu0
    %v1386 = vadd.f32 0.0, %v1385
    %v1387 = vpop.f32.mrf.mxu0
    %v1388 = vadd.f32 0.0, %v1387
    %1389 = vmatmul.bf16.gmra.mxu0 %v1348
    %v1390 = vpop.f32.mrf.mxu0
    %v1391 = vadd.f32 0.0, %v1390
    %v1392 = vpop.f32.mrf.mxu0
    %v1393 = vadd.f32 0.0, %v1392
    %1394 = vmatmul.bf16.gmra.mxu0 %v1351
    %v1395 = vpop.f32.mrf.mxu0
    %v1396 = vadd.f32 0.0, %v1395
    %v1397 = vpop.f32.mrf.mxu0
    %v1398 = vadd.f32 0.0, %v1397
    %1399 = vmatmul.bf16.gmra.mxu0 %v1354
    %v1400 = vpop.f32.mrf.mxu0
    %v1401 = vadd.f32 0.0, %v1400
    %v1402 = vpop.f32.mrf.mxu0
    %v1403 = vadd.f32 0.0, %v1402
    %1404 = vdwg.mxu0
    %1405 = vmatpush.bf16.msra.mxu0 0
    %1406 = vmatpush.bf16.msra.mxu0 0
    %1407 = vmatpush.bf16.msra.mxu0 0
    %1408 = vmatpush.bf16.msra.mxu0 0
    %1409 = vmatpush.bf16.msra.mxu0 0
    %1410 = vmatpush.bf16.msra.mxu0 0
    %1411 = vmatpush.bf16.msra.mxu0 0
    %1412 = vmatpush.bf16.msra.mxu0 %v229
    %1413 = vmatmul.bf16.gmra.mxu0 %v1333
    %v1414 = vpop.f32.mrf.mxu0
    %v1415 = vadd.f32 0.0, %v1414
    %v1416 = vpop.f32.mrf.mxu0
    %v1417 = vadd.f32 0.0, %v1416
    %1418 = vmatmul.bf16.gmra.mxu0 %v1336
    %v1419 = vpop.f32.mrf.mxu0
    %v1420 = vadd.f32 0.0, %v1419
    %v1421 = vpop.f32.mrf.mxu0
    %v1422 = vadd.f32 0.0, %v1421
    %1423 = vmatmul.bf16.gmra.mxu0 %v1339
    %v1424 = vpop.f32.mrf.mxu0
    %v1425 = vadd.f32 0.0, %v1424
    %v1426 = vpop.f32.mrf.mxu0
    %v1427 = vadd.f32 0.0, %v1426
    %1428 = vmatmul.bf16.gmra.mxu0 %v1342
    %v1429 = vpop.f32.mrf.mxu0
    %v1430 = vadd.f32 0.0, %v1429
    %v1431 = vpop.f32.mrf.mxu0
    %v1432 = vadd.f32 0.0, %v1431
    %1433 = vmatmul.bf16.gmra.mxu0 %v1345
    %v1434 = vpop.f32.mrf.mxu0
    %v1435 = vadd.f32 0.0, %v1434
    %v1436 = vpop.f32.mrf.mxu0
    %v1437 = vadd.f32 0.0, %v1436
    %1438 = vmatmul.bf16.gmra.mxu0 %v1348
    %v1439 = vpop.f32.mrf.mxu0
    %v1440 = vadd.f32 0.0, %v1439
    %v1441 = vpop.f32.mrf.mxu0
    %v1442 = vadd.f32 0.0, %v1441
    %1443 = vmatmul.bf16.gmra.mxu0 %v1351
    %v1444 = vpop.f32.mrf.mxu0
    %v1445 = vadd.f32 0.0, %v1444
    %v1446 = vpop.f32.mrf.mxu0
    %v1447 = vadd.f32 0.0, %v1446
    %1448 = vmatmul.bf16.gmra.mxu0 %v1354
    %v1449 = vpop.f32.mrf.mxu0
    %v1450 = vadd.f32 0.0, %v1449
    %v1451 = vpop.f32.mrf.mxu0
    %v1452 = vadd.f32 0.0, %v1451
    %1453 = vdwg.mxu0
    %1454 = vxpose.xlu0.b32.start [1/16] %v1366, 128
    %1455 = vxpose.xlu0.b32.cont [2/16] %v1368, 128
    %1456 = vxpose.xlu0.b32.cont [3/16] 0.0, 128
    %1457 = vxpose.xlu0.b32.cont [4/16] 0.0, 128
    %1458 = vxpose.xlu0.b32.cont [5/16] 0.0, 128
    %1459 = vxpose.xlu0.b32.cont [6/16] 0.0, 128
    %1460 = vxpose.xlu0.b32.cont [7/16] 0.0, 128
    %1461 = vxpose.xlu0.b32.cont [8/16] 0.0, 128
    %1462 = vxpose.xlu0.b32.cont [9/16] 0.0, 128
    %1463 = vxpose.xlu0.b32.cont [10/16] 0.0, 128
    %1464 = vxpose.xlu0.b32.cont [11/16] 0.0, 128
    %1465 = vxpose.xlu0.b32.cont [12/16] 0.0, 128
    %1466 = vxpose.xlu0.b32.cont [13/16] 0.0, 128
    %1467 = vxpose.xlu0.b32.cont [14/16] 0.0, 128
    %1468 = vxpose.xlu0.b32.cont [15/16] 0.0, 128
    %1469 = vxpose.xlu0.b32.end [16/16] 0.0, 128
    %v1470 = vpop.trf.xlu0
    %v1471 = vpop.trf.xlu0
    %v1472 = vpop.trf.xlu0
    %v1473 = vpop.trf.xlu0
    %v1474 = vpop.trf.xlu0
    %v1475 = vpop.trf.xlu0
    %v1476 = vpop.trf.xlu0
    %v1477 = vpop.trf.xlu0
    %v1478 = vpop.trf.xlu0
    %v1479 = vpop.trf.xlu0
    %v1480 = vpop.trf.xlu0
    %v1481 = vpop.trf.xlu0
    %v1482 = vpop.trf.xlu0
    %v1483 = vpop.trf.xlu0
    %v1484 = vpop.trf.xlu0
    %v1485 = vpop.trf.xlu0
    %1486 = vxpose.xlu0.b32.start [1/16] %v1371, 128
    %1487 = vxpose.xlu0.b32.cont [2/16] %v1373, 128
    %1488 = vxpose.xlu0.b32.cont [3/16] 0.0, 128
    %1489 = vxpose.xlu0.b32.cont [4/16] 0.0, 128
    %1490 = vxpose.xlu0.b32.cont [5/16] 0.0, 128
    %1491 = vxpose.xlu0.b32.cont [6/16] 0.0, 128
    %1492 = vxpose.xlu0.b32.cont [7/16] 0.0, 128
    %1493 = vxpose.xlu0.b32.cont [8/16] 0.0, 128
    %1494 = vxpose.xlu0.b32.cont [9/16] 0.0, 128
    %1495 = vxpose.xlu0.b32.cont [10/16] 0.0, 128
    %1496 = vxpose.xlu0.b32.cont [11/16] 0.0, 128
    %1497 = vxpose.xlu0.b32.cont [12/16] 0.0, 128
    %1498 = vxpose.xlu0.b32.cont [13/16] 0.0, 128
    %1499 = vxpose.xlu0.b32.cont [14/16] 0.0, 128
    %1500 = vxpose.xlu0.b32.cont [15/16] 0.0, 128
    %1501 = vxpose.xlu0.b32.end [16/16] 0.0, 128
    %v1502 = vpop.trf.xlu0
    %v1503 = vpop.trf.xlu0
    %v1504 = vpop.trf.xlu0
    %v1505 = vpop.trf.xlu0
    %v1506 = vpop.trf.xlu0
    %v1507 = vpop.trf.xlu0
    %v1508 = vpop.trf.xlu0
    %v1509 = vpop.trf.xlu0
    %v1510 = vpop.trf.xlu0
    %v1511 = vpop.trf.xlu0
    %v1512 = vpop.trf.xlu0
    %v1513 = vpop.trf.xlu0
    %v1514 = vpop.trf.xlu0
    %v1515 = vpop.trf.xlu0
    %v1516 = vpop.trf.xlu0
    %v1517 = vpop.trf.xlu0
    %1518 = vxpose.xlu0.b32.start [1/16] %v1376, 128
    %1519 = vxpose.xlu0.b32.cont [2/16] %v1378, 128
    %1520 = vxpose.xlu0.b32.cont [3/16] 0.0, 128
    %1521 = vxpose.xlu0.b32.cont [4/16] 0.0, 128
    %1522 = vxpose.xlu0.b32.cont [5/16] 0.0, 128
    %1523 = vxpose.xlu0.b32.cont [6/16] 0.0, 128
    %1524 = vxpose.xlu0.b32.cont [7/16] 0.0, 128
    %1525 = vxpose.xlu0.b32.cont [8/16] 0.0, 128
    %1526 = vxpose.xlu0.b32.cont [9/16] 0.0, 128
    %1527 = vxpose.xlu0.b32.cont [10/16] 0.0, 128
    %1528 = vxpose.xlu0.b32.cont [11/16] 0.0, 128
    %1529 = vxpose.xlu0.b32.cont [12/16] 0.0, 128
    %1530 = vxpose.xlu0.b32.cont [13/16] 0.0, 128
    %1531 = vxpose.xlu0.b32.cont [14/16] 0.0, 128
    %1532 = vxpose.xlu0.b32.cont [15/16] 0.0, 128
    %1533 = vxpose.xlu0.b32.end [16/16] 0.0, 128
    %v1534 = vpop.trf.xlu0
    %v1535 = vpop.trf.xlu0
    %v1536 = vpop.trf.xlu0
    %v1537 = vpop.trf.xlu0
    %v1538 = vpop.trf.xlu0
    %v1539 = vpop.trf.xlu0
    %v1540 = vpop.trf.xlu0
    %v1541 = vpop.trf.xlu0
    %v1542 = vpop.trf.xlu0
    %v1543 = vpop.trf.xlu0
    %v1544 = vpop.trf.xlu0
    %v1545 = vpop.trf.xlu0
    %v1546 = vpop.trf.xlu0
    %v1547 = vpop.trf.xlu0
    %v1548 = vpop.trf.xlu0
    %v1549 = vpop.trf.xlu0
    %1550 = vxpose.xlu0.b32.start [1/16] %v1381, 128
    %1551 = vxpose.xlu0.b32.cont [2/16] %v1383, 128
    %1552 = vxpose.xlu0.b32.cont [3/16] 0.0, 128
    %1553 = vxpose.xlu0.b32.cont [4/16] 0.0, 128
    %1554 = vxpose.xlu0.b32.cont [5/16] 0.0, 128
    %1555 = vxpose.xlu0.b32.cont [6/16] 0.0, 128
    %1556 = vxpose.xlu0.b32.cont [7/16] 0.0, 128
    %1557 = vxpose.xlu0.b32.cont [8/16] 0.0, 128
    %1558 = vxpose.xlu0.b32.cont [9/16] 0.0, 128
    %1559 = vxpose.xlu0.b32.cont [10/16] 0.0, 128
    %1560 = vxpose.xlu0.b32.cont [11/16] 0.0, 128
    %1561 = vxpose.xlu0.b32.cont [12/16] 0.0, 128
    %1562 = vxpose.xlu0.b32.cont [13/16] 0.0, 128
    %1563 = vxpose.xlu0.b32.cont [14/16] 0.0, 128
    %1564 = vxpose.xlu0.b32.cont [15/16] 0.0, 128
    %1565 = vxpose.xlu0.b32.end [16/16] 0.0, 128
    %v1566 = vpop.trf.xlu0
    %v1567 = vpop.trf.xlu0
    %v1568 = vpop.trf.xlu0
    %v1569 = vpop.trf.xlu0
    %v1570 = vpop.trf.xlu0
    %v1571 = vpop.trf.xlu0
    %v1572 = vpop.trf.xlu0
    %v1573 = vpop.trf.xlu0
    %v1574 = vpop.trf.xlu0
    %v1575 = vpop.trf.xlu0
    %v1576 = vpop.trf.xlu0
    %v1577 = vpop.trf.xlu0
    %v1578 = vpop.trf.xlu0
    %v1579 = vpop.trf.xlu0
    %v1580 = vpop.trf.xlu0
    %v1581 = vpop.trf.xlu0
    %1582 = vxpose.xlu0.b32.start [1/16] %v1386, 128
    %1583 = vxpose.xlu0.b32.cont [2/16] %v1388, 128
    %1584 = vxpose.xlu0.b32.cont [3/16] 0.0, 128
    %1585 = vxpose.xlu0.b32.cont [4/16] 0.0, 128
    %1586 = vxpose.xlu0.b32.cont [5/16] 0.0, 128
    %1587 = vxpose.xlu0.b32.cont [6/16] 0.0, 128
    %1588 = vxpose.xlu0.b32.cont [7/16] 0.0, 128
    %1589 = vxpose.xlu0.b32.cont [8/16] 0.0, 128
    %1590 = vxpose.xlu0.b32.cont [9/16] 0.0, 128
    %1591 = vxpose.xlu0.b32.cont [10/16] 0.0, 128
    %1592 = vxpose.xlu0.b32.cont [11/16] 0.0, 128
    %1593 = vxpose.xlu0.b32.cont [12/16] 0.0, 128
    %1594 = vxpose.xlu0.b32.cont [13/16] 0.0, 128
    %1595 = vxpose.xlu0.b32.cont [14/16] 0.0, 128
    %1596 = vxpose.xlu0.b32.cont [15/16] 0.0, 128
    %1597 = vxpose.xlu0.b32.end [16/16] 0.0, 128
    %v1598 = vpop.trf.xlu0
    %v1599 = vpop.trf.xlu0
    %v1600 = vpop.trf.xlu0
    %v1601 = vpop.trf.xlu0
    %v1602 = vpop.trf.xlu0
    %v1603 = vpop.trf.xlu0
    %v1604 = vpop.trf.xlu0
    %v1605 = vpop.trf.xlu0
    %v1606 = vpop.trf.xlu0
    %v1607 = vpop.trf.xlu0
    %v1608 = vpop.trf.xlu0
    %v1609 = vpop.trf.xlu0
    %v1610 = vpop.trf.xlu0
    %v1611 = vpop.trf.xlu0
    %v1612 = vpop.trf.xlu0
    %v1613 = vpop.trf.xlu0
    %1614 = vxpose.xlu0.b32.start [1/16] %v1391, 128
    %1615 = vxpose.xlu0.b32.cont [2/16] %v1393, 128
    %1616 = vxpose.xlu0.b32.cont [3/16] 0.0, 128
    %1617 = vxpose.xlu0.b32.cont [4/16] 0.0, 128
    %1618 = vxpose.xlu0.b32.cont [5/16] 0.0, 128
    %1619 = vxpose.xlu0.b32.cont [6/16] 0.0, 128
    %1620 = vxpose.xlu0.b32.cont [7/16] 0.0, 128
    %1621 = vxpose.xlu0.b32.cont [8/16] 0.0, 128
    %1622 = vxpose.xlu0.b32.cont [9/16] 0.0, 128
    %1623 = vxpose.xlu0.b32.cont [10/16] 0.0, 128
    %1624 = vxpose.xlu0.b32.cont [11/16] 0.0, 128
    %1625 = vxpose.xlu0.b32.cont [12/16] 0.0, 128
    %1626 = vxpose.xlu0.b32.cont [13/16] 0.0, 128
    %1627 = vxpose.xlu0.b32.cont [14/16] 0.0, 128
    %1628 = vxpose.xlu0.b32.cont [15/16] 0.0, 128
    %1629 = vxpose.xlu0.b32.end [16/16] 0.0, 128
    %v1630 = vpop.trf.xlu0
    %v1631 = vpop.trf.xlu0
    %v1632 = vpop.trf.xlu0
    %v1633 = vpop.trf.xlu0
    %v1634 = vpop.trf.xlu0
    %v1635 = vpop.trf.xlu0
    %v1636 = vpop.trf.xlu0
    %v1637 = vpop.trf.xlu0
    %v1638 = vpop.trf.xlu0
    %v1639 = vpop.trf.xlu0
    %v1640 = vpop.trf.xlu0
    %v1641 = vpop.trf.xlu0
    %v1642 = vpop.trf.xlu0
    %v1643 = vpop.trf.xlu0
    %v1644 = vpop.trf.xlu0
    %v1645 = vpop.trf.xlu0
    %1646 = vxpose.xlu0.b32.start [1/16] %v1396, 128
    %1647 = vxpose.xlu0.b32.cont [2/16] %v1398, 128
    %1648 = vxpose.xlu0.b32.cont [3/16] 0.0, 128
    %1649 = vxpose.xlu0.b32.cont [4/16] 0.0, 128
    %1650 = vxpose.xlu0.b32.cont [5/16] 0.0, 128
    %1651 = vxpose.xlu0.b32.cont [6/16] 0.0, 128
    %1652 = vxpose.xlu0.b32.cont [7/16] 0.0, 128
    %1653 = vxpose.xlu0.b32.cont [8/16] 0.0, 128
    %1654 = vxpose.xlu0.b32.cont [9/16] 0.0, 128
    %1655 = vxpose.xlu0.b32.cont [10/16] 0.0, 128
    %1656 = vxpose.xlu0.b32.cont [11/16] 0.0, 128
    %1657 = vxpose.xlu0.b32.cont [12/16] 0.0, 128
    %1658 = vxpose.xlu0.b32.cont [13/16] 0.0, 128
    %1659 = vxpose.xlu0.b32.cont [14/16] 0.0, 128
    %1660 = vxpose.xlu0.b32.cont [15/16] 0.0, 128
    %1661 = vxpose.xlu0.b32.end [16/16] 0.0, 128
    %v1662 = vpop.trf.xlu0
    %v1663 = vpop.trf.xlu0
    %v1664 = vpop.trf.xlu0
    %v1665 = vpop.trf.xlu0
    %v1666 = vpop.trf.xlu0
    %v1667 = vpop.trf.xlu0
    %v1668 = vpop.trf.xlu0
    %v1669 = vpop.trf.xlu0
    %v1670 = vpop.trf.xlu0
    %v1671 = vpop.trf.xlu0
    %v1672 = vpop.trf.xlu0
    %v1673 = vpop.trf.xlu0
    %v1674 = vpop.trf.xlu0
    %v1675 = vpop.trf.xlu0
    %v1676 = vpop.trf.xlu0
    %v1677 = vpop.trf.xlu0
    %1678 = vxpose.xlu0.b32.start [1/16] %v1401, 128
    %1679 = vxpose.xlu0.b32.cont [2/16] %v1403, 128
    %1680 = vxpose.xlu0.b32.cont [3/16] 0.0, 128
    %1681 = vxpose.xlu0.b32.cont [4/16] 0.0, 128
    %1682 = vxpose.xlu0.b32.cont [5/16] 0.0, 128
    %1683 = vxpose.xlu0.b32.cont [6/16] 0.0, 128
    %1684 = vxpose.xlu0.b32.cont [7/16] 0.0, 128
    %1685 = vxpose.xlu0.b32.cont [8/16] 0.0, 128
    %1686 = vxpose.xlu0.b32.cont [9/16] 0.0, 128
    %1687 = vxpose.xlu0.b32.cont [10/16] 0.0, 128
    %1688 = vxpose.xlu0.b32.cont [11/16] 0.0, 128
    %1689 = vxpose.xlu0.b32.cont [12/16] 0.0, 128
    %1690 = vxpose.xlu0.b32.cont [13/16] 0.0, 128
    %1691 = vxpose.xlu0.b32.cont [14/16] 0.0, 128
    %1692 = vxpose.xlu0.b32.cont [15/16] 0.0, 128
    %1693 = vxpose.xlu0.b32.end [16/16] 0.0, 128
    %v1694 = vpop.trf.xlu0
    %v1695 = vpop.trf.xlu0
    %v1696 = vpop.trf.xlu0
    %v1697 = vpop.trf.xlu0
    %v1698 = vpop.trf.xlu0
    %v1699 = vpop.trf.xlu0
    %v1700 = vpop.trf.xlu0
    %v1701 = vpop.trf.xlu0
    %v1702 = vpop.trf.xlu0
    %v1703 = vpop.trf.xlu0
    %v1704 = vpop.trf.xlu0
    %v1705 = vpop.trf.xlu0
    %v1706 = vpop.trf.xlu0
    %v1707 = vpop.trf.xlu0
    %v1708 = vpop.trf.xlu0
    %v1709 = vpop.trf.xlu0
    %v1710 = vpack.c.bf16 %v1471, %v1470
    %v1711 = vpack.c.bf16 %v1503, %v1502
    %v1712 = vpack.c.bf16 %v1535, %v1534
    %v1713 = vpack.c.bf16 %v1567, %v1566
    %v1714 = vpack.c.bf16 %v1599, %v1598
    %v1715 = vpack.c.bf16 %v1631, %v1630
    %v1716 = vpack.c.bf16 %v1663, %v1662
    %v1717 = vpack.c.bf16 %v1695, %v1694
    %1718 = vxpose.xlu0.b32.start [1/16] %v1415, 128
    %1719 = vxpose.xlu0.b32.cont [2/16] %v1417, 128
    %1720 = vxpose.xlu0.b32.cont [3/16] 0.0, 128
    %1721 = vxpose.xlu0.b32.cont [4/16] 0.0, 128
    %1722 = vxpose.xlu0.b32.cont [5/16] 0.0, 128
    %1723 = vxpose.xlu0.b32.cont [6/16] 0.0, 128
    %1724 = vxpose.xlu0.b32.cont [7/16] 0.0, 128
    %1725 = vxpose.xlu0.b32.cont [8/16] 0.0, 128
    %1726 = vxpose.xlu0.b32.cont [9/16] 0.0, 128
    %1727 = vxpose.xlu0.b32.cont [10/16] 0.0, 128
    %1728 = vxpose.xlu0.b32.cont [11/16] 0.0, 128
    %1729 = vxpose.xlu0.b32.cont [12/16] 0.0, 128
    %1730 = vxpose.xlu0.b32.cont [13/16] 0.0, 128
    %1731 = vxpose.xlu0.b32.cont [14/16] 0.0, 128
    %1732 = vxpose.xlu0.b32.cont [15/16] 0.0, 128
    %1733 = vxpose.xlu0.b32.end [16/16] 0.0, 128
    %v1734 = vpop.trf.xlu0
    %v1735 = vpop.trf.xlu0
    %v1736 = vpop.trf.xlu0
    %v1737 = vpop.trf.xlu0
    %v1738 = vpop.trf.xlu0
    %v1739 = vpop.trf.xlu0
    %v1740 = vpop.trf.xlu0
    %v1741 = vpop.trf.xlu0
    %v1742 = vpop.trf.xlu0
    %v1743 = vpop.trf.xlu0
    %v1744 = vpop.trf.xlu0
    %v1745 = vpop.trf.xlu0
    %v1746 = vpop.trf.xlu0
    %v1747 = vpop.trf.xlu0
    %v1748 = vpop.trf.xlu0
    %v1749 = vpop.trf.xlu0
    %1750 = vxpose.xlu0.b32.start [1/16] %v1420, 128
    %1751 = vxpose.xlu0.b32.cont [2/16] %v1422, 128
    %1752 = vxpose.xlu0.b32.cont [3/16] 0.0, 128
    %1753 = vxpose.xlu0.b32.cont [4/16] 0.0, 128
    %1754 = vxpose.xlu0.b32.cont [5/16] 0.0, 128
    %1755 = vxpose.xlu0.b32.cont [6/16] 0.0, 128
    %1756 = vxpose.xlu0.b32.cont [7/16] 0.0, 128
    %1757 = vxpose.xlu0.b32.cont [8/16] 0.0, 128
    %1758 = vxpose.xlu0.b32.cont [9/16] 0.0, 128
    %1759 = vxpose.xlu0.b32.cont [10/16] 0.0, 128
    %1760 = vxpose.xlu0.b32.cont [11/16] 0.0, 128
    %1761 = vxpose.xlu0.b32.cont [12/16] 0.0, 128
    %1762 = vxpose.xlu0.b32.cont [13/16] 0.0, 128
    %1763 = vxpose.xlu0.b32.cont [14/16] 0.0, 128
    %1764 = vxpose.xlu0.b32.cont [15/16] 0.0, 128
    %1765 = vxpose.xlu0.b32.end [16/16] 0.0, 128
    %v1766 = vpop.trf.xlu0
    %v1767 = vpop.trf.xlu0
    %v1768 = vpop.trf.xlu0
    %v1769 = vpop.trf.xlu0
    %v1770 = vpop.trf.xlu0
    %v1771 = vpop.trf.xlu0
    %v1772 = vpop.trf.xlu0
    %v1773 = vpop.trf.xlu0
    %v1774 = vpop.trf.xlu0
    %v1775 = vpop.trf.xlu0
    %v1776 = vpop.trf.xlu0
    %v1777 = vpop.trf.xlu0
    %v1778 = vpop.trf.xlu0
    %v1779 = vpop.trf.xlu0
    %v1780 = vpop.trf.xlu0
    %v1781 = vpop.trf.xlu0
    %1782 = vxpose.xlu0.b32.start [1/16] %v1425, 128
    %1783 = vxpose.xlu0.b32.cont [2/16] %v1427, 128
    %1784 = vxpose.xlu0.b32.cont [3/16] 0.0, 128
    %1785 = vxpose.xlu0.b32.cont [4/16] 0.0, 128
    %1786 = vxpose.xlu0.b32.cont [5/16] 0.0, 128
    %1787 = vxpose.xlu0.b32.cont [6/16] 0.0, 128
    %1788 = vxpose.xlu0.b32.cont [7/16] 0.0, 128
    %1789 = vxpose.xlu0.b32.cont [8/16] 0.0, 128
    %1790 = vxpose.xlu0.b32.cont [9/16] 0.0, 128
    %1791 = vxpose.xlu0.b32.cont [10/16] 0.0, 128
    %1792 = vxpose.xlu0.b32.cont [11/16] 0.0, 128
    %1793 = vxpose.xlu0.b32.cont [12/16] 0.0, 128
    %1794 = vxpose.xlu0.b32.cont [13/16] 0.0, 128
    %1795 = vxpose.xlu0.b32.cont [14/16] 0.0, 128
    %1796 = vxpose.xlu0.b32.cont [15/16] 0.0, 128
    %1797 = vxpose.xlu0.b32.end [16/16] 0.0, 128
    %v1798 = vpop.trf.xlu0
    %v1799 = vpop.trf.xlu0
    %v1800 = vpop.trf.xlu0
    %v1801 = vpop.trf.xlu0
    %v1802 = vpop.trf.xlu0
    %v1803 = vpop.trf.xlu0
    %v1804 = vpop.trf.xlu0
    %v1805 = vpop.trf.xlu0
    %v1806 = vpop.trf.xlu0
    %v1807 = vpop.trf.xlu0
    %v1808 = vpop.trf.xlu0
    %v1809 = vpop.trf.xlu0
    %v1810 = vpop.trf.xlu0
    %v1811 = vpop.trf.xlu0
    %v1812 = vpop.trf.xlu0
    %v1813 = vpop.trf.xlu0
    %1814 = vxpose.xlu0.b32.start [1/16] %v1430, 128
    %1815 = vxpose.xlu0.b32.cont [2/16] %v1432, 128
    %1816 = vxpose.xlu0.b32.cont [3/16] 0.0, 128
    %1817 = vxpose.xlu0.b32.cont [4/16] 0.0, 128
    %1818 = vxpose.xlu0.b32.cont [5/16] 0.0, 128
    %1819 = vxpose.xlu0.b32.cont [6/16] 0.0, 128
    %1820 = vxpose.xlu0.b32.cont [7/16] 0.0, 128
    %1821 = vxpose.xlu0.b32.cont [8/16] 0.0, 128
    %1822 = vxpose.xlu0.b32.cont [9/16] 0.0, 128
    %1823 = vxpose.xlu0.b32.cont [10/16] 0.0, 128
    %1824 = vxpose.xlu0.b32.cont [11/16] 0.0, 128
    %1825 = vxpose.xlu0.b32.cont [12/16] 0.0, 128
    %1826 = vxpose.xlu0.b32.cont [13/16] 0.0, 128
    %1827 = vxpose.xlu0.b32.cont [14/16] 0.0, 128
    %1828 = vxpose.xlu0.b32.cont [15/16] 0.0, 128
    %1829 = vxpose.xlu0.b32.end [16/16] 0.0, 128
    %v1830 = vpop.trf.xlu0
    %v1831 = vpop.trf.xlu0
    %v1832 = vpop.trf.xlu0
    %v1833 = vpop.trf.xlu0
    %v1834 = vpop.trf.xlu0
    %v1835 = vpop.trf.xlu0
    %v1836 = vpop.trf.xlu0
    %v1837 = vpop.trf.xlu0
    %v1838 = vpop.trf.xlu0
    %v1839 = vpop.trf.xlu0
    %v1840 = vpop.trf.xlu0
    %v1841 = vpop.trf.xlu0
    %v1842 = vpop.trf.xlu0
    %v1843 = vpop.trf.xlu0
    %v1844 = vpop.trf.xlu0
    %v1845 = vpop.trf.xlu0
    %1846 = vxpose.xlu0.b32.start [1/16] %v1435, 128
    %1847 = vxpose.xlu0.b32.cont [2/16] %v1437, 128
    %1848 = vxpose.xlu0.b32.cont [3/16] 0.0, 128
    %1849 = vxpose.xlu0.b32.cont [4/16] 0.0, 128
    %1850 = vxpose.xlu0.b32.cont [5/16] 0.0, 128
    %1851 = vxpose.xlu0.b32.cont [6/16] 0.0, 128
    %1852 = vxpose.xlu0.b32.cont [7/16] 0.0, 128
    %1853 = vxpose.xlu0.b32.cont [8/16] 0.0, 128
    %1854 = vxpose.xlu0.b32.cont [9/16] 0.0, 128
    %1855 = vxpose.xlu0.b32.cont [10/16] 0.0, 128
    %1856 = vxpose.xlu0.b32.cont [11/16] 0.0, 128
    %1857 = vxpose.xlu0.b32.cont [12/16] 0.0, 128
    %1858 = vxpose.xlu0.b32.cont [13/16] 0.0, 128
    %1859 = vxpose.xlu0.b32.cont [14/16] 0.0, 128
    %1860 = vxpose.xlu0.b32.cont [15/16] 0.0, 128
    %1861 = vxpose.xlu0.b32.end [16/16] 0.0, 128
    %v1862 = vpop.trf.xlu0
    %v1863 = vpop.trf.xlu0
    %v1864 = vpop.trf.xlu0
    %v1865 = vpop.trf.xlu0
    %v1866 = vpop.trf.xlu0
    %v1867 = vpop.trf.xlu0
    %v1868 = vpop.trf.xlu0
    %v1869 = vpop.trf.xlu0
    %v1870 = vpop.trf.xlu0
    %v1871 = vpop.trf.xlu0
    %v1872 = vpop.trf.xlu0
    %v1873 = vpop.trf.xlu0
    %v1874 = vpop.trf.xlu0
    %v1875 = vpop.trf.xlu0
    %v1876 = vpop.trf.xlu0
    %v1877 = vpop.trf.xlu0
    %1878 = vxpose.xlu0.b32.start [1/16] %v1440, 128
    %1879 = vxpose.xlu0.b32.cont [2/16] %v1442, 128
    %1880 = vxpose.xlu0.b32.cont [3/16] 0.0, 128
    %1881 = vxpose.xlu0.b32.cont [4/16] 0.0, 128
    %1882 = vxpose.xlu0.b32.cont [5/16] 0.0, 128
    %1883 = vxpose.xlu0.b32.cont [6/16] 0.0, 128
    %1884 = vxpose.xlu0.b32.cont [7/16] 0.0, 128
    %1885 = vxpose.xlu0.b32.cont [8/16] 0.0, 128
    %1886 = vxpose.xlu0.b32.cont [9/16] 0.0, 128
    %1887 = vxpose.xlu0.b32.cont [10/16] 0.0, 128
    %1888 = vxpose.xlu0.b32.cont [11/16] 0.0, 128
    %1889 = vxpose.xlu0.b32.cont [12/16] 0.0, 128
    %1890 = vxpose.xlu0.b32.cont [13/16] 0.0, 128
    %1891 = vxpose.xlu0.b32.cont [14/16] 0.0, 128
    %1892 = vxpose.xlu0.b32.cont [15/16] 0.0, 128
    %1893 = vxpose.xlu0.b32.end [16/16] 0.0, 128
    %v1894 = vpop.trf.xlu0
    %v1895 = vpop.trf.xlu0
    %v1896 = vpop.trf.xlu0
    %v1897 = vpop.trf.xlu0
    %v1898 = vpop.trf.xlu0
    %v1899 = vpop.trf.xlu0
    %v1900 = vpop.trf.xlu0
    %v1901 = vpop.trf.xlu0
    %v1902 = vpop.trf.xlu0
    %v1903 = vpop.trf.xlu0
    %v1904 = vpop.trf.xlu0
    %v1905 = vpop.trf.xlu0
    %v1906 = vpop.trf.xlu0
    %v1907 = vpop.trf.xlu0
    %v1908 = vpop.trf.xlu0
    %v1909 = vpop.trf.xlu0
    %1910 = vxpose.xlu0.b32.start [1/16] %v1445, 128
    %1911 = vxpose.xlu0.b32.cont [2/16] %v1447, 128
    %1912 = vxpose.xlu0.b32.cont [3/16] 0.0, 128
    %1913 = vxpose.xlu0.b32.cont [4/16] 0.0, 128
    %1914 = vxpose.xlu0.b32.cont [5/16] 0.0, 128
    %1915 = vxpose.xlu0.b32.cont [6/16] 0.0, 128
    %1916 = vxpose.xlu0.b32.cont [7/16] 0.0, 128
    %1917 = vxpose.xlu0.b32.cont [8/16] 0.0, 128
    %1918 = vxpose.xlu0.b32.cont [9/16] 0.0, 128
    %1919 = vxpose.xlu0.b32.cont [10/16] 0.0, 128
    %1920 = vxpose.xlu0.b32.cont [11/16] 0.0, 128
    %1921 = vxpose.xlu0.b32.cont [12/16] 0.0, 128
    %1922 = vxpose.xlu0.b32.cont [13/16] 0.0, 128
    %1923 = vxpose.xlu0.b32.cont [14/16] 0.0, 128
    %1924 = vxpose.xlu0.b32.cont [15/16] 0.0, 128
    %1925 = vxpose.xlu0.b32.end [16/16] 0.0, 128
    %v1926 = vpop.trf.xlu0
    %v1927 = vpop.trf.xlu0
    %v1928 = vpop.trf.xlu0
    %v1929 = vpop.trf.xlu0
    %v1930 = vpop.trf.xlu0
    %v1931 = vpop.trf.xlu0
    %v1932 = vpop.trf.xlu0
    %v1933 = vpop.trf.xlu0
    %v1934 = vpop.trf.xlu0
    %v1935 = vpop.trf.xlu0
    %v1936 = vpop.trf.xlu0
    %v1937 = vpop.trf.xlu0
    %v1938 = vpop.trf.xlu0
    %v1939 = vpop.trf.xlu0
    %v1940 = vpop.trf.xlu0
    %v1941 = vpop.trf.xlu0
    %1942 = vxpose.xlu0.b32.start [1/16] %v1450, 128
    %1943 = vxpose.xlu0.b32.cont [2/16] %v1452, 128
    %1944 = vxpose.xlu0.b32.cont [3/16] 0.0, 128
    %1945 = vxpose.xlu0.b32.cont [4/16] 0.0, 128
    %1946 = vxpose.xlu0.b32.cont [5/16] 0.0, 128
    %1947 = vxpose.xlu0.b32.cont [6/16] 0.0, 128
    %1948 = vxpose.xlu0.b32.cont [7/16] 0.0, 128
    %1949 = vxpose.xlu0.b32.cont [8/16] 0.0, 128
    %1950 = vxpose.xlu0.b32.cont [9/16] 0.0, 128
    %1951 = vxpose.xlu0.b32.cont [10/16] 0.0, 128
    %1952 = vxpose.xlu0.b32.cont [11/16] 0.0, 128
    %1953 = vxpose.xlu0.b32.cont [12/16] 0.0, 128
    %1954 = vxpose.xlu0.b32.cont [13/16] 0.0, 128
    %1955 = vxpose.xlu0.b32.cont [14/16] 0.0, 128
    %1956 = vxpose.xlu0.b32.cont [15/16] 0.0, 128
    %1957 = vxpose.xlu0.b32.end [16/16] 0.0, 128
    %v1958 = vpop.trf.xlu0
    %v1959 = vpop.trf.xlu0
    %v1960 = vpop.trf.xlu0
    %v1961 = vpop.trf.xlu0
    %v1962 = vpop.trf.xlu0
    %v1963 = vpop.trf.xlu0
    %v1964 = vpop.trf.xlu0
    %v1965 = vpop.trf.xlu0
    %v1966 = vpop.trf.xlu0
    %v1967 = vpop.trf.xlu0
    %v1968 = vpop.trf.xlu0
    %v1969 = vpop.trf.xlu0
    %v1970 = vpop.trf.xlu0
    %v1971 = vpop.trf.xlu0
    %v1972 = vpop.trf.xlu0
    %v1973 = vpop.trf.xlu0
    %v1974 = vpack.c.bf16 %v1735, %v1734
    %v1975 = vpack.c.bf16 %v1767, %v1766
    %v1976 = vpack.c.bf16 %v1799, %v1798
    %v1977 = vpack.c.bf16 %v1831, %v1830
    %v1978 = vpack.c.bf16 %v1863, %v1862
    %v1979 = vpack.c.bf16 %v1895, %v1894
    %v1980 = vpack.c.bf16 %v1927, %v1926
    %v1981 = vpack.c.bf16 %v1959, %v1958
    %v1983 = vsel %vm151, %v1710, 0
    %v1986 = vsel %vm151, %v1711, 0
    %v1989 = vsel %vm151, %v1712, 0
    %v1992 = vsel %vm151, %v1713, 0
    %v1995 = vsel %vm151, %v1714, 0
    %v1998 = vsel %vm151, %v1715, 0
    %v2001 = vsel %vm151, %v1716, 0
    %v2004 = vsel %vm151, %v1717, 0
    %2006 = vmatpush.bf16.msra.mxu0 0
    %2007 = vmatpush.bf16.msra.mxu0 0
    %2008 = vmatpush.bf16.msra.mxu0 0
    %2009 = vmatpush.bf16.msra.mxu0 0
    %2010 = vmatpush.bf16.msra.mxu0 0
    %2011 = vmatpush.bf16.msra.mxu0 0
    %2012 = vmatpush.bf16.msra.mxu0 0
    %2013 = vmatpush.bf16.msra.mxu0 %v149
    %2014 = vmatmul.bf16.gmra.mxu0 %v1983
    %v2015 = vpop.f32.mrf.mxu0
    %v2016 = vadd.f32 0.0, %v2015
    %v2017 = vpop.f32.mrf.mxu0
    %v2018 = vadd.f32 0.0, %v2017
    %2019 = vmatmul.bf16.gmra.mxu0 %v1986
    %v2020 = vpop.f32.mrf.mxu0
    %v2021 = vadd.f32 0.0, %v2020
    %v2022 = vpop.f32.mrf.mxu0
    %v2023 = vadd.f32 0.0, %v2022
    %2024 = vmatmul.bf16.gmra.mxu0 %v1989
    %v2025 = vpop.f32.mrf.mxu0
    %v2026 = vadd.f32 0.0, %v2025
    %v2027 = vpop.f32.mrf.mxu0
    %v2028 = vadd.f32 0.0, %v2027
    %2029 = vmatmul.bf16.gmra.mxu0 %v1992
    %v2030 = vpop.f32.mrf.mxu0
    %v2031 = vadd.f32 0.0, %v2030
    %v2032 = vpop.f32.mrf.mxu0
    %v2033 = vadd.f32 0.0, %v2032
    %2034 = vmatmul.bf16.gmra.mxu0 %v1995
    %v2035 = vpop.f32.mrf.mxu0
    %v2036 = vadd.f32 0.0, %v2035
    %v2037 = vpop.f32.mrf.mxu0
    %v2038 = vadd.f32 0.0, %v2037
    %2039 = vmatmul.bf16.gmra.mxu0 %v1998
    %v2040 = vpop.f32.mrf.mxu0
    %v2041 = vadd.f32 0.0, %v2040
    %v2042 = vpop.f32.mrf.mxu0
    %v2043 = vadd.f32 0.0, %v2042
    %2044 = vmatmul.bf16.gmra.mxu0 %v2001
    %v2045 = vpop.f32.mrf.mxu0
    %v2046 = vadd.f32 0.0, %v2045
    %v2047 = vpop.f32.mrf.mxu0
    %v2048 = vadd.f32 0.0, %v2047
    %2049 = vmatmul.bf16.gmra.mxu0 %v2004
    %v2050 = vpop.f32.mrf.mxu0
    %v2051 = vadd.f32 0.0, %v2050
    %v2052 = vpop.f32.mrf.mxu0
    %v2053 = vadd.f32 0.0, %v2052
    %2054 = vdwg.mxu0
    %v2056 = vsel %vm151, %v1974, 0
    %v2059 = vsel %vm151, %v1975, 0
    %v2062 = vsel %vm151, %v1976, 0
    %v2065 = vsel %vm151, %v1977, 0
    %v2068 = vsel %vm151, %v1978, 0
    %v2071 = vsel %vm151, %v1979, 0
    %v2074 = vsel %vm151, %v1980, 0
    %v2077 = vsel %vm151, %v1981, 0
    %2079 = vmatpush.bf16.msra.mxu0 0
    %2080 = vmatpush.bf16.msra.mxu0 0
    %2081 = vmatpush.bf16.msra.mxu0 0
    %2082 = vmatpush.bf16.msra.mxu0 0
    %2083 = vmatpush.bf16.msra.mxu0 0
    %2084 = vmatpush.bf16.msra.mxu0 0
    %2085 = vmatpush.bf16.msra.mxu0 0
    %2086 = vmatpush.bf16.msra.mxu0 %v229
    %2087 = vmatmul.bf16.gmra.mxu0 %v2056
    %v2088 = vpop.f32.mrf.mxu0
    %v2089 = vadd.f32 0.0, %v2088
    %v2090 = vpop.f32.mrf.mxu0
    %v2091 = vadd.f32 0.0, %v2090
    %2092 = vmatmul.bf16.gmra.mxu0 %v2059
    %v2093 = vpop.f32.mrf.mxu0
    %v2094 = vadd.f32 0.0, %v2093
    %v2095 = vpop.f32.mrf.mxu0
    %v2096 = vadd.f32 0.0, %v2095
    %2097 = vmatmul.bf16.gmra.mxu0 %v2062
    %v2098 = vpop.f32.mrf.mxu0
    %v2099 = vadd.f32 0.0, %v2098
    %v2100 = vpop.f32.mrf.mxu0
    %v2101 = vadd.f32 0.0, %v2100
    %2102 = vmatmul.bf16.gmra.mxu0 %v2065
    %v2103 = vpop.f32.mrf.mxu0
    %v2104 = vadd.f32 0.0, %v2103
    %v2105 = vpop.f32.mrf.mxu0
    %v2106 = vadd.f32 0.0, %v2105
    %2107 = vmatmul.bf16.gmra.mxu0 %v2068
    %v2108 = vpop.f32.mrf.mxu0
    %v2109 = vadd.f32 0.0, %v2108
    %v2110 = vpop.f32.mrf.mxu0
    %v2111 = vadd.f32 0.0, %v2110
    %2112 = vmatmul.bf16.gmra.mxu0 %v2071
    %v2113 = vpop.f32.mrf.mxu0
    %v2114 = vadd.f32 0.0, %v2113
    %v2115 = vpop.f32.mrf.mxu0
    %v2116 = vadd.f32 0.0, %v2115
    %2117 = vmatmul.bf16.gmra.mxu0 %v2074
    %v2118 = vpop.f32.mrf.mxu0
    %v2119 = vadd.f32 0.0, %v2118
    %v2120 = vpop.f32.mrf.mxu0
    %v2121 = vadd.f32 0.0, %v2120
    %2122 = vmatmul.bf16.gmra.mxu0 %v2077
    %v2123 = vpop.f32.mrf.mxu0
    %v2124 = vadd.f32 0.0, %v2123
    %v2125 = vpop.f32.mrf.mxu0
    %v2126 = vadd.f32 0.0, %v2125
    %2127 = vdwg.mxu0
    %v2128 = vsub.f32 %v2016, %v2089
    %v2129 = vsub.f32 %v2018, %v2091
    %v2130 = vsub.f32 %v2021, %v2094
    %v2131 = vsub.f32 %v2023, %v2096
    %v2132 = vsub.f32 %v2026, %v2099
    %v2133 = vsub.f32 %v2028, %v2101
    %v2134 = vsub.f32 %v2031, %v2104
    %v2135 = vsub.f32 %v2033, %v2106
    %v2136 = vsub.f32 %v2036, %v2109
    %v2137 = vsub.f32 %v2038, %v2111
    %v2138 = vsub.f32 %v2041, %v2114
    %v2139 = vsub.f32 %v2043, %v2116
    %v2140 = vsub.f32 %v2046, %v2119
    %v2141 = vsub.f32 %v2048, %v2121
    %v2142 = vsub.f32 %v2051, %v2124
    %v2143 = vsub.f32 %v2053, %v2126
    %2144 = vmatpush.bf16.msra.mxu0 0
    %2145 = vmatpush.bf16.msra.mxu0 0
    %2146 = vmatpush.bf16.msra.mxu0 0
    %2147 = vmatpush.bf16.msra.mxu0 0
    %2148 = vmatpush.bf16.msra.mxu0 0
    %2149 = vmatpush.bf16.msra.mxu0 0
    %2150 = vmatpush.bf16.msra.mxu0 0
    %2151 = vmatpush.bf16.msra.mxu0 %v149
    %2152 = vmatmul.bf16.gmra.mxu0 %v2056
    %v2153 = vpop.f32.mrf.mxu0
    %v2154 = vadd.f32 0.0, %v2153
    %v2155 = vpop.f32.mrf.mxu0
    %v2156 = vadd.f32 0.0, %v2155
    %2157 = vmatmul.bf16.gmra.mxu0 %v2059
    %v2158 = vpop.f32.mrf.mxu0
    %v2159 = vadd.f32 0.0, %v2158
    %v2160 = vpop.f32.mrf.mxu0
    %v2161 = vadd.f32 0.0, %v2160
    %2162 = vmatmul.bf16.gmra.mxu0 %v2062
    %v2163 = vpop.f32.mrf.mxu0
    %v2164 = vadd.f32 0.0, %v2163
    %v2165 = vpop.f32.mrf.mxu0
    %v2166 = vadd.f32 0.0, %v2165
    %2167 = vmatmul.bf16.gmra.mxu0 %v2065
    %v2168 = vpop.f32.mrf.mxu0
    %v2169 = vadd.f32 0.0, %v2168
    %v2170 = vpop.f32.mrf.mxu0
    %v2171 = vadd.f32 0.0, %v2170
    %2172 = vmatmul.bf16.gmra.mxu0 %v2068
    %v2173 = vpop.f32.mrf.mxu0
    %v2174 = vadd.f32 0.0, %v2173
    %v2175 = vpop.f32.mrf.mxu0
    %v2176 = vadd.f32 0.0, %v2175
    %2177 = vmatmul.bf16.gmra.mxu0 %v2071
    %v2178 = vpop.f32.mrf.mxu0
    %v2179 = vadd.f32 0.0, %v2178
    %v2180 = vpop.f32.mrf.mxu0
    %v2181 = vadd.f32 0.0, %v2180
    %2182 = vmatmul.bf16.gmra.mxu0 %v2074
    %v2183 = vpop.f32.mrf.mxu0
    %v2184 = vadd.f32 0.0, %v2183
    %v2185 = vpop.f32.mrf.mxu0
    %v2186 = vadd.f32 0.0, %v2185
    %2187 = vmatmul.bf16.gmra.mxu0 %v2077
    %v2188 = vpop.f32.mrf.mxu0
    %v2189 = vadd.f32 0.0, %v2188
    %v2190 = vpop.f32.mrf.mxu0
    %v2191 = vadd.f32 0.0, %v2190
    %2192 = vdwg.mxu0
    %2193 = vmatpush.bf16.msra.mxu0 0
    %2194 = vmatpush.bf16.msra.mxu0 0
    %2195 = vmatpush.bf16.msra.mxu0 0
    %2196 = vmatpush.bf16.msra.mxu0 0
    %2197 = vmatpush.bf16.msra.mxu0 0
    %2198 = vmatpush.bf16.msra.mxu0 0
    %2199 = vmatpush.bf16.msra.mxu0 0
    %2200 = vmatpush.bf16.msra.mxu0 %v229
    %2201 = vmatmul.bf16.gmra.mxu0 %v1983
    %v2202 = vpop.f32.mrf.mxu0
    %v2203 = vadd.f32 %v2154, %v2202
    %v2204 = vpop.f32.mrf.mxu0
    %v2205 = vadd.f32 %v2156, %v2204
    %2206 = vmatmul.bf16.gmra.mxu0 %v1986
    %v2207 = vpop.f32.mrf.mxu0
    %v2208 = vadd.f32 %v2159, %v2207
    %v2209 = vpop.f32.mrf.mxu0
    %v2210 = vadd.f32 %v2161, %v2209
    %2211 = vmatmul.bf16.gmra.mxu0 %v1989
    %v2212 = vpop.f32.mrf.mxu0
    %v2213 = vadd.f32 %v2164, %v2212
    %v2214 = vpop.f32.mrf.mxu0
    %v2215 = vadd.f32 %v2166, %v2214
    %2216 = vmatmul.bf16.gmra.mxu0 %v1992
    %v2217 = vpop.f32.mrf.mxu0
    %v2218 = vadd.f32 %v2169, %v2217
    %v2219 = vpop.f32.mrf.mxu0
    %v2220 = vadd.f32 %v2171, %v2219
    %2221 = vmatmul.bf16.gmra.mxu0 %v1995
    %v2222 = vpop.f32.mrf.mxu0
    %v2223 = vadd.f32 %v2174, %v2222
    %v2224 = vpop.f32.mrf.mxu0
    %v2225 = vadd.f32 %v2176, %v2224
    %2226 = vmatmul.bf16.gmra.mxu0 %v1998
    %v2227 = vpop.f32.mrf.mxu0
    %v2228 = vadd.f32 %v2179, %v2227
    %v2229 = vpop.f32.mrf.mxu0
    %v2230 = vadd.f32 %v2181, %v2229
    %2231 = vmatmul.bf16.gmra.mxu0 %v2001
    %v2232 = vpop.f32.mrf.mxu0
    %v2233 = vadd.f32 %v2184, %v2232
    %v2234 = vpop.f32.mrf.mxu0
    %v2235 = vadd.f32 %v2186, %v2234
    %2236 = vmatmul.bf16.gmra.mxu0 %v2004
    %v2237 = vpop.f32.mrf.mxu0
    %v2238 = vadd.f32 %v2189, %v2237
    %v2239 = vpop.f32.mrf.mxu0
    %v2240 = vadd.f32 %v2191, %v2239
    %2241 = vdwg.mxu0
    %v2242 = vmul.f32 %v2128, %v2128
    %v2243 = vmul.f32 %v2129, %v2129
    %v2244 = vmul.f32 %v2130, %v2130
    %v2245 = vmul.f32 %v2131, %v2131
    %v2246 = vmul.f32 %v2132, %v2132
    %v2247 = vmul.f32 %v2133, %v2133
    %v2248 = vmul.f32 %v2134, %v2134
    %v2249 = vmul.f32 %v2135, %v2135
    %v2250 = vmul.f32 %v2136, %v2136
    %v2251 = vmul.f32 %v2137, %v2137
    %v2252 = vmul.f32 %v2138, %v2138
    %v2253 = vmul.f32 %v2139, %v2139
    %v2254 = vmul.f32 %v2140, %v2140
    %v2255 = vmul.f32 %v2141, %v2141
    %v2256 = vmul.f32 %v2142, %v2142
    %v2257 = vmul.f32 %v2143, %v2143
    %v2258 = vmul.f32 %v2203, %v2203
    %v2259 = vmul.f32 %v2205, %v2205
    %v2260 = vmul.f32 %v2208, %v2208
    %v2261 = vmul.f32 %v2210, %v2210
    %v2262 = vmul.f32 %v2213, %v2213
    %v2263 = vmul.f32 %v2215, %v2215
    %v2264 = vmul.f32 %v2218, %v2218
    %v2265 = vmul.f32 %v2220, %v2220
    %v2266 = vmul.f32 %v2223, %v2223
    %v2267 = vmul.f32 %v2225, %v2225
    %v2268 = vmul.f32 %v2228, %v2228
    %v2269 = vmul.f32 %v2230, %v2230
    %v2270 = vmul.f32 %v2233, %v2233
    %v2271 = vmul.f32 %v2235, %v2235
    %v2272 = vmul.f32 %v2238, %v2238
    %v2273 = vmul.f32 %v2240, %v2240
    %v2274 = vadd.f32 %v2242, %v2258
    %v2275 = vadd.f32 %v2243, %v2259
    %v2276 = vadd.f32 %v2244, %v2260
    %v2277 = vadd.f32 %v2245, %v2261
    %v2278 = vadd.f32 %v2246, %v2262
    %v2279 = vadd.f32 %v2247, %v2263
    %v2280 = vadd.f32 %v2248, %v2264
    %v2281 = vadd.f32 %v2249, %v2265
    %v2282 = vadd.f32 %v2250, %v2266
    %v2283 = vadd.f32 %v2251, %v2267
    %v2284 = vadd.f32 %v2252, %v2268
    %v2285 = vadd.f32 %v2253, %v2269
    %v2286 = vadd.f32 %v2254, %v2270
    %v2287 = vadd.f32 %v2255, %v2271
    %v2288 = vadd.f32 %v2256, %v2272
    %v2289 = vadd.f32 %v2257, %v2273
    %v2290 = vrsqrt.pop %v2274
    %v2291 = vmul.f32 %v2290, %v2274
    %v2292 = vmul.f32 %v2291, %v2290
    %v2293 = vmul.f32 0.5, %v2292
    %v2294 = vsub.f32 1.5, %v2293
    %v2295 = vmul.f32 %v2290, %v2294
    %v2296 = vmul.f32 %v2274, %v2295
    %vm2297 = vcmp.eq.f32.partialorder %v2274, inf
    %v2298 = vsel %vm2297, %v2274, %v2296
    %vm2299 = vcmp.eq.f32.partialorder %v2274, 0.0
    %v2300 = vand.u32 %v2274, 2147483648
    %v2301 = vsel %vm2299, %v2300, %v2298
    %v2302 = vrsqrt.pop %v2275
    %v2303 = vmul.f32 %v2302, %v2275
    %v2304 = vmul.f32 %v2303, %v2302
    %v2305 = vmul.f32 0.5, %v2304
    %v2306 = vsub.f32 1.5, %v2305
    %v2307 = vmul.f32 %v2302, %v2306
    %v2308 = vmul.f32 %v2275, %v2307
    %vm2309 = vcmp.eq.f32.partialorder %v2275, inf
    %v2310 = vsel %vm2309, %v2275, %v2308
    %vm2311 = vcmp.eq.f32.partialorder %v2275, 0.0
    %v2312 = vand.u32 %v2275, 2147483648
    %v2313 = vsel %vm2311, %v2312, %v2310
    %v2314 = vrsqrt.pop %v2276
    %v2315 = vmul.f32 %v2314, %v2276
    %v2316 = vmul.f32 %v2315, %v2314
    %v2317 = vmul.f32 0.5, %v2316
    %v2318 = vsub.f32 1.5, %v2317
    %v2319 = vmul.f32 %v2314, %v2318
    %v2320 = vmul.f32 %v2276, %v2319
    %vm2321 = vcmp.eq.f32.partialorder %v2276, inf
    %v2322 = vsel %vm2321, %v2276, %v2320
    %vm2323 = vcmp.eq.f32.partialorder %v2276, 0.0
    %v2324 = vand.u32 %v2276, 2147483648
    %v2325 = vsel %vm2323, %v2324, %v2322
    %v2326 = vrsqrt.pop %v2277
    %v2327 = vmul.f32 %v2326, %v2277
    %v2328 = vmul.f32 %v2327, %v2326
    %v2329 = vmul.f32 0.5, %v2328
    %v2330 = vsub.f32 1.5, %v2329
    %v2331 = vmul.f32 %v2326, %v2330
    %v2332 = vmul.f32 %v2277, %v2331
    %vm2333 = vcmp.eq.f32.partialorder %v2277, inf
    %v2334 = vsel %vm2333, %v2277, %v2332
    %vm2335 = vcmp.eq.f32.partialorder %v2277, 0.0
    %v2336 = vand.u32 %v2277, 2147483648
    %v2337 = vsel %vm2335, %v2336, %v2334
    %v2338 = vrsqrt.pop %v2278
    %v2339 = vmul.f32 %v2338, %v2278
    %v2340 = vmul.f32 %v2339, %v2338
    %v2341 = vmul.f32 0.5, %v2340
    %v2342 = vsub.f32 1.5, %v2341
    %v2343 = vmul.f32 %v2338, %v2342
    %v2344 = vmul.f32 %v2278, %v2343
    %vm2345 = vcmp.eq.f32.partialorder %v2278, inf
    %v2346 = vsel %vm2345, %v2278, %v2344
    %vm2347 = vcmp.eq.f32.partialorder %v2278, 0.0
    %v2348 = vand.u32 %v2278, 2147483648
    %v2349 = vsel %vm2347, %v2348, %v2346
    %v2350 = vrsqrt.pop %v2279
    %v2351 = vmul.f32 %v2350, %v2279
    %v2352 = vmul.f32 %v2351, %v2350
    %v2353 = vmul.f32 0.5, %v2352
    %v2354 = vsub.f32 1.5, %v2353
    %v2355 = vmul.f32 %v2350, %v2354
    %v2356 = vmul.f32 %v2279, %v2355
    %vm2357 = vcmp.eq.f32.partialorder %v2279, inf
    %v2358 = vsel %vm2357, %v2279, %v2356
    %vm2359 = vcmp.eq.f32.partialorder %v2279, 0.0
    %v2360 = vand.u32 %v2279, 2147483648
    %v2361 = vsel %vm2359, %v2360, %v2358
    %v2362 = vrsqrt.pop %v2280
    %v2363 = vmul.f32 %v2362, %v2280
    %v2364 = vmul.f32 %v2363, %v2362
    %v2365 = vmul.f32 0.5, %v2364
    %v2366 = vsub.f32 1.5, %v2365
    %v2367 = vmul.f32 %v2362, %v2366
    %v2368 = vmul.f32 %v2280, %v2367
    %vm2369 = vcmp.eq.f32.partialorder %v2280, inf
    %v2370 = vsel %vm2369, %v2280, %v2368
    %vm2371 = vcmp.eq.f32.partialorder %v2280, 0.0
    %v2372 = vand.u32 %v2280, 2147483648
    %v2373 = vsel %vm2371, %v2372, %v2370
    %v2374 = vrsqrt.pop %v2281
    %v2375 = vmul.f32 %v2374, %v2281
    %v2376 = vmul.f32 %v2375, %v2374
    %v2377 = vmul.f32 0.5, %v2376
    %v2378 = vsub.f32 1.5, %v2377
    %v2379 = vmul.f32 %v2374, %v2378
    %v2380 = vmul.f32 %v2281, %v2379
    %vm2381 = vcmp.eq.f32.partialorder %v2281, inf
    %v2382 = vsel %vm2381, %v2281, %v2380
    %vm2383 = vcmp.eq.f32.partialorder %v2281, 0.0
    %v2384 = vand.u32 %v2281, 2147483648
    %v2385 = vsel %vm2383, %v2384, %v2382
    %v2386 = vrsqrt.pop %v2282
    %v2387 = vmul.f32 %v2386, %v2282
    %v2388 = vmul.f32 %v2387, %v2386
    %v2389 = vmul.f32 0.5, %v2388
    %v2390 = vsub.f32 1.5, %v2389
    %v2391 = vmul.f32 %v2386, %v2390
    %v2392 = vmul.f32 %v2282, %v2391
    %vm2393 = vcmp.eq.f32.partialorder %v2282, inf
    %v2394 = vsel %vm2393, %v2282, %v2392
    %vm2395 = vcmp.eq.f32.partialorder %v2282, 0.0
    %v2396 = vand.u32 %v2282, 2147483648
    %v2397 = vsel %vm2395, %v2396, %v2394
    %v2398 = vrsqrt.pop %v2283
    %v2399 = vmul.f32 %v2398, %v2283
    %v2400 = vmul.f32 %v2399, %v2398
    %v2401 = vmul.f32 0.5, %v2400
    %v2402 = vsub.f32 1.5, %v2401
    %v2403 = vmul.f32 %v2398, %v2402
    %v2404 = vmul.f32 %v2283, %v2403
    %vm2405 = vcmp.eq.f32.partialorder %v2283, inf
    %v2406 = vsel %vm2405, %v2283, %v2404
    %vm2407 = vcmp.eq.f32.partialorder %v2283, 0.0
    %v2408 = vand.u32 %v2283, 2147483648
    %v2409 = vsel %vm2407, %v2408, %v2406
    %v2410 = vrsqrt.pop %v2284
    %v2411 = vmul.f32 %v2410, %v2284
    %v2412 = vmul.f32 %v2411, %v2410
    %v2413 = vmul.f32 0.5, %v2412
    %v2414 = vsub.f32 1.5, %v2413
    %v2415 = vmul.f32 %v2410, %v2414
    %v2416 = vmul.f32 %v2284, %v2415
    %vm2417 = vcmp.eq.f32.partialorder %v2284, inf
    %v2418 = vsel %vm2417, %v2284, %v2416
    %vm2419 = vcmp.eq.f32.partialorder %v2284, 0.0
    %v2420 = vand.u32 %v2284, 2147483648
    %v2421 = vsel %vm2419, %v2420, %v2418
    %v2422 = vrsqrt.pop %v2285
    %v2423 = vmul.f32 %v2422, %v2285
    %v2424 = vmul.f32 %v2423, %v2422
    %v2425 = vmul.f32 0.5, %v2424
    %v2426 = vsub.f32 1.5, %v2425
    %v2427 = vmul.f32 %v2422, %v2426
    %v2428 = vmul.f32 %v2285, %v2427
    %vm2429 = vcmp.eq.f32.partialorder %v2285, inf
    %v2430 = vsel %vm2429, %v2285, %v2428
    %vm2431 = vcmp.eq.f32.partialorder %v2285, 0.0
    %v2432 = vand.u32 %v2285, 2147483648
    %v2433 = vsel %vm2431, %v2432, %v2430
    %v2434 = vrsqrt.pop %v2286
    %v2435 = vmul.f32 %v2434, %v2286
    %v2436 = vmul.f32 %v2435, %v2434
    %v2437 = vmul.f32 0.5, %v2436
    %v2438 = vsub.f32 1.5, %v2437
    %v2439 = vmul.f32 %v2434, %v2438
    %v2440 = vmul.f32 %v2286, %v2439
    %vm2441 = vcmp.eq.f32.partialorder %v2286, inf
    %v2442 = vsel %vm2441, %v2286, %v2440
    %vm2443 = vcmp.eq.f32.partialorder %v2286, 0.0
    %v2444 = vand.u32 %v2286, 2147483648
    %v2445 = vsel %vm2443, %v2444, %v2442
    %v2446 = vrsqrt.pop %v2287
    %v2447 = vmul.f32 %v2446, %v2287
    %v2448 = vmul.f32 %v2447, %v2446
    %v2449 = vmul.f32 0.5, %v2448
    %v2450 = vsub.f32 1.5, %v2449
    %v2451 = vmul.f32 %v2446, %v2450
    %v2452 = vmul.f32 %v2287, %v2451
    %vm2453 = vcmp.eq.f32.partialorder %v2287, inf
    %v2454 = vsel %vm2453, %v2287, %v2452
    %vm2455 = vcmp.eq.f32.partialorder %v2287, 0.0
    %v2456 = vand.u32 %v2287, 2147483648
    %v2457 = vsel %vm2455, %v2456, %v2454
    %v2458 = vrsqrt.pop %v2288
    %v2459 = vmul.f32 %v2458, %v2288
    %v2460 = vmul.f32 %v2459, %v2458
    %v2461 = vmul.f32 0.5, %v2460
    %v2462 = vsub.f32 1.5, %v2461
    %v2463 = vmul.f32 %v2458, %v2462
    %v2464 = vmul.f32 %v2288, %v2463
    %vm2465 = vcmp.eq.f32.partialorder %v2288, inf
    %v2466 = vsel %vm2465, %v2288, %v2464
    %vm2467 = vcmp.eq.f32.partialorder %v2288, 0.0
    %v2468 = vand.u32 %v2288, 2147483648
    %v2469 = vsel %vm2467, %v2468, %v2466
    %v2470 = vrsqrt.pop %v2289
    %v2471 = vmul.f32 %v2470, %v2289
    %v2472 = vmul.f32 %v2471, %v2470
    %v2473 = vmul.f32 0.5, %v2472
    %v2474 = vsub.f32 1.5, %v2473
    %v2475 = vmul.f32 %v2470, %v2474
    %v2476 = vmul.f32 %v2289, %v2475
    %vm2477 = vcmp.eq.f32.partialorder %v2289, inf
    %v2478 = vsel %vm2477, %v2289, %v2476
    %vm2479 = vcmp.eq.f32.partialorder %v2289, 0.0
    %v2480 = vand.u32 %v2289, 2147483648
    %v2481 = vsel %vm2479, %v2480, %v2478
    %v2482 = vsub.f32 %v1127, %v2301
    %v2483 = vsub.f32 %v1139, %v2313
    %v2484 = vsub.f32 %v1151, %v2325
    %v2485 = vsub.f32 %v1163, %v2337
    %v2486 = vsub.f32 %v1175, %v2349
    %v2487 = vsub.f32 %v1187, %v2361
    %v2488 = vsub.f32 %v1199, %v2373
    %v2489 = vsub.f32 %v1211, %v2385
    %v2490 = vsub.f32 %v1223, %v2397
    %v2491 = vsub.f32 %v1235, %v2409
    %v2492 = vsub.f32 %v1247, %v2421
    %v2493 = vsub.f32 %v1259, %v2433
    %v2494 = vsub.f32 %v1271, %v2445
    %v2495 = vsub.f32 %v1283, %v2457
    %v2496 = vsub.f32 %v1295, %v2469
    %v2497 = vsub.f32 %v1307, %v2481
    %v2498 = vand.u32 2147483647, %v2482
    %v2499 = vand.u32 2147483647, %v2483
    %v2500 = vand.u32 2147483647, %v2484
    %v2501 = vand.u32 2147483647, %v2485
    %v2502 = vand.u32 2147483647, %v2486
    %v2503 = vand.u32 2147483647, %v2487
    %v2504 = vand.u32 2147483647, %v2488
    %v2505 = vand.u32 2147483647, %v2489
    %v2506 = vand.u32 2147483647, %v2490
    %v2507 = vand.u32 2147483647, %v2491
    %v2508 = vand.u32 2147483647, %v2492
    %v2509 = vand.u32 2147483647, %v2493
    %v2510 = vand.u32 2147483647, %v2494
    %v2511 = vand.u32 2147483647, %v2495
    %v2512 = vand.u32 2147483647, %v2496
    %v2513 = vand.u32 2147483647, %v2497
    %v2514 = vmul.f32 %v2498, %v1127
    %v2515 = vmul.f32 %v2499, %v1139
    %v2516 = vmul.f32 %v2500, %v1151
    %v2517 = vmul.f32 %v2501, %v1163
    %v2518 = vmul.f32 %v2502, %v1175
    %v2519 = vmul.f32 %v2503, %v1187
    %v2520 = vmul.f32 %v2504, %v1199
    %v2521 = vmul.f32 %v2505, %v1211
    %v2522 = vmul.f32 %v2506, %v1223
    %v2523 = vmul.f32 %v2507, %v1235
    %v2524 = vmul.f32 %v2508, %v1247
    %v2525 = vmul.f32 %v2509, %v1259
    %v2526 = vmul.f32 %v2510, %v1271
    %v2527 = vmul.f32 %v2511, %v1283
    %v2528 = vmul.f32 %v2512, %v1295
    %v2529 = vmul.f32 %v2513, %v1307
    %v2530 = vsel %vm151, %v2514, 0.0
    %2531 = vadd.xlane.f32.xlu0 %v2530
    %v2532 = vpop.xlane.xlu0 %2531
    %v2533 = vsel %vm151, %v2515, 0.0
    %2534 = vadd.xlane.f32.xlu0 %v2533
    %v2535 = vpop.xlane.xlu0 %2534
    %v2536 = vsel %vm151, %v2516, 0.0
    %2537 = vadd.xlane.f32.xlu0 %v2536
    %v2538 = vpop.xlane.xlu0 %2537
    %v2539 = vsel %vm151, %v2517, 0.0
    %2540 = vadd.xlane.f32.xlu0 %v2539
    %v2541 = vpop.xlane.xlu0 %2540
    %v2542 = vsel %vm151, %v2518, 0.0
    %2543 = vadd.xlane.f32.xlu0 %v2542
    %v2544 = vpop.xlane.xlu0 %2543
    %v2545 = vsel %vm151, %v2519, 0.0
    %2546 = vadd.xlane.f32.xlu0 %v2545
    %v2547 = vpop.xlane.xlu0 %2546
    %v2548 = vsel %vm151, %v2520, 0.0
    %2549 = vadd.xlane.f32.xlu0 %v2548
    %v2550 = vpop.xlane.xlu0 %2549
    %v2551 = vsel %vm151, %v2521, 0.0
    %2552 = vadd.xlane.f32.xlu0 %v2551
    %v2553 = vpop.xlane.xlu0 %2552
    %v2554 = vsel %vm151, %v2522, 0.0
    %2555 = vadd.xlane.f32.xlu0 %v2554
    %v2556 = vpop.xlane.xlu0 %2555
    %v2557 = vsel %vm151, %v2523, 0.0
    %2558 = vadd.xlane.f32.xlu0 %v2557
    %v2559 = vpop.xlane.xlu0 %2558
    %v2560 = vsel %vm151, %v2524, 0.0
    %2561 = vadd.xlane.f32.xlu0 %v2560
    %v2562 = vpop.xlane.xlu0 %2561
    %v2563 = vsel %vm151, %v2525, 0.0
    %2564 = vadd.xlane.f32.xlu0 %v2563
    %v2565 = vpop.xlane.xlu0 %2564
    %v2566 = vsel %vm151, %v2526, 0.0
    %2567 = vadd.xlane.f32.xlu0 %v2566
    %v2568 = vpop.xlane.xlu0 %2567
    %v2569 = vsel %vm151, %v2527, 0.0
    %2570 = vadd.xlane.f32.xlu0 %v2569
    %v2571 = vpop.xlane.xlu0 %2570
    %v2572 = vsel %vm151, %v2528, 0.0
    %2573 = vadd.xlane.f32.xlu0 %v2572
    %v2574 = vpop.xlane.xlu0 %2573
    %v2575 = vsel %vm151, %v2529, 0.0
    %2576 = vadd.xlane.f32.xlu0 %v2575
    %v2577 = vpop.xlane.xlu0 %2576
    %v2578 = vld [vmem:[#allocation2] sm:$0xff]
    %v2579 = vld [vmem:[#allocation2 + $0x8] sm:$0xff]
    %v2580 = vld [vmem:[#allocation2 + $0x10] sm:$0xff]
    %v2581 = vld [vmem:[#allocation2 + $0x18] sm:$0xff]
    %v2582 = vld [vmem:[#allocation2 + $0x20] sm:$0xff]
    %v2583 = vld [vmem:[#allocation2 + $0x28] sm:$0xff]
    %v2584 = vld [vmem:[#allocation2 + $0x30] sm:$0xff]
    %v2585 = vld [vmem:[#allocation2 + $0x38] sm:$0xff]
    %v2586 = vld [vmem:[#allocation2 + $0x40] sm:$0xff]
    %v2587 = vld [vmem:[#allocation2 + $0x48] sm:$0xff]
    %v2588 = vld [vmem:[#allocation2 + $0x50] sm:$0xff]
    %v2589 = vld [vmem:[#allocation2 + $0x58] sm:$0xff]
    %v2590 = vld [vmem:[#allocation2 + $0x60] sm:$0xff]
    %v2591 = vld [vmem:[#allocation2 + $0x68] sm:$0xff]
    %v2592 = vld [vmem:[#allocation2 + $0x70] sm:$0xff]
    %v2593 = vld [vmem:[#allocation2 + $0x78] sm:$0xff]
    %v2594 = vadd.f32 %v2578, %v2532
    %v2595 = vadd.f32 %v2579, %v2535
    %v2596 = vadd.f32 %v2580, %v2538
    %v2597 = vadd.f32 %v2581, %v2541
    %v2598 = vadd.f32 %v2582, %v2544
    %v2599 = vadd.f32 %v2583, %v2547
    %v2600 = vadd.f32 %v2584, %v2550
    %v2601 = vadd.f32 %v2585, %v2553
    %v2602 = vadd.f32 %v2586, %v2556
    %v2603 = vadd.f32 %v2587, %v2559
    %v2604 = vadd.f32 %v2588, %v2562
    %v2605 = vadd.f32 %v2589, %v2565
    %v2606 = vadd.f32 %v2590, %v2568
    %v2607 = vadd.f32 %v2591, %v2571
    %v2608 = vadd.f32 %v2592, %v2574
    %v2609 = vadd.f32 %v2593, %v2577
    %vm2610 = vcmask 7168
    %2611 = vst.msk [vmem:[#allocation2] sm:$0xff] %vm2610, %v2594
    %2612 = vst.msk [vmem:[#allocation2 + $0x8] sm:$0xff] %vm2610, %v2595
    %2613 = vst.msk [vmem:[#allocation2 + $0x10] sm:$0xff] %vm2610, %v2596
    %2614 = vst.msk [vmem:[#allocation2 + $0x18] sm:$0xff] %vm2610, %v2597
    %2615 = vst.msk [vmem:[#allocation2 + $0x20] sm:$0xff] %vm2610, %v2598
    %2616 = vst.msk [vmem:[#allocation2 + $0x28] sm:$0xff] %vm2610, %v2599
    %2617 = vst.msk [vmem:[#allocation2 + $0x30] sm:$0xff] %vm2610, %v2600
    %2618 = vst.msk [vmem:[#allocation2 + $0x38] sm:$0xff] %vm2610, %v2601
    %2619 = vst.msk [vmem:[#allocation2 + $0x40] sm:$0xff] %vm2610, %v2602
    %2620 = vst.msk [vmem:[#allocation2 + $0x48] sm:$0xff] %vm2610, %v2603
    %2621 = vst.msk [vmem:[#allocation2 + $0x50] sm:$0xff] %vm2610, %v2604
    %2622 = vst.msk [vmem:[#allocation2 + $0x58] sm:$0xff] %vm2610, %v2605
    %2623 = vst.msk [vmem:[#allocation2 + $0x60] sm:$0xff] %vm2610, %v2606
    %2624 = vst.msk [vmem:[#allocation2 + $0x68] sm:$0xff] %vm2610, %v2607
    %2625 = vst.msk [vmem:[#allocation2 + $0x70] sm:$0xff] %vm2610, %v2608
    %2626 = vst.msk [vmem:[#allocation2 + $0x78] sm:$0xff] %vm2610, %v2609
    // Predicated region
    $region38: #{tpu_custom_call.1} parent=1 // pred_check
      %p2627 = pneg %p96
    $region39: #{tpu_custom_call.1} parent=1 // pred_check_branch
      %2629 = sbr.rel (%p2627) target = $region41
    $region40: #{tpu_custom_call.1} parent=1 // pred_region
      %v2630 = vld [vmem:[#allocation2] sm:$0xff]
      %v2631 = vld [vmem:[#allocation2 + $0x8] sm:$0xff]
      %v2632 = vld [vmem:[#allocation2 + $0x10] sm:$0xff]
      %v2633 = vld [vmem:[#allocation2 + $0x18] sm:$0xff]
      %v2634 = vld [vmem:[#allocation2 + $0x20] sm:$0xff]
      %v2635 = vld [vmem:[#allocation2 + $0x28] sm:$0xff]
      %v2636 = vld [vmem:[#allocation2 + $0x30] sm:$0xff]
      %v2637 = vld [vmem:[#allocation2 + $0x38] sm:$0xff]
      %v2638 = vld [vmem:[#allocation2 + $0x40] sm:$0xff]
      %v2639 = vld [vmem:[#allocation2 + $0x48] sm:$0xff]
      %v2640 = vld [vmem:[#allocation2 + $0x50] sm:$0xff]
      %v2641 = vld [vmem:[#allocation2 + $0x58] sm:$0xff]
      %v2642 = vld [vmem:[#allocation2 + $0x60] sm:$0xff]
      %v2643 = vld [vmem:[#allocation2 + $0x68] sm:$0xff]
      %v2644 = vld [vmem:[#allocation2 + $0x70] sm:$0xff]
      %v2645 = vld [vmem:[#allocation2 + $0x78] sm:$0xff]
      %v2646 = vsel %vm2610, %v2630, 0.0
      %v2647 = vsel %vm2610, %v2631, 0.0
      %v2648 = vadd.f32 %v2646, %v2647
      %v2649 = vsel %vm2610, %v2632, 0.0
      %v2650 = vadd.f32 %v2648, %v2649
      %v2651 = vsel %vm2610, %v2633, 0.0
      %v2652 = vadd.f32 %v2650, %v2651
      %v2653 = vsel %vm2610, %v2634, 0.0
      %v2654 = vadd.f32 %v2652, %v2653
      %v2655 = vsel %vm2610, %v2635, 0.0
      %v2656 = vadd.f32 %v2654, %v2655
      %v2657 = vsel %vm2610, %v2636, 0.0
      %v2658 = vadd.f32 %v2656, %v2657
      %v2659 = vsel %vm2610, %v2637, 0.0
      %v2660 = vadd.f32 %v2658, %v2659
      %v2661 = vsel %vm2610, %v2638, 0.0
      %v2662 = vadd.f32 %v2660, %v2661
      %v2663 = vsel %vm2610, %v2639, 0.0
      %v2664 = vadd.f32 %v2662, %v2663
      %v2665 = vsel %vm2610, %v2640, 0.0
      %v2666 = vadd.f32 %v2664, %v2665
      %v2667 = vsel %vm2610, %v2641, 0.0
      %v2668 = vadd.f32 %v2666, %v2667
      %v2669 = vsel %vm2610, %v2642, 0.0
      %v2670 = vadd.f32 %v2668, %v2669
      %v2671 = vsel %vm2610, %v2643, 0.0
      %v2672 = vadd.f32 %v2670, %v2671
      %v2673 = vsel %vm2610, %v2644, 0.0
      %v2674 = vadd.f32 %v2672, %v2673
      %v2675 = vsel %vm2610, %v2645, 0.0
      %v2676 = vadd.f32 %v2674, %v2675
      %v2677 = vrot.slane %v2676, 4
      %v2678 = vadd.f32 %v2676, %v2677
      %v2679 = vrot.slane %v2678, 2
      %v2680 = vadd.f32 %v2678, %v2679
      %v2681 = vrot.slane %v2680, 1
      %v2682 = vadd.f32 %v2680, %v2681
      %vm2683 = vcmask 0
      %2684 = vst.msk [vmem:[#allocation11] sm:$0x1] %vm2683, %v2682
    $region41: #{tpu_custom_call.1} parent=1 // pred_fallthru
      _
    // Predicated region
    $region42: #{tpu_custom_call.1} parent=1 // pred_check
      _
    $region43: #{tpu_custom_call.1} parent=1 // pred_check_branch
      %2686 = sbr.rel (0) target = $region45
    $region44: #{tpu_custom_call.1} parent=1 // pred_region
      %2688 = vsyncadd [#allocation5], 0
      %s2690 = sshll.u32 [#allocation11], 4
      %s2691 = int_to_ptr.vmem [resolvable:$true] %s2690
      %s2692 = sshll.u32 %s4, 4
      %s2693 = int_to_ptr.hbm [resolvable:$true] %s2692
      %2695 = dma.vmem_to_hbm [thread:$0]  %s2691, 16, %s2693, [#allocation5]
    $region45: #{tpu_custom_call.1} parent=1 // pred_fallthru
      _
    // Predicated region
    $region46: #{tpu_custom_call.1} parent=1 // pred_check
      _
    $region47: #{tpu_custom_call.1} parent=1 // pred_check_branch
      %2697 = sbr.rel (0) target = $region49
    $region48: #{tpu_custom_call.1} parent=1 // pred_region
      %2699 = dma.done [#allocation5], 16
    $region49: #{tpu_custom_call.1} parent=1 // pred_fallthru
      _
    %2700 = vsyncpa [#allocation4], 1
    %2701 = vsyncpa [#allocation7], 1
    %2702 = vsyncpa [#allocation10], 1
    %2703 = vsyncpa [#allocation5], 1

// kernel: tpu_custom_call.1
$region0: #{tpu_custom_call.1}
  #allocation0 [shape = 'u32[]', space=smem, size = 0x4, offset = 0x4, fixed_abs, tag = 'smem constant byte address 0x4 - core index']
  #allocation1 [shape = 'u32[72,128]{1,0:T(1,128)}', space=vmem, size = 0x9000, scoped, tag = 'internal scratch']
  #allocation2 [shape = 'f32[128,1]{1,0:T(8,128)}', space=vmem, size = 0x10000, scoped, tag = 'scratch operand']
  %s0 = inlined_call_operand.hbm [shape: f32[8,16,16], index: 0, kind: input, shape index: {}]
  %s1 = inlined_call_operand.hbm [shape: f32[8,16,16], index: 1, kind: input, shape index: {}]
  %s2 = inlined_call_operand.hbm [shape: bf16[16,16], index: 2, kind: input, shape index: {}]
  %s3 = inlined_call_operand.hbm [shape: bf16[16,16], index: 3, kind: input, shape index: {}]
  %s4 = inlined_call_operand.hbm [shape: f32[1,1], index: 4, kind: output, shape index: {}]
  %s5 = sld [smem:[#allocation0]]
  $region50: #{tpu_custom_call.1} parent=0
    _
  %s7 = ssub.s32 1, %s5
  %s8 = scalar_select 0, %s7, %s5
  $region1: #{tpu_custom_call.1} parent=0
    #allocation3 [shape = 'u8[65536]{0}', space=vmem, size = 0x10000, scoped, tag = 'input window, operand 0, single buffered']
    #allocation4 [shape = 's32[1]{0}', space=sflag, size = 0x4, scoped, tag = 'scoped memory for tpu_custom_call.1']
    #allocation5 [shape = 's32[1]{0}', space=sflag, size = 0x4, scoped, tag = 'scoped memory for tpu_custom_call.1']
    #allocation6 [shape = 'u8[65536]{0}', space=vmem, size = 0x10000, scoped, tag = 'input window, operand 1, single buffered']
    #allocation7 [shape = 's32[1]{0}', space=sflag, size = 0x4, scoped, tag = 'scoped memory for tpu_custom_call.1']
    #allocation8 [shape = 'u8[4096]{0}', space=vmem, size = 0x1000, scoped, tag = 'input window, operand 2, single buffered']
    #allocation9 [shape = 'u8[4096]{0}', space=vmem, size = 0x1000, scoped, tag = 'input window, operand 3, single buffered']
    #allocation10 [shape = 's32[1]{0}', space=sflag, size = 0x4, scoped, tag = 'scoped memory for tpu_custom_call.1']
    #allocation11 [shape = 'u8[512]{0}', space=vmem, size = 0x400, scoped, tag = 'output window, operand 0, single buffered']
    %9 = vsyncpa [#allocation4], 0
    %10 = vsyncpa [#allocation7], 0
    %11 = vsyncpa [#allocation10], 0
    %12 = vsyncpa [#allocation5], 0
    // Predicated region
    $region2: #{tpu_custom_call.1} parent=1 // pred_check
      _
    $region3: #{tpu_custom_call.1} parent=1 // pred_check_branch
      %14 = sbr.rel (0) target = $region5
    $region4: #{tpu_custom_call.1} parent=1 // pred_region
      %s15 = sadd.s32 0, 0
      %s16 = smul.u32 8, %s15
      %18 = vsyncadd [#allocation4], 0
      %s19 = smul.addr %s16, 2
      %s20 = smul.addr %s19, 8
      %s21 = scalar_lea.hbm %s0, %s20
      %s22 = sshll.u32 %s21, 4
      %s23 = int_to_ptr.hbm [resolvable:$true] %s22
      %s24 = sshll.u32 [#allocation3], 4
      %s25 = int_to_ptr.vmem [resolvable:$true] %s24
      %30 = dma.hbm_to_vmem [thread:$0]  %s23, 2048, %s25, [#allocation4], 128, 128, 8
    $region5: #{tpu_custom_call.1} parent=1 // pred_fallthru
      _
    // Predicated region
    $region6: #{tpu_custom_call.1} parent=1 // pred_check
      _
    $region7: #{tpu_custom_call.1} parent=1 // pred_check_branch
      %32 = sbr.rel (0) target = $region9
    $region8: #{tpu_custom_call.1} parent=1 // pred_region
      %s33 = sadd.s32 0, 0
      %s34 = smul.u32 8, %s33
      %36 = vsyncadd [#allocation7], 0
      %s37 = smul.addr %s34, 2
      %s38 = smul.addr %s37, 8
      %s39 = scalar_lea.hbm %s1, %s38
      %s40 = sshll.u32 %s39, 4
      %s41 = int_to_ptr.hbm [resolvable:$true] %s40
      %s42 = sshll.u32 [#allocation6], 4
      %s43 = int_to_ptr.vmem [resolvable:$true] %s42
      %48 = dma.hbm_to_vmem [thread:$0]  %s41, 2048, %s43, [#allocation7], 128, 128, 8
    $region9: #{tpu_custom_call.1} parent=1 // pred_fallthru
      _
    // Predicated region
    $region10: #{tpu_custom_call.1} parent=1 // pred_check
      _
    $region11: #{tpu_custom_call.1} parent=1 // pred_check_branch
      %50 = sbr.rel (0) target = $region13
    $region12: #{tpu_custom_call.1} parent=1 // pred_region
      %52 = vsyncadd [#allocation7], 0
      %s53 = sshll.u32 %s2, 4
      %s54 = int_to_ptr.hbm [resolvable:$true] %s53
      %s55 = sshll.u32 [#allocation8], 4
      %s56 = int_to_ptr.vmem [resolvable:$true] %s55
      %61 = dma.hbm_to_vmem [thread:$0]  %s54, 128, %s56, [#allocation7], 64, 64, 4
    $region13: #{tpu_custom_call.1} parent=1 // pred_fallthru
      _
    // Predicated region
    $region14: #{tpu_custom_call.1} parent=1 // pred_check
      _
    $region15: #{tpu_custom_call.1} parent=1 // pred_check_branch
      %63 = sbr.rel (0) target = $region17
    $region16: #{tpu_custom_call.1} parent=1 // pred_region
      %65 = vsyncadd [#allocation10], 0
      %s66 = sshll.u32 %s3, 4
      %s67 = int_to_ptr.hbm [resolvable:$true] %s66
      %s68 = sshll.u32 [#allocation9], 4
      %s69 = int_to_ptr.vmem [resolvable:$true] %s68
      %74 = dma.hbm_to_vmem [thread:$0]  %s67, 128, %s69, [#allocation10], 64, 64, 4
    $region17: #{tpu_custom_call.1} parent=1 // pred_fallthru
      _
    // Predicated region
    $region18: #{tpu_custom_call.1} parent=1 // pred_check
      _
    $region19: #{tpu_custom_call.1} parent=1 // pred_check_branch
      %76 = sbr.rel (0) target = $region21
    $region20: #{tpu_custom_call.1} parent=1 // pred_region
      %78 = dma.done [#allocation4], 2048
    $region21: #{tpu_custom_call.1} parent=1 // pred_fallthru
      _
    // Predicated region
    $region22: #{tpu_custom_call.1} parent=1 // pred_check
      _
    $region23: #{tpu_custom_call.1} parent=1 // pred_check_branch
      %80 = sbr.rel (0) target = $region25
    $region24: #{tpu_custom_call.1} parent=1 // pred_region
      %82 = dma.done [#allocation7], 2048
    $region25: #{tpu_custom_call.1} parent=1 // pred_fallthru
      _
    // Predicated region
    $region26: #{tpu_custom_call.1} parent=1 // pred_check
      _
    $region27: #{tpu_custom_call.1} parent=1 // pred_check_branch
      %84 = sbr.rel (0) target = $region29
    $region28: #{tpu_custom_call.1} parent=1 // pred_region
      %86 = dma.done [#allocation7], 128
    $region29: #{tpu_custom_call.1} parent=1 // pred_fallthru
      _
    // Predicated region
    $region30: #{tpu_custom_call.1} parent=1 // pred_check
      _
    $region31: #{tpu_custom_call.1} parent=1 // pred_check_branch
      %88 = sbr.rel (0) target = $region33
    $region32: #{tpu_custom_call.1} parent=1 // pred_region
      %90 = dma.done [#allocation10], 128
    $region33: #{tpu_custom_call.1} parent=1 // pred_fallthru
      _
    %s91 = sadd.s32 0, 0
    %s92 = smul.u32 8, %s91
    %s93 = sadd.s32 0, 0
    %s94 = smul.u32 8, %s93
    %p96 = scmp.eq.s32.totalorder 0, 0
    // Predicated region
    $region34: #{tpu_custom_call.1} parent=1 // pred_check
      %p97 = pneg %p96
    $region35: #{tpu_custom_call.1} parent=1 // pred_check_branch
      %99 = sbr.rel (%p97) target = $region37
    $region36: #{tpu_custom_call.1} parent=1 // pred_region
      %vm100 = vcmask 7168
      %101 = vst.msk [vmem:[#allocation2] sm:$0xff] %vm100, 0.0
      %102 = vst.msk [vmem:[#allocation2 + $0x8] sm:$0xff] %vm100, 0.0
      %103 = vst.msk [vmem:[#allocation2 + $0x10] sm:$0xff] %vm100, 0.0
      %104 = vst.msk [vmem:[#allocation2 + $0x18] sm:$0xff] %vm100, 0.0
      %105 = vst.msk [vmem:[#allocation2 + $0x20] sm:$0xff] %vm100, 0.0
      %106 = vst.msk [vmem:[#allocation2 + $0x28] sm:$0xff] %vm100, 0.0
      %107 = vst.msk [vmem:[#allocation2 + $0x30] sm:$0xff] %vm100, 0.0
      %108 = vst.msk [vmem:[#allocation2 + $0x38] sm:$0xff] %vm100, 0.0
      %109 = vst.msk [vmem:[#allocation2 + $0x40] sm:$0xff] %vm100, 0.0
      %110 = vst.msk [vmem:[#allocation2 + $0x48] sm:$0xff] %vm100, 0.0
      %111 = vst.msk [vmem:[#allocation2 + $0x50] sm:$0xff] %vm100, 0.0
      %112 = vst.msk [vmem:[#allocation2 + $0x58] sm:$0xff] %vm100, 0.0
      %113 = vst.msk [vmem:[#allocation2 + $0x60] sm:$0xff] %vm100, 0.0
      %114 = vst.msk [vmem:[#allocation2 + $0x68] sm:$0xff] %vm100, 0.0
      %115 = vst.msk [vmem:[#allocation2 + $0x70] sm:$0xff] %vm100, 0.0
      %116 = vst.msk [vmem:[#allocation2 + $0x78] sm:$0xff] %vm100, 0.0
    $region37: #{tpu_custom_call.1} parent=1 // pred_fallthru
      _
    %v117 = vld [vmem:[#allocation8] sm:$0xf]
    %v118 = vld [vmem:[#allocation8 + $0x4] sm:$0xf]
    %v119 = vld [vmem:[#allocation9] sm:$0xf]
    %v120 = vld [vmem:[#allocation9 + $0x4] sm:$0xf]
    %v121 = vld [vmem:[#allocation3] sm:$0xff]
    %v122 = vld [vmem:[#allocation3 + $0x8] sm:$0xff]
    %v123 = vld [vmem:[#allocation3 + $0x10] sm:$0xff]
    %v124 = vld [vmem:[#allocation3 + $0x18] sm:$0xff]
    %v125 = vld [vmem:[#allocation3 + $0x20] sm:$0xff]
    %v126 = vld [vmem:[#allocation3 + $0x28] sm:$0xff]
    %v127 = vld [vmem:[#allocation3 + $0x30] sm:$0xff]
    %v128 = vld [vmem:[#allocation3 + $0x38] sm:$0xff]
    %v129 = vld [vmem:[#allocation3 + $0x40] sm:$0xff]
    %v130 = vld [vmem:[#allocation3 + $0x48] sm:$0xff]
    %v131 = vld [vmem:[#allocation3 + $0x50] sm:$0xff]
    %v132 = vld [vmem:[#allocation3 + $0x58] sm:$0xff]
    %v133 = vld [vmem:[#allocation3 + $0x60] sm:$0xff]
    %v134 = vld [vmem:[#allocation3 + $0x68] sm:$0xff]
    %v135 = vld [vmem:[#allocation3 + $0x70] sm:$0xff]
    %v136 = vld [vmem:[#allocation3 + $0x78] sm:$0xff]
    %v137 = vpack.c.bf16 %v122, %v121
    %v138 = vpack.c.bf16 %v124, %v123
    %v139 = vpack.c.bf16 %v126, %v125
    %v140 = vpack.c.bf16 %v128, %v127
    %v141 = vpack.c.bf16 %v130, %v129
    %v142 = vpack.c.bf16 %v132, %v131
    %v143 = vpack.c.bf16 %v134, %v133
    %v144 = vpack.c.bf16 %v136, %v135
    %v147 = vunpack.c.l.b16 %v117
    %v148 = vunpack.c.l.b16 %v118
    %v149 = vpack.c.b16 %v148, %v147
    %vm151 = vcmask 130048
    %v153 = vsel %vm151, %v137, 0
    %v156 = vsel %vm151, %v138, 0
    %v159 = vsel %vm151, %v139, 0
    %v162 = vsel %vm151, %v140, 0
    %v165 = vsel %vm151, %v141, 0
    %v168 = vsel %vm151, %v142, 0
    %v171 = vsel %vm151, %v143, 0
    %v174 = vsel %vm151, %v144, 0
    %176 = vmatpush.bf16.msra.mxu0 0
    %177 = vmatpush.bf16.msra.mxu0 0
    %178 = vmatpush.bf16.msra.mxu0 0
    %179 = vmatpush.bf16.msra.mxu0 0
    %180 = vmatpush.bf16.msra.mxu0 0
    %181 = vmatpush.bf16.msra.mxu0 0
    %182 = vmatpush.bf16.msra.mxu0 0
    %183 = vmatpush.bf16.msra.mxu0 %v149
    %184 = vmatmul.bf16.gmra.mxu0 %v153
    %v185 = vpop.f32.mrf.mxu0
    %v186 = vadd.f32 0.0, %v185
    %v187 = vpop.f32.mrf.mxu0
    %v188 = vadd.f32 0.0, %v187
    %189 = vmatmul.bf16.gmra.mxu0 %v156
    %v190 = vpop.f32.mrf.mxu0
    %v191 = vadd.f32 0.0, %v190
    %v192 = vpop.f32.mrf.mxu0
    %v193 = vadd.f32 0.0, %v192
    %194 = vmatmul.bf16.gmra.mxu0 %v159
    %v195 = vpop.f32.mrf.mxu0
    %v196 = vadd.f32 0.0, %v195
    %v197 = vpop.f32.mrf.mxu0
    %v198 = vadd.f32 0.0, %v197
    %199 = vmatmul.bf16.gmra.mxu0 %v162
    %v200 = vpop.f32.mrf.mxu0
    %v201 = vadd.f32 0.0, %v200
    %v202 = vpop.f32.mrf.mxu0
    %v203 = vadd.f32 0.0, %v202
    %204 = vmatmul.bf16.gmra.mxu0 %v165
    %v205 = vpop.f32.mrf.mxu0
    %v206 = vadd.f32 0.0, %v205
    %v207 = vpop.f32.mrf.mxu0
    %v208 = vadd.f32 0.0, %v207
    %209 = vmatmul.bf16.gmra.mxu0 %v168
    %v210 = vpop.f32.mrf.mxu0
    %v211 = vadd.f32 0.0, %v210
    %v212 = vpop.f32.mrf.mxu0
    %v213 = vadd.f32 0.0, %v212
    %214 = vmatmul.bf16.gmra.mxu0 %v171
    %v215 = vpop.f32.mrf.mxu0
    %v216 = vadd.f32 0.0, %v215
    %v217 = vpop.f32.mrf.mxu0
    %v218 = vadd.f32 0.0, %v217
    %219 = vmatmul.bf16.gmra.mxu0 %v174
    %v220 = vpop.f32.mrf.mxu0
    %v221 = vadd.f32 0.0, %v220
    %v222 = vpop.f32.mrf.mxu0
    %v223 = vadd.f32 0.0, %v222
    %224 = vdwg.mxu0
    %v227 = vunpack.c.l.b16 %v119
    %v228 = vunpack.c.l.b16 %v120
    %v229 = vpack.c.b16 %v228, %v227
    %231 = vmatpush.bf16.msra.mxu0 0
    %232 = vmatpush.bf16.msra.mxu0 0
    %233 = vmatpush.bf16.msra.mxu0 0
    %234 = vmatpush.bf16.msra.mxu0 0
    %235 = vmatpush.bf16.msra.mxu0 0
    %236 = vmatpush.bf16.msra.mxu0 0
    %237 = vmatpush.bf16.msra.mxu0 0
    %238 = vmatpush.bf16.msra.mxu0 %v229
    %239 = vmatmul.bf16.gmra.mxu0 %v153
    %v240 = vpop.f32.mrf.mxu0
    %v241 = vadd.f32 0.0, %v240
    %v242 = vpop.f32.mrf.mxu0
    %v243 = vadd.f32 0.0, %v242
    %244 = vmatmul.bf16.gmra.mxu0 %v156
    %v245 = vpop.f32.mrf.mxu0
    %v246 = vadd.f32 0.0, %v245
    %v247 = vpop.f32.mrf.mxu0
    %v248 = vadd.f32 0.0, %v247
    %249 = vmatmul.bf16.gmra.mxu0 %v159
    %v250 = vpop.f32.mrf.mxu0
    %v251 = vadd.f32 0.0, %v250
    %v252 = vpop.f32.mrf.mxu0
    %v253 = vadd.f32 0.0, %v252
    %254 = vmatmul.bf16.gmra.mxu0 %v162
    %v255 = vpop.f32.mrf.mxu0
    %v256 = vadd.f32 0.0, %v255
    %v257 = vpop.f32.mrf.mxu0
    %v258 = vadd.f32 0.0, %v257
    %259 = vmatmul.bf16.gmra.mxu0 %v165
    %v260 = vpop.f32.mrf.mxu0
    %v261 = vadd.f32 0.0, %v260
    %v262 = vpop.f32.mrf.mxu0
    %v263 = vadd.f32 0.0, %v262
    %264 = vmatmul.bf16.gmra.mxu0 %v168
    %v265 = vpop.f32.mrf.mxu0
    %v266 = vadd.f32 0.0, %v265
    %v267 = vpop.f32.mrf.mxu0
    %v268 = vadd.f32 0.0, %v267
    %269 = vmatmul.bf16.gmra.mxu0 %v171
    %v270 = vpop.f32.mrf.mxu0
    %v271 = vadd.f32 0.0, %v270
    %v272 = vpop.f32.mrf.mxu0
    %v273 = vadd.f32 0.0, %v272
    %274 = vmatmul.bf16.gmra.mxu0 %v174
    %v275 = vpop.f32.mrf.mxu0
    %v276 = vadd.f32 0.0, %v275
    %v277 = vpop.f32.mrf.mxu0
    %v278 = vadd.f32 0.0, %v277
    %279 = vdwg.mxu0
    %280 = vxpose.xlu0.b32.start [1/16] %v186, 128
    %281 = vxpose.xlu0.b32.cont [2/16] %v188, 128
    %282 = vxpose.xlu0.b32.cont [3/16] 0.0, 128
    %283 = vxpose.xlu0.b32.cont [4/16] 0.0, 128
    %284 = vxpose.xlu0.b32.cont [5/16] 0.0, 128
    %285 = vxpose.xlu0.b32.cont [6/16] 0.0, 128
    %286 = vxpose.xlu0.b32.cont [7/16] 0.0, 128
    %287 = vxpose.xlu0.b32.cont [8/16] 0.0, 128
    %288 = vxpose.xlu0.b32.cont [9/16] 0.0, 128
    %289 = vxpose.xlu0.b32.cont [10/16] 0.0, 128
    %290 = vxpose.xlu0.b32.cont [11/16] 0.0, 128
    %291 = vxpose.xlu0.b32.cont [12/16] 0.0, 128
    %292 = vxpose.xlu0.b32.cont [13/16] 0.0, 128
    %293 = vxpose.xlu0.b32.cont [14/16] 0.0, 128
    %294 = vxpose.xlu0.b32.cont [15/16] 0.0, 128
    %295 = vxpose.xlu0.b32.end [16/16] 0.0, 128
    %v296 = vpop.trf.xlu0
    %v297 = vpop.trf.xlu0
    %v298 = vpop.trf.xlu0
    %v299 = vpop.trf.xlu0
    %v300 = vpop.trf.xlu0
    %v301 = vpop.trf.xlu0
    %v302 = vpop.trf.xlu0
    %v303 = vpop.trf.xlu0
    %v304 = vpop.trf.xlu0
    %v305 = vpop.trf.xlu0
    %v306 = vpop.trf.xlu0
    %v307 = vpop.trf.xlu0
    %v308 = vpop.trf.xlu0
    %v309 = vpop.trf.xlu0
    %v310 = vpop.trf.xlu0
    %v311 = vpop.trf.xlu0
    %312 = vxpose.xlu0.b32.start [1/16] %v191, 128
    %313 = vxpose.xlu0.b32.cont [2/16] %v193, 128
    %314 = vxpose.xlu0.b32.cont [3/16] 0.0, 128
    %315 = vxpose.xlu0.b32.cont [4/16] 0.0, 128
    %316 = vxpose.xlu0.b32.cont [5/16] 0.0, 128
    %317 = vxpose.xlu0.b32.cont [6/16] 0.0, 128
    %318 = vxpose.xlu0.b32.cont [7/16] 0.0, 128
    %319 = vxpose.xlu0.b32.cont [8/16] 0.0, 128
    %320 = vxpose.xlu0.b32.cont [9/16] 0.0, 128
    %321 = vxpose.xlu0.b32.cont [10/16] 0.0, 128
    %322 = vxpose.xlu0.b32.cont [11/16] 0.0, 128
    %323 = vxpose.xlu0.b32.cont [12/16] 0.0, 128
    %324 = vxpose.xlu0.b32.cont [13/16] 0.0, 128
    %325 = vxpose.xlu0.b32.cont [14/16] 0.0, 128
    %326 = vxpose.xlu0.b32.cont [15/16] 0.0, 128
    %327 = vxpose.xlu0.b32.end [16/16] 0.0, 128
    %v328 = vpop.trf.xlu0
    %v329 = vpop.trf.xlu0
    %v330 = vpop.trf.xlu0
    %v331 = vpop.trf.xlu0
    %v332 = vpop.trf.xlu0
    %v333 = vpop.trf.xlu0
    %v334 = vpop.trf.xlu0
    %v335 = vpop.trf.xlu0
    %v336 = vpop.trf.xlu0
    %v337 = vpop.trf.xlu0
    %v338 = vpop.trf.xlu0
    %v339 = vpop.trf.xlu0
    %v340 = vpop.trf.xlu0
    %v341 = vpop.trf.xlu0
    %v342 = vpop.trf.xlu0
    %v343 = vpop.trf.xlu0
    %344 = vxpose.xlu0.b32.start [1/16] %v196, 128
    %345 = vxpose.xlu0.b32.cont [2/16] %v198, 128
    %346 = vxpose.xlu0.b32.cont [3/16] 0.0, 128
    %347 = vxpose.xlu0.b32.cont [4/16] 0.0, 128
    %348 = vxpose.xlu0.b32.cont [5/16] 0.0, 128
    %349 = vxpose.xlu0.b32.cont [6/16] 0.0, 128
    %350 = vxpose.xlu0.b32.cont [7/16] 0.0, 128
    %351 = vxpose.xlu0.b32.cont [8/16] 0.0, 128
    %352 = vxpose.xlu0.b32.cont [9/16] 0.0, 128
    %353 = vxpose.xlu0.b32.cont [10/16] 0.0, 128
    %354 = vxpose.xlu0.b32.cont [11/16] 0.0, 128
    %355 = vxpose.xlu0.b32.cont [12/16] 0.0, 128
    %356 = vxpose.xlu0.b32.cont [13/16] 0.0, 128
    %357 = vxpose.xlu0.b32.cont [14/16] 0.0, 128
    %358 = vxpose.xlu0.b32.cont [15/16] 0.0, 128
    %359 = vxpose.xlu0.b32.end [16/16] 0.0, 128
    %v360 = vpop.trf.xlu0
    %v361 = vpop.trf.xlu0
    %v362 = vpop.trf.xlu0
    %v363 = vpop.trf.xlu0
    %v364 = vpop.trf.xlu0
    %v365 = vpop.trf.xlu0
    %v366 = vpop.trf.xlu0
    %v367 = vpop.trf.xlu0
    %v368 = vpop.trf.xlu0
    %v369 = vpop.trf.xlu0
    %v370 = vpop.trf.xlu0
    %v371 = vpop.trf.xlu0
    %v372 = vpop.trf.xlu0
    %v373 = vpop.trf.xlu0
    %v374 = vpop.trf.xlu0
    %v375 = vpop.trf.xlu0
    %376 = vxpose.xlu0.b32.start [1/16] %v201, 128
    %377 = vxpose.xlu0.b32.cont [2/16] %v203, 128
    %378 = vxpose.xlu0.b32.cont [3/16] 0.0, 128
    %379 = vxpose.xlu0.b32.cont [4/16] 0.0, 128
    %380 = vxpose.xlu0.b32.cont [5/16] 0.0, 128
    %381 = vxpose.xlu0.b32.cont [6/16] 0.0, 128
    %382 = vxpose.xlu0.b32.cont [7/16] 0.0, 128
    %383 = vxpose.xlu0.b32.cont [8/16] 0.0, 128
    %384 = vxpose.xlu0.b32.cont [9/16] 0.0, 128
    %385 = vxpose.xlu0.b32.cont [10/16] 0.0, 128
    %386 = vxpose.xlu0.b32.cont [11/16] 0.0, 128
    %387 = vxpose.xlu0.b32.cont [12/16] 0.0, 128
    %388 = vxpose.xlu0.b32.cont [13/16] 0.0, 128
    %389 = vxpose.xlu0.b32.cont [14/16] 0.0, 128
    %390 = vxpose.xlu0.b32.cont [15/16] 0.0, 128
    %391 = vxpose.xlu0.b32.end [16/16] 0.0, 128
    %v392 = vpop.trf.xlu0
    %v393 = vpop.trf.xlu0
    %v394 = vpop.trf.xlu0
    %v395 = vpop.trf.xlu0
    %v396 = vpop.trf.xlu0
    %v397 = vpop.trf.xlu0
    %v398 = vpop.trf.xlu0
    %v399 = vpop.trf.xlu0
    %v400 = vpop.trf.xlu0
    %v401 = vpop.trf.xlu0
    %v402 = vpop.trf.xlu0
    %v403 = vpop.trf.xlu0
    %v404 = vpop.trf.xlu0
    %v405 = vpop.trf.xlu0
    %v406 = vpop.trf.xlu0
    %v407 = vpop.trf.xlu0
    %408 = vxpose.xlu0.b32.start [1/16] %v206, 128
    %409 = vxpose.xlu0.b32.cont [2/16] %v208, 128
    %410 = vxpose.xlu0.b32.cont [3/16] 0.0, 128
    %411 = vxpose.xlu0.b32.cont [4/16] 0.0, 128
    %412 = vxpose.xlu0.b32.cont [5/16] 0.0, 128
    %413 = vxpose.xlu0.b32.cont [6/16] 0.0, 128
    %414 = vxpose.xlu0.b32.cont [7/16] 0.0, 128
    %415 = vxpose.xlu0.b32.cont [8/16] 0.0, 128
    %416 = vxpose.xlu0.b32.cont [9/16] 0.0, 128
    %417 = vxpose.xlu0.b32.cont [10/16] 0.0, 128
    %418 = vxpose.xlu0.b32.cont [11/16] 0.0, 128
    %419 = vxpose.xlu0.b32.cont [12/16] 0.0, 128
    %420 = vxpose.xlu0.b32.cont [13/16] 0.0, 128
    %421 = vxpose.xlu0.b32.cont [14/16] 0.0, 128
    %422 = vxpose.xlu0.b32.cont [15/16] 0.0, 128
    %423 = vxpose.xlu0.b32.end [16/16] 0.0, 128
    %v424 = vpop.trf.xlu0
    %v425 = vpop.trf.xlu0
    %v426 = vpop.trf.xlu0
    %v427 = vpop.trf.xlu0
    %v428 = vpop.trf.xlu0
    %v429 = vpop.trf.xlu0
    %v430 = vpop.trf.xlu0
    %v431 = vpop.trf.xlu0
    %v432 = vpop.trf.xlu0
    %v433 = vpop.trf.xlu0
    %v434 = vpop.trf.xlu0
    %v435 = vpop.trf.xlu0
    %v436 = vpop.trf.xlu0
    %v437 = vpop.trf.xlu0
    %v438 = vpop.trf.xlu0
    %v439 = vpop.trf.xlu0
    %440 = vxpose.xlu0.b32.start [1/16] %v211, 128
    %441 = vxpose.xlu0.b32.cont [2/16] %v213, 128
    %442 = vxpose.xlu0.b32.cont [3/16] 0.0, 128
    %443 = vxpose.xlu0.b32.cont [4/16] 0.0, 128
    %444 = vxpose.xlu0.b32.cont [5/16] 0.0, 128
    %445 = vxpose.xlu0.b32.cont [6/16] 0.0, 128
    %446 = vxpose.xlu0.b32.cont [7/16] 0.0, 128
    %447 = vxpose.xlu0.b32.cont [8/16] 0.0, 128
    %448 = vxpose.xlu0.b32.cont [9/16] 0.0, 128
    %449 = vxpose.xlu0.b32.cont [10/16] 0.0, 128
    %450 = vxpose.xlu0.b32.cont [11/16] 0.0, 128
    %451 = vxpose.xlu0.b32.cont [12/16] 0.0, 128
    %452 = vxpose.xlu0.b32.cont [13/16] 0.0, 128
    %453 = vxpose.xlu0.b32.cont [14/16] 0.0, 128
    %454 = vxpose.xlu0.b32.cont [15/16] 0.0, 128
    %455 = vxpose.xlu0.b32.end [16/16] 0.0, 128
    %v456 = vpop.trf.xlu0
    %v457 = vpop.trf.xlu0
    %v458 = vpop.trf.xlu0
    %v459 = vpop.trf.xlu0
    %v460 = vpop.trf.xlu0
    %v461 = vpop.trf.xlu0
    %v462 = vpop.trf.xlu0
    %v463 = vpop.trf.xlu0
    %v464 = vpop.trf.xlu0
    %v465 = vpop.trf.xlu0
    %v466 = vpop.trf.xlu0
    %v467 = vpop.trf.xlu0
    %v468 = vpop.trf.xlu0
    %v469 = vpop.trf.xlu0
    %v470 = vpop.trf.xlu0
    %v471 = vpop.trf.xlu0
    %472 = vxpose.xlu0.b32.start [1/16] %v216, 128
    %473 = vxpose.xlu0.b32.cont [2/16] %v218, 128
    %474 = vxpose.xlu0.b32.cont [3/16] 0.0, 128
    %475 = vxpose.xlu0.b32.cont [4/16] 0.0, 128
    %476 = vxpose.xlu0.b32.cont [5/16] 0.0, 128
    %477 = vxpose.xlu0.b32.cont [6/16] 0.0, 128
    %478 = vxpose.xlu0.b32.cont [7/16] 0.0, 128
    %479 = vxpose.xlu0.b32.cont [8/16] 0.0, 128
    %480 = vxpose.xlu0.b32.cont [9/16] 0.0, 128
    %481 = vxpose.xlu0.b32.cont [10/16] 0.0, 128
    %482 = vxpose.xlu0.b32.cont [11/16] 0.0, 128
    %483 = vxpose.xlu0.b32.cont [12/16] 0.0, 128
    %484 = vxpose.xlu0.b32.cont [13/16] 0.0, 128
    %485 = vxpose.xlu0.b32.cont [14/16] 0.0, 128
    %486 = vxpose.xlu0.b32.cont [15/16] 0.0, 128
    %487 = vxpose.xlu0.b32.end [16/16] 0.0, 128
    %v488 = vpop.trf.xlu0
    %v489 = vpop.trf.xlu0
    %v490 = vpop.trf.xlu0
    %v491 = vpop.trf.xlu0
    %v492 = vpop.trf.xlu0
    %v493 = vpop.trf.xlu0
    %v494 = vpop.trf.xlu0
    %v495 = vpop.trf.xlu0
    %v496 = vpop.trf.xlu0
    %v497 = vpop.trf.xlu0
    %v498 = vpop.trf.xlu0
    %v499 = vpop.trf.xlu0
    %v500 = vpop.trf.xlu0
    %v501 = vpop.trf.xlu0
    %v502 = vpop.trf.xlu0
    %v503 = vpop.trf.xlu0
    %504 = vxpose.xlu0.b32.start [1/16] %v221, 128
    %505 = vxpose.xlu0.b32.cont [2/16] %v223, 128
    %506 = vxpose.xlu0.b32.cont [3/16] 0.0, 128
    %507 = vxpose.xlu0.b32.cont [4/16] 0.0, 128
    %508 = vxpose.xlu0.b32.cont [5/16] 0.0, 128
    %509 = vxpose.xlu0.b32.cont [6/16] 0.0, 128
    %510 = vxpose.xlu0.b32.cont [7/16] 0.0, 128
    %511 = vxpose.xlu0.b32.cont [8/16] 0.0, 128
    %512 = vxpose.xlu0.b32.cont [9/16] 0.0, 128
    %513 = vxpose.xlu0.b32.cont [10/16] 0.0, 128
    %514 = vxpose.xlu0.b32.cont [11/16] 0.0, 128
    %515 = vxpose.xlu0.b32.cont [12/16] 0.0, 128
    %516 = vxpose.xlu0.b32.cont [13/16] 0.0, 128
    %517 = vxpose.xlu0.b32.cont [14/16] 0.0, 128
    %518 = vxpose.xlu0.b32.cont [15/16] 0.0, 128
    %519 = vxpose.xlu0.b32.end [16/16] 0.0, 128
    %v520 = vpop.trf.xlu0
    %v521 = vpop.trf.xlu0
    %v522 = vpop.trf.xlu0
    %v523 = vpop.trf.xlu0
    %v524 = vpop.trf.xlu0
    %v525 = vpop.trf.xlu0
    %v526 = vpop.trf.xlu0
    %v527 = vpop.trf.xlu0
    %v528 = vpop.trf.xlu0
    %v529 = vpop.trf.xlu0
    %v530 = vpop.trf.xlu0
    %v531 = vpop.trf.xlu0
    %v532 = vpop.trf.xlu0
    %v533 = vpop.trf.xlu0
    %v534 = vpop.trf.xlu0
    %v535 = vpop.trf.xlu0
    %v536 = vpack.c.bf16 %v297, %v296
    %v537 = vpack.c.bf16 %v329, %v328
    %v538 = vpack.c.bf16 %v361, %v360
    %v539 = vpack.c.bf16 %v393, %v392
    %v540 = vpack.c.bf16 %v425, %v424
    %v541 = vpack.c.bf16 %v457, %v456
    %v542 = vpack.c.bf16 %v489, %v488
    %v543 = vpack.c.bf16 %v521, %v520
    %544 = vxpose.xlu0.b32.start [1/16] %v241, 128
    %545 = vxpose.xlu0.b32.cont [2/16] %v243, 128
    %546 = vxpose.xlu0.b32.cont [3/16] 0.0, 128
    %547 = vxpose.xlu0.b32.cont [4/16] 0.0, 128
    %548 = vxpose.xlu0.b32.cont [5/16] 0.0, 128
    %549 = vxpose.xlu0.b32.cont [6/16] 0.0, 128
    %550 = vxpose.xlu0.b32.cont [7/16] 0.0, 128
    %551 = vxpose.xlu0.b32.cont [8/16] 0.0, 128
    %552 = vxpose.xlu0.b32.cont [9/16] 0.0, 128
    %553 = vxpose.xlu0.b32.cont [10/16] 0.0, 128
    %554 = vxpose.xlu0.b32.cont [11/16] 0.0, 128
    %555 = vxpose.xlu0.b32.cont [12/16] 0.0, 128
    %556 = vxpose.xlu0.b32.cont [13/16] 0.0, 128
    %557 = vxpose.xlu0.b32.cont [14/16] 0.0, 128
    %558 = vxpose.xlu0.b32.cont [15/16] 0.0, 128
    %559 = vxpose.xlu0.b32.end [16/16] 0.0, 128
    %v560 = vpop.trf.xlu0
    %v561 = vpop.trf.xlu0
    %v562 = vpop.trf.xlu0
    %v563 = vpop.trf.xlu0
    %v564 = vpop.trf.xlu0
    %v565 = vpop.trf.xlu0
    %v566 = vpop.trf.xlu0
    %v567 = vpop.trf.xlu0
    %v568 = vpop.trf.xlu0
    %v569 = vpop.trf.xlu0
    %v570 = vpop.trf.xlu0
    %v571 = vpop.trf.xlu0
    %v572 = vpop.trf.xlu0
    %v573 = vpop.trf.xlu0
    %v574 = vpop.trf.xlu0
    %v575 = vpop.trf.xlu0
    %576 = vxpose.xlu0.b32.start [1/16] %v246, 128
    %577 = vxpose.xlu0.b32.cont [2/16] %v248, 128
    %578 = vxpose.xlu0.b32.cont [3/16] 0.0, 128
    %579 = vxpose.xlu0.b32.cont [4/16] 0.0, 128
    %580 = vxpose.xlu0.b32.cont [5/16] 0.0, 128
    %581 = vxpose.xlu0.b32.cont [6/16] 0.0, 128
    %582 = vxpose.xlu0.b32.cont [7/16] 0.0, 128
    %583 = vxpose.xlu0.b32.cont [8/16] 0.0, 128
    %584 = vxpose.xlu0.b32.cont [9/16] 0.0, 128
    %585 = vxpose.xlu0.b32.cont [10/16] 0.0, 128
    %586 = vxpose.xlu0.b32.cont [11/16] 0.0, 128
    %587 = vxpose.xlu0.b32.cont [12/16] 0.0, 128
    %588 = vxpose.xlu0.b32.cont [13/16] 0.0, 128
    %589 = vxpose.xlu0.b32.cont [14/16] 0.0, 128
    %590 = vxpose.xlu0.b32.cont [15/16] 0.0, 128
    %591 = vxpose.xlu0.b32.end [16/16] 0.0, 128
    %v592 = vpop.trf.xlu0
    %v593 = vpop.trf.xlu0
    %v594 = vpop.trf.xlu0
    %v595 = vpop.trf.xlu0
    %v596 = vpop.trf.xlu0
    %v597 = vpop.trf.xlu0
    %v598 = vpop.trf.xlu0
    %v599 = vpop.trf.xlu0
    %v600 = vpop.trf.xlu0
    %v601 = vpop.trf.xlu0
    %v602 = vpop.trf.xlu0
    %v603 = vpop.trf.xlu0
    %v604 = vpop.trf.xlu0
    %v605 = vpop.trf.xlu0
    %v606 = vpop.trf.xlu0
    %v607 = vpop.trf.xlu0
    %608 = vxpose.xlu0.b32.start [1/16] %v251, 128
    %609 = vxpose.xlu0.b32.cont [2/16] %v253, 128
    %610 = vxpose.xlu0.b32.cont [3/16] 0.0, 128
    %611 = vxpose.xlu0.b32.cont [4/16] 0.0, 128
    %612 = vxpose.xlu0.b32.cont [5/16] 0.0, 128
    %613 = vxpose.xlu0.b32.cont [6/16] 0.0, 128
    %614 = vxpose.xlu0.b32.cont [7/16] 0.0, 128
    %615 = vxpose.xlu0.b32.cont [8/16] 0.0, 128
    %616 = vxpose.xlu0.b32.cont [9/16] 0.0, 128
    %617 = vxpose.xlu0.b32.cont [10/16] 0.0, 128
    %618 = vxpose.xlu0.b32.cont [11/16] 0.0, 128
    %619 = vxpose.xlu0.b32.cont [12/16] 0.0, 128
    %620 = vxpose.xlu0.b32.cont [13/16] 0.0, 128
    %621 = vxpose.xlu0.b32.cont [14/16] 0.0, 128
    %622 = vxpose.xlu0.b32.cont [15/16] 0.0, 128
    %623 = vxpose.xlu0.b32.end [16/16] 0.0, 128
    %v624 = vpop.trf.xlu0
    %v625 = vpop.trf.xlu0
    %v626 = vpop.trf.xlu0
    %v627 = vpop.trf.xlu0
    %v628 = vpop.trf.xlu0
    %v629 = vpop.trf.xlu0
    %v630 = vpop.trf.xlu0
    %v631 = vpop.trf.xlu0
    %v632 = vpop.trf.xlu0
    %v633 = vpop.trf.xlu0
    %v634 = vpop.trf.xlu0
    %v635 = vpop.trf.xlu0
    %v636 = vpop.trf.xlu0
    %v637 = vpop.trf.xlu0
    %v638 = vpop.trf.xlu0
    %v639 = vpop.trf.xlu0
    %640 = vxpose.xlu0.b32.start [1/16] %v256, 128
    %641 = vxpose.xlu0.b32.cont [2/16] %v258, 128
    %642 = vxpose.xlu0.b32.cont [3/16] 0.0, 128
    %643 = vxpose.xlu0.b32.cont [4/16] 0.0, 128
    %644 = vxpose.xlu0.b32.cont [5/16] 0.0, 128
    %645 = vxpose.xlu0.b32.cont [6/16] 0.0, 128
    %646 = vxpose.xlu0.b32.cont [7/16] 0.0, 128
    %647 = vxpose.xlu0.b32.cont [8/16] 0.0, 128
    %648 = vxpose.xlu0.b32.cont [9/16] 0.0, 128
    %649 = vxpose.xlu0.b32.cont [10/16] 0.0, 128
    %650 = vxpose.xlu0.b32.cont [11/16] 0.0, 128
    %651 = vxpose.xlu0.b32.cont [12/16] 0.0, 128
    %652 = vxpose.xlu0.b32.cont [13/16] 0.0, 128
    %653 = vxpose.xlu0.b32.cont [14/16] 0.0, 128
    %654 = vxpose.xlu0.b32.cont [15/16] 0.0, 128
    %655 = vxpose.xlu0.b32.end [16/16] 0.0, 128
    %v656 = vpop.trf.xlu0
    %v657 = vpop.trf.xlu0
    %v658 = vpop.trf.xlu0
    %v659 = vpop.trf.xlu0
    %v660 = vpop.trf.xlu0
    %v661 = vpop.trf.xlu0
    %v662 = vpop.trf.xlu0
    %v663 = vpop.trf.xlu0
    %v664 = vpop.trf.xlu0
    %v665 = vpop.trf.xlu0
    %v666 = vpop.trf.xlu0
    %v667 = vpop.trf.xlu0
    %v668 = vpop.trf.xlu0
    %v669 = vpop.trf.xlu0
    %v670 = vpop.trf.xlu0
    %v671 = vpop.trf.xlu0
    %672 = vxpose.xlu0.b32.start [1/16] %v261, 128
    %673 = vxpose.xlu0.b32.cont [2/16] %v263, 128
    %674 = vxpose.xlu0.b32.cont [3/16] 0.0, 128
    %675 = vxpose.xlu0.b32.cont [4/16] 0.0, 128
    %676 = vxpose.xlu0.b32.cont [5/16] 0.0, 128
    %677 = vxpose.xlu0.b32.cont [6/16] 0.0, 128
    %678 = vxpose.xlu0.b32.cont [7/16] 0.0, 128
    %679 = vxpose.xlu0.b32.cont [8/16] 0.0, 128
    %680 = vxpose.xlu0.b32.cont [9/16] 0.0, 128
    %681 = vxpose.xlu0.b32.cont [10/16] 0.0, 128
    %682 = vxpose.xlu0.b32.cont [11/16] 0.0, 128
    %683 = vxpose.xlu0.b32.cont [12/16] 0.0, 128
    %684 = vxpose.xlu0.b32.cont [13/16] 0.0, 128
    %685 = vxpose.xlu0.b32.cont [14/16] 0.0, 128
    %686 = vxpose.xlu0.b32.cont [15/16] 0.0, 128
    %687 = vxpose.xlu0.b32.end [16/16] 0.0, 128
    %v688 = vpop.trf.xlu0
    %v689 = vpop.trf.xlu0
    %v690 = vpop.trf.xlu0
    %v691 = vpop.trf.xlu0
    %v692 = vpop.trf.xlu0
    %v693 = vpop.trf.xlu0
    %v694 = vpop.trf.xlu0
    %v695 = vpop.trf.xlu0
    %v696 = vpop.trf.xlu0
    %v697 = vpop.trf.xlu0
    %v698 = vpop.trf.xlu0
    %v699 = vpop.trf.xlu0
    %v700 = vpop.trf.xlu0
    %v701 = vpop.trf.xlu0
    %v702 = vpop.trf.xlu0
    %v703 = vpop.trf.xlu0
    %704 = vxpose.xlu0.b32.start [1/16] %v266, 128
    %705 = vxpose.xlu0.b32.cont [2/16] %v268, 128
    %706 = vxpose.xlu0.b32.cont [3/16] 0.0, 128
    %707 = vxpose.xlu0.b32.cont [4/16] 0.0, 128
    %708 = vxpose.xlu0.b32.cont [5/16] 0.0, 128
    %709 = vxpose.xlu0.b32.cont [6/16] 0.0, 128
    %710 = vxpose.xlu0.b32.cont [7/16] 0.0, 128
    %711 = vxpose.xlu0.b32.cont [8/16] 0.0, 128
    %712 = vxpose.xlu0.b32.cont [9/16] 0.0, 128
    %713 = vxpose.xlu0.b32.cont [10/16] 0.0, 128
    %714 = vxpose.xlu0.b32.cont [11/16] 0.0, 128
    %715 = vxpose.xlu0.b32.cont [12/16] 0.0, 128
    %716 = vxpose.xlu0.b32.cont [13/16] 0.0, 128
    %717 = vxpose.xlu0.b32.cont [14/16] 0.0, 128
    %718 = vxpose.xlu0.b32.cont [15/16] 0.0, 128
    %719 = vxpose.xlu0.b32.end [16/16] 0.0, 128
    %v720 = vpop.trf.xlu0
    %v721 = vpop.trf.xlu0
    %v722 = vpop.trf.xlu0
    %v723 = vpop.trf.xlu0
    %v724 = vpop.trf.xlu0
    %v725 = vpop.trf.xlu0
    %v726 = vpop.trf.xlu0
    %v727 = vpop.trf.xlu0
    %v728 = vpop.trf.xlu0
    %v729 = vpop.trf.xlu0
    %v730 = vpop.trf.xlu0
    %v731 = vpop.trf.xlu0
    %v732 = vpop.trf.xlu0
    %v733 = vpop.trf.xlu0
    %v734 = vpop.trf.xlu0
    %v735 = vpop.trf.xlu0
    %736 = vxpose.xlu0.b32.start [1/16] %v271, 128
    %737 = vxpose.xlu0.b32.cont [2/16] %v273, 128
    %738 = vxpose.xlu0.b32.cont [3/16] 0.0, 128
    %739 = vxpose.xlu0.b32.cont [4/16] 0.0, 128
    %740 = vxpose.xlu0.b32.cont [5/16] 0.0, 128
    %741 = vxpose.xlu0.b32.cont [6/16] 0.0, 128
    %742 = vxpose.xlu0.b32.cont [7/16] 0.0, 128
    %743 = vxpose.xlu0.b32.cont [8/16] 0.0, 128
    %744 = vxpose.xlu0.b32.cont [9/16] 0.0, 128
    %745 = vxpose.xlu0.b32.cont [10/16] 0.0, 128
    %746 = vxpose.xlu0.b32.cont [11/16] 0.0, 128
    %747 = vxpose.xlu0.b32.cont [12/16] 0.0, 128
    %748 = vxpose.xlu0.b32.cont [13/16] 0.0, 128
    %749 = vxpose.xlu0.b32.cont [14/16] 0.0, 128
    %750 = vxpose.xlu0.b32.cont [15/16] 0.0, 128
    %751 = vxpose.xlu0.b32.end [16/16] 0.0, 128
    %v752 = vpop.trf.xlu0
    %v753 = vpop.trf.xlu0
    %v754 = vpop.trf.xlu0
    %v755 = vpop.trf.xlu0
    %v756 = vpop.trf.xlu0
    %v757 = vpop.trf.xlu0
    %v758 = vpop.trf.xlu0
    %v759 = vpop.trf.xlu0
    %v760 = vpop.trf.xlu0
    %v761 = vpop.trf.xlu0
    %v762 = vpop.trf.xlu0
    %v763 = vpop.trf.xlu0
    %v764 = vpop.trf.xlu0
    %v765 = vpop.trf.xlu0
    %v766 = vpop.trf.xlu0
    %v767 = vpop.trf.xlu0
    %768 = vxpose.xlu0.b32.start [1/16] %v276, 128
    %769 = vxpose.xlu0.b32.cont [2/16] %v278, 128
    %770 = vxpose.xlu0.b32.cont [3/16] 0.0, 128
    %771 = vxpose.xlu0.b32.cont [4/16] 0.0, 128
    %772 = vxpose.xlu0.b32.cont [5/16] 0.0, 128
    %773 = vxpose.xlu0.b32.cont [6/16] 0.0, 128
    %774 = vxpose.xlu0.b32.cont [7/16] 0.0, 128
    %775 = vxpose.xlu0.b32.cont [8/16] 0.0, 128
    %776 = vxpose.xlu0.b32.cont [9/16] 0.0, 128
    %777 = vxpose.xlu0.b32.cont [10/16] 0.0, 128
    %778 = vxpose.xlu0.b32.cont [11/16] 0.0, 128
    %779 = vxpose.xlu0.b32.cont [12/16] 0.0, 128
    %780 = vxpose.xlu0.b32.cont [13/16] 0.0, 128
    %781 = vxpose.xlu0.b32.cont [14/16] 0.0, 128
    %782 = vxpose.xlu0.b32.cont [15/16] 0.0, 128
    %783 = vxpose.xlu0.b32.end [16/16] 0.0, 128
    %v784 = vpop.trf.xlu0
    %v785 = vpop.trf.xlu0
    %v786 = vpop.trf.xlu0
    %v787 = vpop.trf.xlu0
    %v788 = vpop.trf.xlu0
    %v789 = vpop.trf.xlu0
    %v790 = vpop.trf.xlu0
    %v791 = vpop.trf.xlu0
    %v792 = vpop.trf.xlu0
    %v793 = vpop.trf.xlu0
    %v794 = vpop.trf.xlu0
    %v795 = vpop.trf.xlu0
    %v796 = vpop.trf.xlu0
    %v797 = vpop.trf.xlu0
    %v798 = vpop.trf.xlu0
    %v799 = vpop.trf.xlu0
    %v800 = vpack.c.bf16 %v561, %v560
    %v801 = vpack.c.bf16 %v593, %v592
    %v802 = vpack.c.bf16 %v625, %v624
    %v803 = vpack.c.bf16 %v657, %v656
    %v804 = vpack.c.bf16 %v689, %v688
    %v805 = vpack.c.bf16 %v721, %v720
    %v806 = vpack.c.bf16 %v753, %v752
    %v807 = vpack.c.bf16 %v785, %v784
    %v809 = vsel %vm151, %v536, 0
    %v812 = vsel %vm151, %v537, 0
    %v815 = vsel %vm151, %v538, 0
    %v818 = vsel %vm151, %v539, 0
    %v821 = vsel %vm151, %v540, 0
    %v824 = vsel %vm151, %v541, 0
    %v827 = vsel %vm151, %v542, 0
    %v830 = vsel %vm151, %v543, 0
    %832 = vmatpush.bf16.msra.mxu0 0
    %833 = vmatpush.bf16.msra.mxu0 0
    %834 = vmatpush.bf16.msra.mxu0 0
    %835 = vmatpush.bf16.msra.mxu0 0
    %836 = vmatpush.bf16.msra.mxu0 0
    %837 = vmatpush.bf16.msra.mxu0 0
    %838 = vmatpush.bf16.msra.mxu0 0
    %839 = vmatpush.bf16.msra.mxu0 %v149
    %840 = vmatmul.bf16.gmra.mxu0 %v809
    %v841 = vpop.f32.mrf.mxu0
    %v842 = vadd.f32 0.0, %v841
    %v843 = vpop.f32.mrf.mxu0
    %v844 = vadd.f32 0.0, %v843
    %845 = vmatmul.bf16.gmra.mxu0 %v812
    %v846 = vpop.f32.mrf.mxu0
    %v847 = vadd.f32 0.0, %v846
    %v848 = vpop.f32.mrf.mxu0
    %v849 = vadd.f32 0.0, %v848
    %850 = vmatmul.bf16.gmra.mxu0 %v815
    %v851 = vpop.f32.mrf.mxu0
    %v852 = vadd.f32 0.0, %v851
    %v853 = vpop.f32.mrf.mxu0
    %v854 = vadd.f32 0.0, %v853
    %855 = vmatmul.bf16.gmra.mxu0 %v818
    %v856 = vpop.f32.mrf.mxu0
    %v857 = vadd.f32 0.0, %v856
    %v858 = vpop.f32.mrf.mxu0
    %v859 = vadd.f32 0.0, %v858
    %860 = vmatmul.bf16.gmra.mxu0 %v821
    %v861 = vpop.f32.mrf.mxu0
    %v862 = vadd.f32 0.0, %v861
    %v863 = vpop.f32.mrf.mxu0
    %v864 = vadd.f32 0.0, %v863
    %865 = vmatmul.bf16.gmra.mxu0 %v824
    %v866 = vpop.f32.mrf.mxu0
    %v867 = vadd.f32 0.0, %v866
    %v868 = vpop.f32.mrf.mxu0
    %v869 = vadd.f32 0.0, %v868
    %870 = vmatmul.bf16.gmra.mxu0 %v827
    %v871 = vpop.f32.mrf.mxu0
    %v872 = vadd.f32 0.0, %v871
    %v873 = vpop.f32.mrf.mxu0
    %v874 = vadd.f32 0.0, %v873
    %875 = vmatmul.bf16.gmra.mxu0 %v830
    %v876 = vpop.f32.mrf.mxu0
    %v877 = vadd.f32 0.0, %v876
    %v878 = vpop.f32.mrf.mxu0
    %v879 = vadd.f32 0.0, %v878
    %880 = vdwg.mxu0
    %v882 = vsel %vm151, %v800, 0
    %v885 = vsel %vm151, %v801, 0
    %v888 = vsel %vm151, %v802, 0
    %v891 = vsel %vm151, %v803, 0
    %v894 = vsel %vm151, %v804, 0
    %v897 = vsel %vm151, %v805, 0
    %v900 = vsel %vm151, %v806, 0
    %v903 = vsel %vm151, %v807, 0
    %905 = vmatpush.bf16.msra.mxu0 0
    %906 = vmatpush.bf16.msra.mxu0 0
    %907 = vmatpush.bf16.msra.mxu0 0
    %908 = vmatpush.bf16.msra.mxu0 0
    %909 = vmatpush.bf16.msra.mxu0 0
    %910 = vmatpush.bf16.msra.mxu0 0
    %911 = vmatpush.bf16.msra.mxu0 0
    %912 = vmatpush.bf16.msra.mxu0 %v229
    %913 = vmatmul.bf16.gmra.mxu0 %v882
    %v914 = vpop.f32.mrf.mxu0
    %v915 = vadd.f32 0.0, %v914
    %v916 = vpop.f32.mrf.mxu0
    %v917 = vadd.f32 0.0, %v916
    %918 = vmatmul.bf16.gmra.mxu0 %v885
    %v919 = vpop.f32.mrf.mxu0
    %v920 = vadd.f32 0.0, %v919
    %v921 = vpop.f32.mrf.mxu0
    %v922 = vadd.f32 0.0, %v921
    %923 = vmatmul.bf16.gmra.mxu0 %v888
    %v924 = vpop.f32.mrf.mxu0
    %v925 = vadd.f32 0.0, %v924
    %v926 = vpop.f32.mrf.mxu0
    %v927 = vadd.f32 0.0, %v926
    %928 = vmatmul.bf16.gmra.mxu0 %v891
    %v929 = vpop.f32.mrf.mxu0
    %v930 = vadd.f32 0.0, %v929
    %v931 = vpop.f32.mrf.mxu0
    %v932 = vadd.f32 0.0, %v931
    %933 = vmatmul.bf16.gmra.mxu0 %v894
    %v934 = vpop.f32.mrf.mxu0
    %v935 = vadd.f32 0.0, %v934
    %v936 = vpop.f32.mrf.mxu0
    %v937 = vadd.f32 0.0, %v936
    %938 = vmatmul.bf16.gmra.mxu0 %v897
    %v939 = vpop.f32.mrf.mxu0
    %v940 = vadd.f32 0.0, %v939
    %v941 = vpop.f32.mrf.mxu0
    %v942 = vadd.f32 0.0, %v941
    %943 = vmatmul.bf16.gmra.mxu0 %v900
    %v944 = vpop.f32.mrf.mxu0
    %v945 = vadd.f32 0.0, %v944
    %v946 = vpop.f32.mrf.mxu0
    %v947 = vadd.f32 0.0, %v946
    %948 = vmatmul.bf16.gmra.mxu0 %v903
    %v949 = vpop.f32.mrf.mxu0
    %v950 = vadd.f32 0.0, %v949
    %v951 = vpop.f32.mrf.mxu0
    %v952 = vadd.f32 0.0, %v951
    %953 = vdwg.mxu0
    %v954 = vsub.f32 %v842, %v915
    %v955 = vsub.f32 %v844, %v917
    %v956 = vsub.f32 %v847, %v920
    %v957 = vsub.f32 %v849, %v922
    %v958 = vsub.f32 %v852, %v925
    %v959 = vsub.f32 %v854, %v927
    %v960 = vsub.f32 %v857, %v930
    %v961 = vsub.f32 %v859, %v932
    %v962 = vsub.f32 %v862, %v935
    %v963 = vsub.f32 %v864, %v937
    %v964 = vsub.f32 %v867, %v940
    %v965 = vsub.f32 %v869, %v942
    %v966 = vsub.f32 %v872, %v945
    %v967 = vsub.f32 %v874, %v947
    %v968 = vsub.f32 %v877, %v950
    %v969 = vsub.f32 %v879, %v952
    %970 = vmatpush.bf16.msra.mxu0 0
    %971 = vmatpush.bf16.msra.mxu0 0
    %972 = vmatpush.bf16.msra.mxu0 0
    %973 = vmatpush.bf16.msra.mxu0 0
    %974 = vmatpush.bf16.msra.mxu0 0
    %975 = vmatpush.bf16.msra.mxu0 0
    %976 = vmatpush.bf16.msra.mxu0 0
    %977 = vmatpush.bf16.msra.mxu0 %v149
    %978 = vmatmul.bf16.gmra.mxu0 %v882
    %v979 = vpop.f32.mrf.mxu0
    %v980 = vadd.f32 0.0, %v979
    %v981 = vpop.f32.mrf.mxu0
    %v982 = vadd.f32 0.0, %v981
    %983 = vmatmul.bf16.gmra.mxu0 %v885
    %v984 = vpop.f32.mrf.mxu0
    %v985 = vadd.f32 0.0, %v984
    %v986 = vpop.f32.mrf.mxu0
    %v987 = vadd.f32 0.0, %v986
    %988 = vmatmul.bf16.gmra.mxu0 %v888
    %v989 = vpop.f32.mrf.mxu0
    %v990 = vadd.f32 0.0, %v989
    %v991 = vpop.f32.mrf.mxu0
    %v992 = vadd.f32 0.0, %v991
    %993 = vmatmul.bf16.gmra.mxu0 %v891
    %v994 = vpop.f32.mrf.mxu0
    %v995 = vadd.f32 0.0, %v994
    %v996 = vpop.f32.mrf.mxu0
    %v997 = vadd.f32 0.0, %v996
    %998 = vmatmul.bf16.gmra.mxu0 %v894
    %v999 = vpop.f32.mrf.mxu0
    %v1000 = vadd.f32 0.0, %v999
    %v1001 = vpop.f32.mrf.mxu0
    %v1002 = vadd.f32 0.0, %v1001
    %1003 = vmatmul.bf16.gmra.mxu0 %v897
    %v1004 = vpop.f32.mrf.mxu0
    %v1005 = vadd.f32 0.0, %v1004
    %v1006 = vpop.f32.mrf.mxu0
    %v1007 = vadd.f32 0.0, %v1006
    %1008 = vmatmul.bf16.gmra.mxu0 %v900
    %v1009 = vpop.f32.mrf.mxu0
    %v1010 = vadd.f32 0.0, %v1009
    %v1011 = vpop.f32.mrf.mxu0
    %v1012 = vadd.f32 0.0, %v1011
    %1013 = vmatmul.bf16.gmra.mxu0 %v903
    %v1014 = vpop.f32.mrf.mxu0
    %v1015 = vadd.f32 0.0, %v1014
    %v1016 = vpop.f32.mrf.mxu0
    %v1017 = vadd.f32 0.0, %v1016
    %1018 = vdwg.mxu0
    %1019 = vmatpush.bf16.msra.mxu0 0
    %1020 = vmatpush.bf16.msra.mxu0 0
    %1021 = vmatpush.bf16.msra.mxu0 0
    %1022 = vmatpush.bf16.msra.mxu0 0
    %1023 = vmatpush.bf16.msra.mxu0 0
    %1024 = vmatpush.bf16.msra.mxu0 0
    %1025 = vmatpush.bf16.msra.mxu0 0
    %1026 = vmatpush.bf16.msra.mxu0 %v229
    %1027 = vmatmul.bf16.gmra.mxu0 %v809
    %v1028 = vpop.f32.mrf.mxu0
    %v1029 = vadd.f32 %v980, %v1028
    %v1030 = vpop.f32.mrf.mxu0
    %v1031 = vadd.f32 %v982, %v1030
    %1032 = vmatmul.bf16.gmra.mxu0 %v812
    %v1033 = vpop.f32.mrf.mxu0
    %v1034 = vadd.f32 %v985, %v1033
    %v1035 = vpop.f32.mrf.mxu0
    %v1036 = vadd.f32 %v987, %v1035
    %1037 = vmatmul.bf16.gmra.mxu0 %v815
    %v1038 = vpop.f32.mrf.mxu0
    %v1039 = vadd.f32 %v990, %v1038
    %v1040 = vpop.f32.mrf.mxu0
    %v1041 = vadd.f32 %v992, %v1040
    %1042 = vmatmul.bf16.gmra.mxu0 %v818
    %v1043 = vpop.f32.mrf.mxu0
    %v1044 = vadd.f32 %v995, %v1043
    %v1045 = vpop.f32.mrf.mxu0
    %v1046 = vadd.f32 %v997, %v1045
    %1047 = vmatmul.bf16.gmra.mxu0 %v821
    %v1048 = vpop.f32.mrf.mxu0
    %v1049 = vadd.f32 %v1000, %v1048
    %v1050 = vpop.f32.mrf.mxu0
    %v1051 = vadd.f32 %v1002, %v1050
    %1052 = vmatmul.bf16.gmra.mxu0 %v824
    %v1053 = vpop.f32.mrf.mxu0
    %v1054 = vadd.f32 %v1005, %v1053
    %v1055 = vpop.f32.mrf.mxu0
    %v1056 = vadd.f32 %v1007, %v1055
    %1057 = vmatmul.bf16.gmra.mxu0 %v827
    %v1058 = vpop.f32.mrf.mxu0
    %v1059 = vadd.f32 %v1010, %v1058
    %v1060 = vpop.f32.mrf.mxu0
    %v1061 = vadd.f32 %v1012, %v1060
    %1062 = vmatmul.bf16.gmra.mxu0 %v830
    %v1063 = vpop.f32.mrf.mxu0
    %v1064 = vadd.f32 %v1015, %v1063
    %v1065 = vpop.f32.mrf.mxu0
    %v1066 = vadd.f32 %v1017, %v1065
    %1067 = vdwg.mxu0
    %v1068 = vmul.f32 %v954, %v954
    %v1069 = vmul.f32 %v955, %v955
    %v1070 = vmul.f32 %v956, %v956
    %v1071 = vmul.f32 %v957, %v957
    %v1072 = vmul.f32 %v958, %v958
    %v1073 = vmul.f32 %v959, %v959
    %v1074 = vmul.f32 %v960, %v960
    %v1075 = vmul.f32 %v961, %v961
    %v1076 = vmul.f32 %v962, %v962
    %v1077 = vmul.f32 %v963, %v963
    %v1078 = vmul.f32 %v964, %v964
    %v1079 = vmul.f32 %v965, %v965
    %v1080 = vmul.f32 %v966, %v966
    %v1081 = vmul.f32 %v967, %v967
    %v1082 = vmul.f32 %v968, %v968
    %v1083 = vmul.f32 %v969, %v969
    %v1084 = vmul.f32 %v1029, %v1029
    %v1085 = vmul.f32 %v1031, %v1031
    %v1086 = vmul.f32 %v1034, %v1034
    %v1087 = vmul.f32 %v1036, %v1036
    %v1088 = vmul.f32 %v1039, %v1039
    %v1089 = vmul.f32 %v1041, %v1041
    %v1090 = vmul.f32 %v1044, %v1044
    %v1091 = vmul.f32 %v1046, %v1046
    %v1092 = vmul.f32 %v1049, %v1049
    %v1093 = vmul.f32 %v1051, %v1051
    %v1094 = vmul.f32 %v1054, %v1054
    %v1095 = vmul.f32 %v1056, %v1056
    %v1096 = vmul.f32 %v1059, %v1059
    %v1097 = vmul.f32 %v1061, %v1061
    %v1098 = vmul.f32 %v1064, %v1064
    %v1099 = vmul.f32 %v1066, %v1066
    %v1100 = vadd.f32 %v1068, %v1084
    %v1101 = vadd.f32 %v1069, %v1085
    %v1102 = vadd.f32 %v1070, %v1086
    %v1103 = vadd.f32 %v1071, %v1087
    %v1104 = vadd.f32 %v1072, %v1088
    %v1105 = vadd.f32 %v1073, %v1089
    %v1106 = vadd.f32 %v1074, %v1090
    %v1107 = vadd.f32 %v1075, %v1091
    %v1108 = vadd.f32 %v1076, %v1092
    %v1109 = vadd.f32 %v1077, %v1093
    %v1110 = vadd.f32 %v1078, %v1094
    %v1111 = vadd.f32 %v1079, %v1095
    %v1112 = vadd.f32 %v1080, %v1096
    %v1113 = vadd.f32 %v1081, %v1097
    %v1114 = vadd.f32 %v1082, %v1098
    %v1115 = vadd.f32 %v1083, %v1099
    %v1116 = vrsqrt.pop %v1100
    %v1117 = vmul.f32 %v1116, %v1100
    %v1118 = vmul.f32 %v1117, %v1116
    %v1119 = vmul.f32 0.5, %v1118
    %v1120 = vsub.f32 1.5, %v1119
    %v1121 = vmul.f32 %v1116, %v1120
    %v1122 = vmul.f32 %v1100, %v1121
    %vm1123 = vcmp.eq.f32.partialorder %v1100, inf
    %v1124 = vsel %vm1123, %v1100, %v1122
    %vm1125 = vcmp.eq.f32.partialorder %v1100, 0.0
    %v1126 = vand.u32 %v1100, 2147483648
    %v1127 = vsel %vm1125, %v1126, %v1124
    %v1128 = vrsqrt.pop %v1101
    %v1129 = vmul.f32 %v1128, %v1101
    %v1130 = vmul.f32 %v1129, %v1128
    %v1131 = vmul.f32 0.5, %v1130
    %v1132 = vsub.f32 1.5, %v1131
    %v1133 = vmul.f32 %v1128, %v1132
    %v1134 = vmul.f32 %v1101, %v1133
    %vm1135 = vcmp.eq.f32.partialorder %v1101, inf
    %v1136 = vsel %vm1135, %v1101, %v1134
    %vm1137 = vcmp.eq.f32.partialorder %v1101, 0.0
    %v1138 = vand.u32 %v1101, 2147483648
    %v1139 = vsel %vm1137, %v1138, %v1136
    %v1140 = vrsqrt.pop %v1102
    %v1141 = vmul.f32 %v1140, %v1102
    %v1142 = vmul.f32 %v1141, %v1140
    %v1143 = vmul.f32 0.5, %v1142
    %v1144 = vsub.f32 1.5, %v1143
    %v1145 = vmul.f32 %v1140, %v1144
    %v1146 = vmul.f32 %v1102, %v1145
    %vm1147 = vcmp.eq.f32.partialorder %v1102, inf
    %v1148 = vsel %vm1147, %v1102, %v1146
    %vm1149 = vcmp.eq.f32.partialorder %v1102, 0.0
    %v1150 = vand.u32 %v1102, 2147483648
    %v1151 = vsel %vm1149, %v1150, %v1148
    %v1152 = vrsqrt.pop %v1103
    %v1153 = vmul.f32 %v1152, %v1103
    %v1154 = vmul.f32 %v1153, %v1152
    %v1155 = vmul.f32 0.5, %v1154
    %v1156 = vsub.f32 1.5, %v1155
    %v1157 = vmul.f32 %v1152, %v1156
    %v1158 = vmul.f32 %v1103, %v1157
    %vm1159 = vcmp.eq.f32.partialorder %v1103, inf
    %v1160 = vsel %vm1159, %v1103, %v1158
    %vm1161 = vcmp.eq.f32.partialorder %v1103, 0.0
    %v1162 = vand.u32 %v1103, 2147483648
    %v1163 = vsel %vm1161, %v1162, %v1160
    %v1164 = vrsqrt.pop %v1104
    %v1165 = vmul.f32 %v1164, %v1104
    %v1166 = vmul.f32 %v1165, %v1164
    %v1167 = vmul.f32 0.5, %v1166
    %v1168 = vsub.f32 1.5, %v1167
    %v1169 = vmul.f32 %v1164, %v1168
    %v1170 = vmul.f32 %v1104, %v1169
    %vm1171 = vcmp.eq.f32.partialorder %v1104, inf
    %v1172 = vsel %vm1171, %v1104, %v1170
    %vm1173 = vcmp.eq.f32.partialorder %v1104, 0.0
    %v1174 = vand.u32 %v1104, 2147483648
    %v1175 = vsel %vm1173, %v1174, %v1172
    %v1176 = vrsqrt.pop %v1105
    %v1177 = vmul.f32 %v1176, %v1105
    %v1178 = vmul.f32 %v1177, %v1176
    %v1179 = vmul.f32 0.5, %v1178
    %v1180 = vsub.f32 1.5, %v1179
    %v1181 = vmul.f32 %v1176, %v1180
    %v1182 = vmul.f32 %v1105, %v1181
    %vm1183 = vcmp.eq.f32.partialorder %v1105, inf
    %v1184 = vsel %vm1183, %v1105, %v1182
    %vm1185 = vcmp.eq.f32.partialorder %v1105, 0.0
    %v1186 = vand.u32 %v1105, 2147483648
    %v1187 = vsel %vm1185, %v1186, %v1184
    %v1188 = vrsqrt.pop %v1106
    %v1189 = vmul.f32 %v1188, %v1106
    %v1190 = vmul.f32 %v1189, %v1188
    %v1191 = vmul.f32 0.5, %v1190
    %v1192 = vsub.f32 1.5, %v1191
    %v1193 = vmul.f32 %v1188, %v1192
    %v1194 = vmul.f32 %v1106, %v1193
    %vm1195 = vcmp.eq.f32.partialorder %v1106, inf
    %v1196 = vsel %vm1195, %v1106, %v1194
    %vm1197 = vcmp.eq.f32.partialorder %v1106, 0.0
    %v1198 = vand.u32 %v1106, 2147483648
    %v1199 = vsel %vm1197, %v1198, %v1196
    %v1200 = vrsqrt.pop %v1107
    %v1201 = vmul.f32 %v1200, %v1107
    %v1202 = vmul.f32 %v1201, %v1200
    %v1203 = vmul.f32 0.5, %v1202
    %v1204 = vsub.f32 1.5, %v1203
    %v1205 = vmul.f32 %v1200, %v1204
    %v1206 = vmul.f32 %v1107, %v1205
    %vm1207 = vcmp.eq.f32.partialorder %v1107, inf
    %v1208 = vsel %vm1207, %v1107, %v1206
    %vm1209 = vcmp.eq.f32.partialorder %v1107, 0.0
    %v1210 = vand.u32 %v1107, 2147483648
    %v1211 = vsel %vm1209, %v1210, %v1208
    %v1212 = vrsqrt.pop %v1108
    %v1213 = vmul.f32 %v1212, %v1108
    %v1214 = vmul.f32 %v1213, %v1212
    %v1215 = vmul.f32 0.5, %v1214
    %v1216 = vsub.f32 1.5, %v1215
    %v1217 = vmul.f32 %v1212, %v1216
    %v1218 = vmul.f32 %v1108, %v1217
    %vm1219 = vcmp.eq.f32.partialorder %v1108, inf
    %v1220 = vsel %vm1219, %v1108, %v1218
    %vm1221 = vcmp.eq.f32.partialorder %v1108, 0.0
    %v1222 = vand.u32 %v1108, 2147483648
    %v1223 = vsel %vm1221, %v1222, %v1220
    %v1224 = vrsqrt.pop %v1109
    %v1225 = vmul.f32 %v1224, %v1109
    %v1226 = vmul.f32 %v1225, %v1224
    %v1227 = vmul.f32 0.5, %v1226
    %v1228 = vsub.f32 1.5, %v1227
    %v1229 = vmul.f32 %v1224, %v1228
    %v1230 = vmul.f32 %v1109, %v1229
    %vm1231 = vcmp.eq.f32.partialorder %v1109, inf
    %v1232 = vsel %vm1231, %v1109, %v1230
    %vm1233 = vcmp.eq.f32.partialorder %v1109, 0.0
    %v1234 = vand.u32 %v1109, 2147483648
    %v1235 = vsel %vm1233, %v1234, %v1232
    %v1236 = vrsqrt.pop %v1110
    %v1237 = vmul.f32 %v1236, %v1110
    %v1238 = vmul.f32 %v1237, %v1236
    %v1239 = vmul.f32 0.5, %v1238
    %v1240 = vsub.f32 1.5, %v1239
    %v1241 = vmul.f32 %v1236, %v1240
    %v1242 = vmul.f32 %v1110, %v1241
    %vm1243 = vcmp.eq.f32.partialorder %v1110, inf
    %v1244 = vsel %vm1243, %v1110, %v1242
    %vm1245 = vcmp.eq.f32.partialorder %v1110, 0.0
    %v1246 = vand.u32 %v1110, 2147483648
    %v1247 = vsel %vm1245, %v1246, %v1244
    %v1248 = vrsqrt.pop %v1111
    %v1249 = vmul.f32 %v1248, %v1111
    %v1250 = vmul.f32 %v1249, %v1248
    %v1251 = vmul.f32 0.5, %v1250
    %v1252 = vsub.f32 1.5, %v1251
    %v1253 = vmul.f32 %v1248, %v1252
    %v1254 = vmul.f32 %v1111, %v1253
    %vm1255 = vcmp.eq.f32.partialorder %v1111, inf
    %v1256 = vsel %vm1255, %v1111, %v1254
    %vm1257 = vcmp.eq.f32.partialorder %v1111, 0.0
    %v1258 = vand.u32 %v1111, 2147483648
    %v1259 = vsel %vm1257, %v1258, %v1256
    %v1260 = vrsqrt.pop %v1112
    %v1261 = vmul.f32 %v1260, %v1112
    %v1262 = vmul.f32 %v1261, %v1260
    %v1263 = vmul.f32 0.5, %v1262
    %v1264 = vsub.f32 1.5, %v1263
    %v1265 = vmul.f32 %v1260, %v1264
    %v1266 = vmul.f32 %v1112, %v1265
    %vm1267 = vcmp.eq.f32.partialorder %v1112, inf
    %v1268 = vsel %vm1267, %v1112, %v1266
    %vm1269 = vcmp.eq.f32.partialorder %v1112, 0.0
    %v1270 = vand.u32 %v1112, 2147483648
    %v1271 = vsel %vm1269, %v1270, %v1268
    %v1272 = vrsqrt.pop %v1113
    %v1273 = vmul.f32 %v1272, %v1113
    %v1274 = vmul.f32 %v1273, %v1272
    %v1275 = vmul.f32 0.5, %v1274
    %v1276 = vsub.f32 1.5, %v1275
    %v1277 = vmul.f32 %v1272, %v1276
    %v1278 = vmul.f32 %v1113, %v1277
    %vm1279 = vcmp.eq.f32.partialorder %v1113, inf
    %v1280 = vsel %vm1279, %v1113, %v1278
    %vm1281 = vcmp.eq.f32.partialorder %v1113, 0.0
    %v1282 = vand.u32 %v1113, 2147483648
    %v1283 = vsel %vm1281, %v1282, %v1280
    %v1284 = vrsqrt.pop %v1114
    %v1285 = vmul.f32 %v1284, %v1114
    %v1286 = vmul.f32 %v1285, %v1284
    %v1287 = vmul.f32 0.5, %v1286
    %v1288 = vsub.f32 1.5, %v1287
    %v1289 = vmul.f32 %v1284, %v1288
    %v1290 = vmul.f32 %v1114, %v1289
    %vm1291 = vcmp.eq.f32.partialorder %v1114, inf
    %v1292 = vsel %vm1291, %v1114, %v1290
    %vm1293 = vcmp.eq.f32.partialorder %v1114, 0.0
    %v1294 = vand.u32 %v1114, 2147483648
    %v1295 = vsel %vm1293, %v1294, %v1292
    %v1296 = vrsqrt.pop %v1115
    %v1297 = vmul.f32 %v1296, %v1115
    %v1298 = vmul.f32 %v1297, %v1296
    %v1299 = vmul.f32 0.5, %v1298
    %v1300 = vsub.f32 1.5, %v1299
    %v1301 = vmul.f32 %v1296, %v1300
    %v1302 = vmul.f32 %v1115, %v1301
    %vm1303 = vcmp.eq.f32.partialorder %v1115, inf
    %v1304 = vsel %vm1303, %v1115, %v1302
    %vm1305 = vcmp.eq.f32.partialorder %v1115, 0.0
    %v1306 = vand.u32 %v1115, 2147483648
    %v1307 = vsel %vm1305, %v1306, %v1304
    %v1308 = vld [vmem:[#allocation6] sm:$0xff]
    %v1309 = vld [vmem:[#allocation6 + $0x8] sm:$0xff]
    %v1310 = vld [vmem:[#allocation6 + $0x10] sm:$0xff]
    %v1311 = vld [vmem:[#allocation6 + $0x18] sm:$0xff]
    %v1312 = vld [vmem:[#allocation6 + $0x20] sm:$0xff]
    %v1313 = vld [vmem:[#allocation6 + $0x28] sm:$0xff]
    %v1314 = vld [vmem:[#allocation6 + $0x30] sm:$0xff]
    %v1315 = vld [vmem:[#allocation6 + $0x38] sm:$0xff]
    %v1316 = vld [vmem:[#allocation6 + $0x40] sm:$0xff]
    %v1317 = vld [vmem:[#allocation6 + $0x48] sm:$0xff]
    %v1318 = vld [vmem:[#allocation6 + $0x50] sm:$0xff]
    %v1319 = vld [vmem:[#allocation6 + $0x58] sm:$0xff]
    %v1320 = vld [vmem:[#allocation6 + $0x60] sm:$0xff]
    %v1321 = vld [vmem:[#allocation6 + $0x68] sm:$0xff]
    %v1322 = vld [vmem:[#allocation6 + $0x70] sm:$0xff]
    %v1323 = vld [vmem:[#allocation6 + $0x78] sm:$0xff]
    %v1324 = vpack.c.bf16 %v1309, %v1308
    %v1325 = vpack.c.bf16 %v1311, %v1310
    %v1326 = vpack.c.bf16 %v1313, %v1312
    %v1327 = vpack.c.bf16 %v1315, %v1314
    %v1328 = vpack.c.bf16 %v1317, %v1316
    %v1329 = vpack.c.bf16 %v1319, %v1318
    %v1330 = vpack.c.bf16 %v1321, %v1320
    %v1331 = vpack.c.bf16 %v1323, %v1322
    %v1333 = vsel %vm151, %v1324, 0
    %v1336 = vsel %vm151, %v1325, 0
    %v1339 = vsel %vm151, %v1326, 0
    %v1342 = vsel %vm151, %v1327, 0
    %v1345 = vsel %vm151, %v1328, 0
    %v1348 = vsel %vm151, %v1329, 0
    %v1351 = vsel %vm151, %v1330, 0
    %v1354 = vsel %vm151, %v1331, 0
    %1356 = vmatpush.bf16.msra.mxu0 0
    %1357 = vmatpush.bf16.msra.mxu0 0
    %1358 = vmatpush.bf16.msra.mxu0 0
    %1359 = vmatpush.bf16.msra.mxu0 0
    %1360 = vmatpush.bf16.msra.mxu0 0
    %1361 = vmatpush.bf16.msra.mxu0 0
    %1362 = vmatpush.bf16.msra.mxu0 0
    %1363 = vmatpush.bf16.msra.mxu0 %v149
    %1364 = vmatmul.bf16.gmra.mxu0 %v1333
    %v1365 = vpop.f32.mrf.mxu0
    %v1366 = vadd.f32 0.0, %v1365
    %v1367 = vpop.f32.mrf.mxu0
    %v1368 = vadd.f32 0.0, %v1367
    %1369 = vmatmul.bf16.gmra.mxu0 %v1336
    %v1370 = vpop.f32.mrf.mxu0
    %v1371 = vadd.f32 0.0, %v1370
    %v1372 = vpop.f32.mrf.mxu0
    %v1373 = vadd.f32 0.0, %v1372
    %1374 = vmatmul.bf16.gmra.mxu0 %v1339
    %v1375 = vpop.f32.mrf.mxu0
    %v1376 = vadd.f32 0.0, %v1375
    %v1377 = vpop.f32.mrf.mxu0
    %v1378 = vadd.f32 0.0, %v1377
    %1379 = vmatmul.bf16.gmra.mxu0 %v1342
    %v1380 = vpop.f32.mrf.mxu0
    %v1381 = vadd.f32 0.0, %v1380
    %v1382 = vpop.f32.mrf.mxu0
    %v1383 = vadd.f32 0.0, %v1382
    %1384 = vmatmul.bf16.gmra.mxu0 %v1345
    %v1385 = vpop.f32.mrf.mxu0
    %v1386 = vadd.f32 0.0, %v1385
    %v1387 = vpop.f32.mrf.mxu0
    %v1388 = vadd.f32 0.0, %v1387
    %1389 = vmatmul.bf16.gmra.mxu0 %v1348
    %v1390 = vpop.f32.mrf.mxu0
    %v1391 = vadd.f32 0.0, %v1390
    %v1392 = vpop.f32.mrf.mxu0
    %v1393 = vadd.f32 0.0, %v1392
    %1394 = vmatmul.bf16.gmra.mxu0 %v1351
    %v1395 = vpop.f32.mrf.mxu0
    %v1396 = vadd.f32 0.0, %v1395
    %v1397 = vpop.f32.mrf.mxu0
    %v1398 = vadd.f32 0.0, %v1397
    %1399 = vmatmul.bf16.gmra.mxu0 %v1354
    %v1400 = vpop.f32.mrf.mxu0
    %v1401 = vadd.f32 0.0, %v1400
    %v1402 = vpop.f32.mrf.mxu0
    %v1403 = vadd.f32 0.0, %v1402
    %1404 = vdwg.mxu0
    %1405 = vmatpush.bf16.msra.mxu0 0
    %1406 = vmatpush.bf16.msra.mxu0 0
    %1407 = vmatpush.bf16.msra.mxu0 0
    %1408 = vmatpush.bf16.msra.mxu0 0
    %1409 = vmatpush.bf16.msra.mxu0 0
    %1410 = vmatpush.bf16.msra.mxu0 0
    %1411 = vmatpush.bf16.msra.mxu0 0
    %1412 = vmatpush.bf16.msra.mxu0 %v229
    %1413 = vmatmul.bf16.gmra.mxu0 %v1333
    %v1414 = vpop.f32.mrf.mxu0
    %v1415 = vadd.f32 0.0, %v1414
    %v1416 = vpop.f32.mrf.mxu0
    %v1417 = vadd.f32 0.0, %v1416
    %1418 = vmatmul.bf16.gmra.mxu0 %v1336
    %v1419 = vpop.f32.mrf.mxu0
    %v1420 = vadd.f32 0.0, %v1419
    %v1421 = vpop.f32.mrf.mxu0
    %v1422 = vadd.f32 0.0, %v1421
    %1423 = vmatmul.bf16.gmra.mxu0 %v1339
    %v1424 = vpop.f32.mrf.mxu0
    %v1425 = vadd.f32 0.0, %v1424
    %v1426 = vpop.f32.mrf.mxu0
    %v1427 = vadd.f32 0.0, %v1426
    %1428 = vmatmul.bf16.gmra.mxu0 %v1342
    %v1429 = vpop.f32.mrf.mxu0
    %v1430 = vadd.f32 0.0, %v1429
    %v1431 = vpop.f32.mrf.mxu0
    %v1432 = vadd.f32 0.0, %v1431
    %1433 = vmatmul.bf16.gmra.mxu0 %v1345
    %v1434 = vpop.f32.mrf.mxu0
    %v1435 = vadd.f32 0.0, %v1434
    %v1436 = vpop.f32.mrf.mxu0
    %v1437 = vadd.f32 0.0, %v1436
    %1438 = vmatmul.bf16.gmra.mxu0 %v1348
    %v1439 = vpop.f32.mrf.mxu0
    %v1440 = vadd.f32 0.0, %v1439
    %v1441 = vpop.f32.mrf.mxu0
    %v1442 = vadd.f32 0.0, %v1441
    %1443 = vmatmul.bf16.gmra.mxu0 %v1351
    %v1444 = vpop.f32.mrf.mxu0
    %v1445 = vadd.f32 0.0, %v1444
    %v1446 = vpop.f32.mrf.mxu0
    %v1447 = vadd.f32 0.0, %v1446
    %1448 = vmatmul.bf16.gmra.mxu0 %v1354
    %v1449 = vpop.f32.mrf.mxu0
    %v1450 = vadd.f32 0.0, %v1449
    %v1451 = vpop.f32.mrf.mxu0
    %v1452 = vadd.f32 0.0, %v1451
    %1453 = vdwg.mxu0
    %1454 = vxpose.xlu0.b32.start [1/16] %v1366, 128
    %1455 = vxpose.xlu0.b32.cont [2/16] %v1368, 128
    %1456 = vxpose.xlu0.b32.cont [3/16] 0.0, 128
    %1457 = vxpose.xlu0.b32.cont [4/16] 0.0, 128
    %1458 = vxpose.xlu0.b32.cont [5/16] 0.0, 128
    %1459 = vxpose.xlu0.b32.cont [6/16] 0.0, 128
    %1460 = vxpose.xlu0.b32.cont [7/16] 0.0, 128
    %1461 = vxpose.xlu0.b32.cont [8/16] 0.0, 128
    %1462 = vxpose.xlu0.b32.cont [9/16] 0.0, 128
    %1463 = vxpose.xlu0.b32.cont [10/16] 0.0, 128
    %1464 = vxpose.xlu0.b32.cont [11/16] 0.0, 128
    %1465 = vxpose.xlu0.b32.cont [12/16] 0.0, 128
    %1466 = vxpose.xlu0.b32.cont [13/16] 0.0, 128
    %1467 = vxpose.xlu0.b32.cont [14/16] 0.0, 128
    %1468 = vxpose.xlu0.b32.cont [15/16] 0.0, 128
    %1469 = vxpose.xlu0.b32.end [16/16] 0.0, 128
    %v1470 = vpop.trf.xlu0
    %v1471 = vpop.trf.xlu0
    %v1472 = vpop.trf.xlu0
    %v1473 = vpop.trf.xlu0
    %v1474 = vpop.trf.xlu0
    %v1475 = vpop.trf.xlu0
    %v1476 = vpop.trf.xlu0
    %v1477 = vpop.trf.xlu0
    %v1478 = vpop.trf.xlu0
    %v1479 = vpop.trf.xlu0
    %v1480 = vpop.trf.xlu0
    %v1481 = vpop.trf.xlu0
    %v1482 = vpop.trf.xlu0
    %v1483 = vpop.trf.xlu0
    %v1484 = vpop.trf.xlu0
    %v1485 = vpop.trf.xlu0
    %1486 = vxpose.xlu0.b32.start [1/16] %v1371, 128
    %1487 = vxpose.xlu0.b32.cont [2/16] %v1373, 128
    %1488 = vxpose.xlu0.b32.cont [3/16] 0.0, 128
    %1489 = vxpose.xlu0.b32.cont [4/16] 0.0, 128
    %1490 = vxpose.xlu0.b32.cont [5/16] 0.0, 128
    %1491 = vxpose.xlu0.b32.cont [6/16] 0.0, 128
    %1492 = vxpose.xlu0.b32.cont [7/16] 0.0, 128
    %1493 = vxpose.xlu0.b32.cont [8/16] 0.0, 128
    %1494 = vxpose.xlu0.b32.cont [9/16] 0.0, 128
    %1495 = vxpose.xlu0.b32.cont [10/16] 0.0, 128
    %1496 = vxpose.xlu0.b32.cont [11/16] 0.0, 128
    %1497 = vxpose.xlu0.b32.cont [12/16] 0.0, 128
    %1498 = vxpose.xlu0.b32.cont [13/16] 0.0, 128
    %1499 = vxpose.xlu0.b32.cont [14/16] 0.0, 128
    %1500 = vxpose.xlu0.b32.cont [15/16] 0.0, 128
    %1501 = vxpose.xlu0.b32.end [16/16] 0.0, 128
    %v1502 = vpop.trf.xlu0
    %v1503 = vpop.trf.xlu0
    %v1504 = vpop.trf.xlu0
    %v1505 = vpop.trf.xlu0
    %v1506 = vpop.trf.xlu0
    %v1507 = vpop.trf.xlu0
    %v1508 = vpop.trf.xlu0
    %v1509 = vpop.trf.xlu0
    %v1510 = vpop.trf.xlu0
    %v1511 = vpop.trf.xlu0
    %v1512 = vpop.trf.xlu0
    %v1513 = vpop.trf.xlu0
    %v1514 = vpop.trf.xlu0
    %v1515 = vpop.trf.xlu0
    %v1516 = vpop.trf.xlu0
    %v1517 = vpop.trf.xlu0
    %1518 = vxpose.xlu0.b32.start [1/16] %v1376, 128
    %1519 = vxpose.xlu0.b32.cont [2/16] %v1378, 128
    %1520 = vxpose.xlu0.b32.cont [3/16] 0.0, 128
    %1521 = vxpose.xlu0.b32.cont [4/16] 0.0, 128
    %1522 = vxpose.xlu0.b32.cont [5/16] 0.0, 128
    %1523 = vxpose.xlu0.b32.cont [6/16] 0.0, 128
    %1524 = vxpose.xlu0.b32.cont [7/16] 0.0, 128
    %1525 = vxpose.xlu0.b32.cont [8/16] 0.0, 128
    %1526 = vxpose.xlu0.b32.cont [9/16] 0.0, 128
    %1527 = vxpose.xlu0.b32.cont [10/16] 0.0, 128
    %1528 = vxpose.xlu0.b32.cont [11/16] 0.0, 128
    %1529 = vxpose.xlu0.b32.cont [12/16] 0.0, 128
    %1530 = vxpose.xlu0.b32.cont [13/16] 0.0, 128
    %1531 = vxpose.xlu0.b32.cont [14/16] 0.0, 128
    %1532 = vxpose.xlu0.b32.cont [15/16] 0.0, 128
    %1533 = vxpose.xlu0.b32.end [16/16] 0.0, 128
    %v1534 = vpop.trf.xlu0
    %v1535 = vpop.trf.xlu0
    %v1536 = vpop.trf.xlu0
    %v1537 = vpop.trf.xlu0
    %v1538 = vpop.trf.xlu0
    %v1539 = vpop.trf.xlu0
    %v1540 = vpop.trf.xlu0
    %v1541 = vpop.trf.xlu0
    %v1542 = vpop.trf.xlu0
    %v1543 = vpop.trf.xlu0
    %v1544 = vpop.trf.xlu0
    %v1545 = vpop.trf.xlu0
    %v1546 = vpop.trf.xlu0
    %v1547 = vpop.trf.xlu0
    %v1548 = vpop.trf.xlu0
    %v1549 = vpop.trf.xlu0
    %1550 = vxpose.xlu0.b32.start [1/16] %v1381, 128
    %1551 = vxpose.xlu0.b32.cont [2/16] %v1383, 128
    %1552 = vxpose.xlu0.b32.cont [3/16] 0.0, 128
    %1553 = vxpose.xlu0.b32.cont [4/16] 0.0, 128
    %1554 = vxpose.xlu0.b32.cont [5/16] 0.0, 128
    %1555 = vxpose.xlu0.b32.cont [6/16] 0.0, 128
    %1556 = vxpose.xlu0.b32.cont [7/16] 0.0, 128
    %1557 = vxpose.xlu0.b32.cont [8/16] 0.0, 128
    %1558 = vxpose.xlu0.b32.cont [9/16] 0.0, 128
    %1559 = vxpose.xlu0.b32.cont [10/16] 0.0, 128
    %1560 = vxpose.xlu0.b32.cont [11/16] 0.0, 128
    %1561 = vxpose.xlu0.b32.cont [12/16] 0.0, 128
    %1562 = vxpose.xlu0.b32.cont [13/16] 0.0, 128
    %1563 = vxpose.xlu0.b32.cont [14/16] 0.0, 128
    %1564 = vxpose.xlu0.b32.cont [15/16] 0.0, 128
    %1565 = vxpose.xlu0.b32.end [16/16] 0.0, 128
    %v1566 = vpop.trf.xlu0
    %v1567 = vpop.trf.xlu0
    %v1568 = vpop.trf.xlu0
    %v1569 = vpop.trf.xlu0
    %v1570 = vpop.trf.xlu0
    %v1571 = vpop.trf.xlu0
    %v1572 = vpop.trf.xlu0
    %v1573 = vpop.trf.xlu0
    %v1574 = vpop.trf.xlu0
    %v1575 = vpop.trf.xlu0
    %v1576 = vpop.trf.xlu0
    %v1577 = vpop.trf.xlu0
    %v1578 = vpop.trf.xlu0
    %v1579 = vpop.trf.xlu0
    %v1580 = vpop.trf.xlu0
    %v1581 = vpop.trf.xlu0
    %1582 = vxpose.xlu0.b32.start [1/16] %v1386, 128
    %1583 = vxpose.xlu0.b32.cont [2/16] %v1388, 128
    %1584 = vxpose.xlu0.b32.cont [3/16] 0.0, 128
    %1585 = vxpose.xlu0.b32.cont [4/16] 0.0, 128
    %1586 = vxpose.xlu0.b32.cont [5/16] 0.0, 128
    %1587 = vxpose.xlu0.b32.cont [6/16] 0.0, 128
    %1588 = vxpose.xlu0.b32.cont [7/16] 0.0, 128
    %1589 = vxpose.xlu0.b32.cont [8/16] 0.0, 128
    %1590 = vxpose.xlu0.b32.cont [9/16] 0.0, 128
    %1591 = vxpose.xlu0.b32.cont [10/16] 0.0, 128
    %1592 = vxpose.xlu0.b32.cont [11/16] 0.0, 128
    %1593 = vxpose.xlu0.b32.cont [12/16] 0.0, 128
    %1594 = vxpose.xlu0.b32.cont [13/16] 0.0, 128
    %1595 = vxpose.xlu0.b32.cont [14/16] 0.0, 128
    %1596 = vxpose.xlu0.b32.cont [15/16] 0.0, 128
    %1597 = vxpose.xlu0.b32.end [16/16] 0.0, 128
    %v1598 = vpop.trf.xlu0
    %v1599 = vpop.trf.xlu0
    %v1600 = vpop.trf.xlu0
    %v1601 = vpop.trf.xlu0
    %v1602 = vpop.trf.xlu0
    %v1603 = vpop.trf.xlu0
    %v1604 = vpop.trf.xlu0
    %v1605 = vpop.trf.xlu0
    %v1606 = vpop.trf.xlu0
    %v1607 = vpop.trf.xlu0
    %v1608 = vpop.trf.xlu0
    %v1609 = vpop.trf.xlu0
    %v1610 = vpop.trf.xlu0
    %v1611 = vpop.trf.xlu0
    %v1612 = vpop.trf.xlu0
    %v1613 = vpop.trf.xlu0
    %1614 = vxpose.xlu0.b32.start [1/16] %v1391, 128
    %1615 = vxpose.xlu0.b32.cont [2/16] %v1393, 128
    %1616 = vxpose.xlu0.b32.cont [3/16] 0.0, 128
    %1617 = vxpose.xlu0.b32.cont [4/16] 0.0, 128
    %1618 = vxpose.xlu0.b32.cont [5/16] 0.0, 128
    %1619 = vxpose.xlu0.b32.cont [6/16] 0.0, 128
    %1620 = vxpose.xlu0.b32.cont [7/16] 0.0, 128
    %1621 = vxpose.xlu0.b32.cont [8/16] 0.0, 128
    %1622 = vxpose.xlu0.b32.cont [9/16] 0.0, 128
    %1623 = vxpose.xlu0.b32.cont [10/16] 0.0, 128
    %1624 = vxpose.xlu0.b32.cont [11/16] 0.0, 128
    %1625 = vxpose.xlu0.b32.cont [12/16] 0.0, 128
    %1626 = vxpose.xlu0.b32.cont [13/16] 0.0, 128
    %1627 = vxpose.xlu0.b32.cont [14/16] 0.0, 128
    %1628 = vxpose.xlu0.b32.cont [15/16] 0.0, 128
    %1629 = vxpose.xlu0.b32.end [16/16] 0.0, 128
    %v1630 = vpop.trf.xlu0
    %v1631 = vpop.trf.xlu0
    %v1632 = vpop.trf.xlu0
    %v1633 = vpop.trf.xlu0
    %v1634 = vpop.trf.xlu0
    %v1635 = vpop.trf.xlu0
    %v1636 = vpop.trf.xlu0
    %v1637 = vpop.trf.xlu0
    %v1638 = vpop.trf.xlu0
    %v1639 = vpop.trf.xlu0
    %v1640 = vpop.trf.xlu0
    %v1641 = vpop.trf.xlu0
    %v1642 = vpop.trf.xlu0
    %v1643 = vpop.trf.xlu0
    %v1644 = vpop.trf.xlu0
    %v1645 = vpop.trf.xlu0
    %1646 = vxpose.xlu0.b32.start [1/16] %v1396, 128
    %1647 = vxpose.xlu0.b32.cont [2/16] %v1398, 128
    %1648 = vxpose.xlu0.b32.cont [3/16] 0.0, 128
    %1649 = vxpose.xlu0.b32.cont [4/16] 0.0, 128
    %1650 = vxpose.xlu0.b32.cont [5/16] 0.0, 128
    %1651 = vxpose.xlu0.b32.cont [6/16] 0.0, 128
    %1652 = vxpose.xlu0.b32.cont [7/16] 0.0, 128
    %1653 = vxpose.xlu0.b32.cont [8/16] 0.0, 128
    %1654 = vxpose.xlu0.b32.cont [9/16] 0.0, 128
    %1655 = vxpose.xlu0.b32.cont [10/16] 0.0, 128
    %1656 = vxpose.xlu0.b32.cont [11/16] 0.0, 128
    %1657 = vxpose.xlu0.b32.cont [12/16] 0.0, 128
    %1658 = vxpose.xlu0.b32.cont [13/16] 0.0, 128
    %1659 = vxpose.xlu0.b32.cont [14/16] 0.0, 128
    %1660 = vxpose.xlu0.b32.cont [15/16] 0.0, 128
    %1661 = vxpose.xlu0.b32.end [16/16] 0.0, 128
    %v1662 = vpop.trf.xlu0
    %v1663 = vpop.trf.xlu0
    %v1664 = vpop.trf.xlu0
    %v1665 = vpop.trf.xlu0
    %v1666 = vpop.trf.xlu0
    %v1667 = vpop.trf.xlu0
    %v1668 = vpop.trf.xlu0
    %v1669 = vpop.trf.xlu0
    %v1670 = vpop.trf.xlu0
    %v1671 = vpop.trf.xlu0
    %v1672 = vpop.trf.xlu0
    %v1673 = vpop.trf.xlu0
    %v1674 = vpop.trf.xlu0
    %v1675 = vpop.trf.xlu0
    %v1676 = vpop.trf.xlu0
    %v1677 = vpop.trf.xlu0
    %1678 = vxpose.xlu0.b32.start [1/16] %v1401, 128
    %1679 = vxpose.xlu0.b32.cont [2/16] %v1403, 128
    %1680 = vxpose.xlu0.b32.cont [3/16] 0.0, 128
    %1681 = vxpose.xlu0.b32.cont [4/16] 0.0, 128
    %1682 = vxpose.xlu0.b32.cont [5/16] 0.0, 128
    %1683 = vxpose.xlu0.b32.cont [6/16] 0.0, 128
    %1684 = vxpose.xlu0.b32.cont [7/16] 0.0, 128
    %1685 = vxpose.xlu0.b32.cont [8/16] 0.0, 128
    %1686 = vxpose.xlu0.b32.cont [9/16] 0.0, 128
    %1687 = vxpose.xlu0.b32.cont [10/16] 0.0, 128
    %1688 = vxpose.xlu0.b32.cont [11/16] 0.0, 128
    %1689 = vxpose.xlu0.b32.cont [12/16] 0.0, 128
    %1690 = vxpose.xlu0.b32.cont [13/16] 0.0, 128
    %1691 = vxpose.xlu0.b32.cont [14/16] 0.0, 128
    %1692 = vxpose.xlu0.b32.cont [15/16] 0.0, 128
    %1693 = vxpose.xlu0.b32.end [16/16] 0.0, 128
    %v1694 = vpop.trf.xlu0
    %v1695 = vpop.trf.xlu0
    %v1696 = vpop.trf.xlu0
    %v1697 = vpop.trf.xlu0
    %v1698 = vpop.trf.xlu0
    %v1699 = vpop.trf.xlu0
    %v1700 = vpop.trf.xlu0
    %v1701 = vpop.trf.xlu0
    %v1702 = vpop.trf.xlu0
    %v1703 = vpop.trf.xlu0
    %v1704 = vpop.trf.xlu0
    %v1705 = vpop.trf.xlu0
    %v1706 = vpop.trf.xlu0
    %v1707 = vpop.trf.xlu0
    %v1708 = vpop.trf.xlu0
    %v1709 = vpop.trf.xlu0
    %v1710 = vpack.c.bf16 %v1471, %v1470
    %v1711 = vpack.c.bf16 %v1503, %v1502
    %v1712 = vpack.c.bf16 %v1535, %v1534
    %v1713 = vpack.c.bf16 %v1567, %v1566
    %v1714 = vpack.c.bf16 %v1599, %v1598
    %v1715 = vpack.c.bf16 %v1631, %v1630
    %v1716 = vpack.c.bf16 %v1663, %v1662
    %v1717 = vpack.c.bf16 %v1695, %v1694
    %1718 = vxpose.xlu0.b32.start [1/16] %v1415, 128
    %1719 = vxpose.xlu0.b32.cont [2/16] %v1417, 128
    %1720 = vxpose.xlu0.b32.cont [3/16] 0.0, 128
    %1721 = vxpose.xlu0.b32.cont [4/16] 0.0, 128
    %1722 = vxpose.xlu0.b32.cont [5/16] 0.0, 128
    %1723 = vxpose.xlu0.b32.cont [6/16] 0.0, 128
    %1724 = vxpose.xlu0.b32.cont [7/16] 0.0, 128
    %1725 = vxpose.xlu0.b32.cont [8/16] 0.0, 128
    %1726 = vxpose.xlu0.b32.cont [9/16] 0.0, 128
    %1727 = vxpose.xlu0.b32.cont [10/16] 0.0, 128
    %1728 = vxpose.xlu0.b32.cont [11/16] 0.0, 128
    %1729 = vxpose.xlu0.b32.cont [12/16] 0.0, 128
    %1730 = vxpose.xlu0.b32.cont [13/16] 0.0, 128
    %1731 = vxpose.xlu0.b32.cont [14/16] 0.0, 128
    %1732 = vxpose.xlu0.b32.cont [15/16] 0.0, 128
    %1733 = vxpose.xlu0.b32.end [16/16] 0.0, 128
    %v1734 = vpop.trf.xlu0
    %v1735 = vpop.trf.xlu0
    %v1736 = vpop.trf.xlu0
    %v1737 = vpop.trf.xlu0
    %v1738 = vpop.trf.xlu0
    %v1739 = vpop.trf.xlu0
    %v1740 = vpop.trf.xlu0
    %v1741 = vpop.trf.xlu0
    %v1742 = vpop.trf.xlu0
    %v1743 = vpop.trf.xlu0
    %v1744 = vpop.trf.xlu0
    %v1745 = vpop.trf.xlu0
    %v1746 = vpop.trf.xlu0
    %v1747 = vpop.trf.xlu0
    %v1748 = vpop.trf.xlu0
    %v1749 = vpop.trf.xlu0
    %1750 = vxpose.xlu0.b32.start [1/16] %v1420, 128
    %1751 = vxpose.xlu0.b32.cont [2/16] %v1422, 128
    %1752 = vxpose.xlu0.b32.cont [3/16] 0.0, 128
    %1753 = vxpose.xlu0.b32.cont [4/16] 0.0, 128
    %1754 = vxpose.xlu0.b32.cont [5/16] 0.0, 128
    %1755 = vxpose.xlu0.b32.cont [6/16] 0.0, 128
    %1756 = vxpose.xlu0.b32.cont [7/16] 0.0, 128
    %1757 = vxpose.xlu0.b32.cont [8/16] 0.0, 128
    %1758 = vxpose.xlu0.b32.cont [9/16] 0.0, 128
    %1759 = vxpose.xlu0.b32.cont [10/16] 0.0, 128
    %1760 = vxpose.xlu0.b32.cont [11/16] 0.0, 128
    %1761 = vxpose.xlu0.b32.cont [12/16] 0.0, 128
    %1762 = vxpose.xlu0.b32.cont [13/16] 0.0, 128
    %1763 = vxpose.xlu0.b32.cont [14/16] 0.0, 128
    %1764 = vxpose.xlu0.b32.cont [15/16] 0.0, 128
    %1765 = vxpose.xlu0.b32.end [16/16] 0.0, 128
    %v1766 = vpop.trf.xlu0
    %v1767 = vpop.trf.xlu0
    %v1768 = vpop.trf.xlu0
    %v1769 = vpop.trf.xlu0
    %v1770 = vpop.trf.xlu0
    %v1771 = vpop.trf.xlu0
    %v1772 = vpop.trf.xlu0
    %v1773 = vpop.trf.xlu0
    %v1774 = vpop.trf.xlu0
    %v1775 = vpop.trf.xlu0
    %v1776 = vpop.trf.xlu0
    %v1777 = vpop.trf.xlu0
    %v1778 = vpop.trf.xlu0
    %v1779 = vpop.trf.xlu0
    %v1780 = vpop.trf.xlu0
    %v1781 = vpop.trf.xlu0
    %1782 = vxpose.xlu0.b32.start [1/16] %v1425, 128
    %1783 = vxpose.xlu0.b32.cont [2/16] %v1427, 128
    %1784 = vxpose.xlu0.b32.cont [3/16] 0.0, 128
    %1785 = vxpose.xlu0.b32.cont [4/16] 0.0, 128
    %1786 = vxpose.xlu0.b32.cont [5/16] 0.0, 128
    %1787 = vxpose.xlu0.b32.cont [6/16] 0.0, 128
    %1788 = vxpose.xlu0.b32.cont [7/16] 0.0, 128
    %1789 = vxpose.xlu0.b32.cont [8/16] 0.0, 128
    %1790 = vxpose.xlu0.b32.cont [9/16] 0.0, 128
    %1791 = vxpose.xlu0.b32.cont [10/16] 0.0, 128
    %1792 = vxpose.xlu0.b32.cont [11/16] 0.0, 128
    %1793 = vxpose.xlu0.b32.cont [12/16] 0.0, 128
    %1794 = vxpose.xlu0.b32.cont [13/16] 0.0, 128
    %1795 = vxpose.xlu0.b32.cont [14/16] 0.0, 128
    %1796 = vxpose.xlu0.b32.cont [15/16] 0.0, 128
    %1797 = vxpose.xlu0.b32.end [16/16] 0.0, 128
    %v1798 = vpop.trf.xlu0
    %v1799 = vpop.trf.xlu0
    %v1800 = vpop.trf.xlu0
    %v1801 = vpop.trf.xlu0
    %v1802 = vpop.trf.xlu0
    %v1803 = vpop.trf.xlu0
    %v1804 = vpop.trf.xlu0
    %v1805 = vpop.trf.xlu0
    %v1806 = vpop.trf.xlu0
    %v1807 = vpop.trf.xlu0
    %v1808 = vpop.trf.xlu0
    %v1809 = vpop.trf.xlu0
    %v1810 = vpop.trf.xlu0
    %v1811 = vpop.trf.xlu0
    %v1812 = vpop.trf.xlu0
    %v1813 = vpop.trf.xlu0
    %1814 = vxpose.xlu0.b32.start [1/16] %v1430, 128
    %1815 = vxpose.xlu0.b32.cont [2/16] %v1432, 128
    %1816 = vxpose.xlu0.b32.cont [3/16] 0.0, 128
    %1817 = vxpose.xlu0.b32.cont [4/16] 0.0, 128
    %1818 = vxpose.xlu0.b32.cont [5/16] 0.0, 128
    %1819 = vxpose.xlu0.b32.cont [6/16] 0.0, 128
    %1820 = vxpose.xlu0.b32.cont [7/16] 0.0, 128
    %1821 = vxpose.xlu0.b32.cont [8/16] 0.0, 128
    %1822 = vxpose.xlu0.b32.cont [9/16] 0.0, 128
    %1823 = vxpose.xlu0.b32.cont [10/16] 0.0, 128
    %1824 = vxpose.xlu0.b32.cont [11/16] 0.0, 128
    %1825 = vxpose.xlu0.b32.cont [12/16] 0.0, 128
    %1826 = vxpose.xlu0.b32.cont [13/16] 0.0, 128
    %1827 = vxpose.xlu0.b32.cont [14/16] 0.0, 128
    %1828 = vxpose.xlu0.b32.cont [15/16] 0.0, 128
    %1829 = vxpose.xlu0.b32.end [16/16] 0.0, 128
    %v1830 = vpop.trf.xlu0
    %v1831 = vpop.trf.xlu0
    %v1832 = vpop.trf.xlu0
    %v1833 = vpop.trf.xlu0
    %v1834 = vpop.trf.xlu0
    %v1835 = vpop.trf.xlu0
    %v1836 = vpop.trf.xlu0
    %v1837 = vpop.trf.xlu0
    %v1838 = vpop.trf.xlu0
    %v1839 = vpop.trf.xlu0
    %v1840 = vpop.trf.xlu0
    %v1841 = vpop.trf.xlu0
    %v1842 = vpop.trf.xlu0
    %v1843 = vpop.trf.xlu0
    %v1844 = vpop.trf.xlu0
    %v1845 = vpop.trf.xlu0
    %1846 = vxpose.xlu0.b32.start [1/16] %v1435, 128
    %1847 = vxpose.xlu0.b32.cont [2/16] %v1437, 128
    %1848 = vxpose.xlu0.b32.cont [3/16] 0.0, 128
    %1849 = vxpose.xlu0.b32.cont [4/16] 0.0, 128
    %1850 = vxpose.xlu0.b32.cont [5/16] 0.0, 128
    %1851 = vxpose.xlu0.b32.cont [6/16] 0.0, 128
    %1852 = vxpose.xlu0.b32.cont [7/16] 0.0, 128
    %1853 = vxpose.xlu0.b32.cont [8/16] 0.0, 128
    %1854 = vxpose.xlu0.b32.cont [9/16] 0.0, 128
    %1855 = vxpose.xlu0.b32.cont [10/16] 0.0, 128
    %1856 = vxpose.xlu0.b32.cont [11/16] 0.0, 128
    %1857 = vxpose.xlu0.b32.cont [12/16] 0.0, 128
    %1858 = vxpose.xlu0.b32.cont [13/16] 0.0, 128
    %1859 = vxpose.xlu0.b32.cont [14/16] 0.0, 128
    %1860 = vxpose.xlu0.b32.cont [15/16] 0.0, 128
    %1861 = vxpose.xlu0.b32.end [16/16] 0.0, 128
    %v1862 = vpop.trf.xlu0
    %v1863 = vpop.trf.xlu0
    %v1864 = vpop.trf.xlu0
    %v1865 = vpop.trf.xlu0
    %v1866 = vpop.trf.xlu0
    %v1867 = vpop.trf.xlu0
    %v1868 = vpop.trf.xlu0
    %v1869 = vpop.trf.xlu0
    %v1870 = vpop.trf.xlu0
    %v1871 = vpop.trf.xlu0
    %v1872 = vpop.trf.xlu0
    %v1873 = vpop.trf.xlu0
    %v1874 = vpop.trf.xlu0
    %v1875 = vpop.trf.xlu0
    %v1876 = vpop.trf.xlu0
    %v1877 = vpop.trf.xlu0
    %1878 = vxpose.xlu0.b32.start [1/16] %v1440, 128
    %1879 = vxpose.xlu0.b32.cont [2/16] %v1442, 128
    %1880 = vxpose.xlu0.b32.cont [3/16] 0.0, 128
    %1881 = vxpose.xlu0.b32.cont [4/16] 0.0, 128
    %1882 = vxpose.xlu0.b32.cont [5/16] 0.0, 128
    %1883 = vxpose.xlu0.b32.cont [6/16] 0.0, 128
    %1884 = vxpose.xlu0.b32.cont [7/16] 0.0, 128
    %1885 = vxpose.xlu0.b32.cont [8/16] 0.0, 128
    %1886 = vxpose.xlu0.b32.cont [9/16] 0.0, 128
    %1887 = vxpose.xlu0.b32.cont [10/16] 0.0, 128
    %1888 = vxpose.xlu0.b32.cont [11/16] 0.0, 128
    %1889 = vxpose.xlu0.b32.cont [12/16] 0.0, 128
    %1890 = vxpose.xlu0.b32.cont [13/16] 0.0, 128
    %1891 = vxpose.xlu0.b32.cont [14/16] 0.0, 128
    %1892 = vxpose.xlu0.b32.cont [15/16] 0.0, 128
    %1893 = vxpose.xlu0.b32.end [16/16] 0.0, 128
    %v1894 = vpop.trf.xlu0
    %v1895 = vpop.trf.xlu0
    %v1896 = vpop.trf.xlu0
    %v1897 = vpop.trf.xlu0
    %v1898 = vpop.trf.xlu0
    %v1899 = vpop.trf.xlu0
    %v1900 = vpop.trf.xlu0
    %v1901 = vpop.trf.xlu0
    %v1902 = vpop.trf.xlu0
    %v1903 = vpop.trf.xlu0
    %v1904 = vpop.trf.xlu0
    %v1905 = vpop.trf.xlu0
    %v1906 = vpop.trf.xlu0
    %v1907 = vpop.trf.xlu0
    %v1908 = vpop.trf.xlu0
    %v1909 = vpop.trf.xlu0
    %1910 = vxpose.xlu0.b32.start [1/16] %v1445, 128
    %1911 = vxpose.xlu0.b32.cont [2/16] %v1447, 128
    %1912 = vxpose.xlu0.b32.cont [3/16] 0.0, 128
    %1913 = vxpose.xlu0.b32.cont [4/16] 0.0, 128
    %1914 = vxpose.xlu0.b32.cont [5/16] 0.0, 128
    %1915 = vxpose.xlu0.b32.cont [6/16] 0.0, 128
    %1916 = vxpose.xlu0.b32.cont [7/16] 0.0, 128
    %1917 = vxpose.xlu0.b32.cont [8/16] 0.0, 128
    %1918 = vxpose.xlu0.b32.cont [9/16] 0.0, 128
    %1919 = vxpose.xlu0.b32.cont [10/16] 0.0, 128
    %1920 = vxpose.xlu0.b32.cont [11/16] 0.0, 128
    %1921 = vxpose.xlu0.b32.cont [12/16] 0.0, 128
    %1922 = vxpose.xlu0.b32.cont [13/16] 0.0, 128
    %1923 = vxpose.xlu0.b32.cont [14/16] 0.0, 128
    %1924 = vxpose.xlu0.b32.cont [15/16] 0.0, 128
    %1925 = vxpose.xlu0.b32.end [16/16] 0.0, 128
    %v1926 = vpop.trf.xlu0
    %v1927 = vpop.trf.xlu0
    %v1928 = vpop.trf.xlu0
    %v1929 = vpop.trf.xlu0
    %v1930 = vpop.trf.xlu0
    %v1931 = vpop.trf.xlu0
    %v1932 = vpop.trf.xlu0
    %v1933 = vpop.trf.xlu0
    %v1934 = vpop.trf.xlu0
    %v1935 = vpop.trf.xlu0
    %v1936 = vpop.trf.xlu0
    %v1937 = vpop.trf.xlu0
    %v1938 = vpop.trf.xlu0
    %v1939 = vpop.trf.xlu0
    %v1940 = vpop.trf.xlu0
    %v1941 = vpop.trf.xlu0
    %1942 = vxpose.xlu0.b32.start [1/16] %v1450, 128
    %1943 = vxpose.xlu0.b32.cont [2/16] %v1452, 128
    %1944 = vxpose.xlu0.b32.cont [3/16] 0.0, 128
    %1945 = vxpose.xlu0.b32.cont [4/16] 0.0, 128
    %1946 = vxpose.xlu0.b32.cont [5/16] 0.0, 128
    %1947 = vxpose.xlu0.b32.cont [6/16] 0.0, 128
    %1948 = vxpose.xlu0.b32.cont [7/16] 0.0, 128
    %1949 = vxpose.xlu0.b32.cont [8/16] 0.0, 128
    %1950 = vxpose.xlu0.b32.cont [9/16] 0.0, 128
    %1951 = vxpose.xlu0.b32.cont [10/16] 0.0, 128
    %1952 = vxpose.xlu0.b32.cont [11/16] 0.0, 128
    %1953 = vxpose.xlu0.b32.cont [12/16] 0.0, 128
    %1954 = vxpose.xlu0.b32.cont [13/16] 0.0, 128
    %1955 = vxpose.xlu0.b32.cont [14/16] 0.0, 128
    %1956 = vxpose.xlu0.b32.cont [15/16] 0.0, 128
    %1957 = vxpose.xlu0.b32.end [16/16] 0.0, 128
    %v1958 = vpop.trf.xlu0
    %v1959 = vpop.trf.xlu0
    %v1960 = vpop.trf.xlu0
    %v1961 = vpop.trf.xlu0
    %v1962 = vpop.trf.xlu0
    %v1963 = vpop.trf.xlu0
    %v1964 = vpop.trf.xlu0
    %v1965 = vpop.trf.xlu0
    %v1966 = vpop.trf.xlu0
    %v1967 = vpop.trf.xlu0
    %v1968 = vpop.trf.xlu0
    %v1969 = vpop.trf.xlu0
    %v1970 = vpop.trf.xlu0
    %v1971 = vpop.trf.xlu0
    %v1972 = vpop.trf.xlu0
    %v1973 = vpop.trf.xlu0
    %v1974 = vpack.c.bf16 %v1735, %v1734
    %v1975 = vpack.c.bf16 %v1767, %v1766
    %v1976 = vpack.c.bf16 %v1799, %v1798
    %v1977 = vpack.c.bf16 %v1831, %v1830
    %v1978 = vpack.c.bf16 %v1863, %v1862
    %v1979 = vpack.c.bf16 %v1895, %v1894
    %v1980 = vpack.c.bf16 %v1927, %v1926
    %v1981 = vpack.c.bf16 %v1959, %v1958
    %v1983 = vsel %vm151, %v1710, 0
    %v1986 = vsel %vm151, %v1711, 0
    %v1989 = vsel %vm151, %v1712, 0
    %v1992 = vsel %vm151, %v1713, 0
    %v1995 = vsel %vm151, %v1714, 0
    %v1998 = vsel %vm151, %v1715, 0
    %v2001 = vsel %vm151, %v1716, 0
    %v2004 = vsel %vm151, %v1717, 0
    %2006 = vmatpush.bf16.msra.mxu0 0
    %2007 = vmatpush.bf16.msra.mxu0 0
    %2008 = vmatpush.bf16.msra.mxu0 0
    %2009 = vmatpush.bf16.msra.mxu0 0
    %2010 = vmatpush.bf16.msra.mxu0 0
    %2011 = vmatpush.bf16.msra.mxu0 0
    %2012 = vmatpush.bf16.msra.mxu0 0
    %2013 = vmatpush.bf16.msra.mxu0 %v149
    %2014 = vmatmul.bf16.gmra.mxu0 %v1983
    %v2015 = vpop.f32.mrf.mxu0
    %v2016 = vadd.f32 0.0, %v2015
    %v2017 = vpop.f32.mrf.mxu0
    %v2018 = vadd.f32 0.0, %v2017
    %2019 = vmatmul.bf16.gmra.mxu0 %v1986
    %v2020 = vpop.f32.mrf.mxu0
    %v2021 = vadd.f32 0.0, %v2020
    %v2022 = vpop.f32.mrf.mxu0
    %v2023 = vadd.f32 0.0, %v2022
    %2024 = vmatmul.bf16.gmra.mxu0 %v1989
    %v2025 = vpop.f32.mrf.mxu0
    %v2026 = vadd.f32 0.0, %v2025
    %v2027 = vpop.f32.mrf.mxu0
    %v2028 = vadd.f32 0.0, %v2027
    %2029 = vmatmul.bf16.gmra.mxu0 %v1992
    %v2030 = vpop.f32.mrf.mxu0
    %v2031 = vadd.f32 0.0, %v2030
    %v2032 = vpop.f32.mrf.mxu0
    %v2033 = vadd.f32 0.0, %v2032
    %2034 = vmatmul.bf16.gmra.mxu0 %v1995
    %v2035 = vpop.f32.mrf.mxu0
    %v2036 = vadd.f32 0.0, %v2035
    %v2037 = vpop.f32.mrf.mxu0
    %v2038 = vadd.f32 0.0, %v2037
    %2039 = vmatmul.bf16.gmra.mxu0 %v1998
    %v2040 = vpop.f32.mrf.mxu0
    %v2041 = vadd.f32 0.0, %v2040
    %v2042 = vpop.f32.mrf.mxu0
    %v2043 = vadd.f32 0.0, %v2042
    %2044 = vmatmul.bf16.gmra.mxu0 %v2001
    %v2045 = vpop.f32.mrf.mxu0
    %v2046 = vadd.f32 0.0, %v2045
    %v2047 = vpop.f32.mrf.mxu0
    %v2048 = vadd.f32 0.0, %v2047
    %2049 = vmatmul.bf16.gmra.mxu0 %v2004
    %v2050 = vpop.f32.mrf.mxu0
    %v2051 = vadd.f32 0.0, %v2050
    %v2052 = vpop.f32.mrf.mxu0
    %v2053 = vadd.f32 0.0, %v2052
    %2054 = vdwg.mxu0
    %v2056 = vsel %vm151, %v1974, 0
    %v2059 = vsel %vm151, %v1975, 0
    %v2062 = vsel %vm151, %v1976, 0
    %v2065 = vsel %vm151, %v1977, 0
    %v2068 = vsel %vm151, %v1978, 0
    %v2071 = vsel %vm151, %v1979, 0
    %v2074 = vsel %vm151, %v1980, 0
    %v2077 = vsel %vm151, %v1981, 0
    %2079 = vmatpush.bf16.msra.mxu0 0
    %2080 = vmatpush.bf16.msra.mxu0 0
    %2081 = vmatpush.bf16.msra.mxu0 0
    %2082 = vmatpush.bf16.msra.mxu0 0
    %2083 = vmatpush.bf16.msra.mxu0 0
    %2084 = vmatpush.bf16.msra.mxu0 0
    %2085 = vmatpush.bf16.msra.mxu0 0
    %2086 = vmatpush.bf16.msra.mxu0 %v229
    %2087 = vmatmul.bf16.gmra.mxu0 %v2056
    %v2088 = vpop.f32.mrf.mxu0
    %v2089 = vadd.f32 0.0, %v2088
    %v2090 = vpop.f32.mrf.mxu0
    %v2091 = vadd.f32 0.0, %v2090
    %2092 = vmatmul.bf16.gmra.mxu0 %v2059
    %v2093 = vpop.f32.mrf.mxu0
    %v2094 = vadd.f32 0.0, %v2093
    %v2095 = vpop.f32.mrf.mxu0
    %v2096 = vadd.f32 0.0, %v2095
    %2097 = vmatmul.bf16.gmra.mxu0 %v2062
    %v2098 = vpop.f32.mrf.mxu0
    %v2099 = vadd.f32 0.0, %v2098
    %v2100 = vpop.f32.mrf.mxu0
    %v2101 = vadd.f32 0.0, %v2100
    %2102 = vmatmul.bf16.gmra.mxu0 %v2065
    %v2103 = vpop.f32.mrf.mxu0
    %v2104 = vadd.f32 0.0, %v2103
    %v2105 = vpop.f32.mrf.mxu0
    %v2106 = vadd.f32 0.0, %v2105
    %2107 = vmatmul.bf16.gmra.mxu0 %v2068
    %v2108 = vpop.f32.mrf.mxu0
    %v2109 = vadd.f32 0.0, %v2108
    %v2110 = vpop.f32.mrf.mxu0
    %v2111 = vadd.f32 0.0, %v2110
    %2112 = vmatmul.bf16.gmra.mxu0 %v2071
    %v2113 = vpop.f32.mrf.mxu0
    %v2114 = vadd.f32 0.0, %v2113
    %v2115 = vpop.f32.mrf.mxu0
    %v2116 = vadd.f32 0.0, %v2115
    %2117 = vmatmul.bf16.gmra.mxu0 %v2074
    %v2118 = vpop.f32.mrf.mxu0
    %v2119 = vadd.f32 0.0, %v2118
    %v2120 = vpop.f32.mrf.mxu0
    %v2121 = vadd.f32 0.0, %v2120
    %2122 = vmatmul.bf16.gmra.mxu0 %v2077
    %v2123 = vpop.f32.mrf.mxu0
    %v2124 = vadd.f32 0.0, %v2123
    %v2125 = vpop.f32.mrf.mxu0
    %v2126 = vadd.f32 0.0, %v2125
    %2127 = vdwg.mxu0
    %v2128 = vsub.f32 %v2016, %v2089
    %v2129 = vsub.f32 %v2018, %v2091
    %v2130 = vsub.f32 %v2021, %v2094
    %v2131 = vsub.f32 %v2023, %v2096
    %v2132 = vsub.f32 %v2026, %v2099
    %v2133 = vsub.f32 %v2028, %v2101
    %v2134 = vsub.f32 %v2031, %v2104
    %v2135 = vsub.f32 %v2033, %v2106
    %v2136 = vsub.f32 %v2036, %v2109
    %v2137 = vsub.f32 %v2038, %v2111
    %v2138 = vsub.f32 %v2041, %v2114
    %v2139 = vsub.f32 %v2043, %v2116
    %v2140 = vsub.f32 %v2046, %v2119
    %v2141 = vsub.f32 %v2048, %v2121
    %v2142 = vsub.f32 %v2051, %v2124
    %v2143 = vsub.f32 %v2053, %v2126
    %2144 = vmatpush.bf16.msra.mxu0 0
    %2145 = vmatpush.bf16.msra.mxu0 0
    %2146 = vmatpush.bf16.msra.mxu0 0
    %2147 = vmatpush.bf16.msra.mxu0 0
    %2148 = vmatpush.bf16.msra.mxu0 0
    %2149 = vmatpush.bf16.msra.mxu0 0
    %2150 = vmatpush.bf16.msra.mxu0 0
    %2151 = vmatpush.bf16.msra.mxu0 %v149
    %2152 = vmatmul.bf16.gmra.mxu0 %v2056
    %v2153 = vpop.f32.mrf.mxu0
    %v2154 = vadd.f32 0.0, %v2153
    %v2155 = vpop.f32.mrf.mxu0
    %v2156 = vadd.f32 0.0, %v2155
    %2157 = vmatmul.bf16.gmra.mxu0 %v2059
    %v2158 = vpop.f32.mrf.mxu0
    %v2159 = vadd.f32 0.0, %v2158
    %v2160 = vpop.f32.mrf.mxu0
    %v2161 = vadd.f32 0.0, %v2160
    %2162 = vmatmul.bf16.gmra.mxu0 %v2062
    %v2163 = vpop.f32.mrf.mxu0
    %v2164 = vadd.f32 0.0, %v2163
    %v2165 = vpop.f32.mrf.mxu0
    %v2166 = vadd.f32 0.0, %v2165
    %2167 = vmatmul.bf16.gmra.mxu0 %v2065
    %v2168 = vpop.f32.mrf.mxu0
    %v2169 = vadd.f32 0.0, %v2168
    %v2170 = vpop.f32.mrf.mxu0
    %v2171 = vadd.f32 0.0, %v2170
    %2172 = vmatmul.bf16.gmra.mxu0 %v2068
    %v2173 = vpop.f32.mrf.mxu0
    %v2174 = vadd.f32 0.0, %v2173
    %v2175 = vpop.f32.mrf.mxu0
    %v2176 = vadd.f32 0.0, %v2175
    %2177 = vmatmul.bf16.gmra.mxu0 %v2071
    %v2178 = vpop.f32.mrf.mxu0
    %v2179 = vadd.f32 0.0, %v2178
    %v2180 = vpop.f32.mrf.mxu0
    %v2181 = vadd.f32 0.0, %v2180
    %2182 = vmatmul.bf16.gmra.mxu0 %v2074
    %v2183 = vpop.f32.mrf.mxu0
    %v2184 = vadd.f32 0.0, %v2183
    %v2185 = vpop.f32.mrf.mxu0
    %v2186 = vadd.f32 0.0, %v2185
    %2187 = vmatmul.bf16.gmra.mxu0 %v2077
    %v2188 = vpop.f32.mrf.mxu0
    %v2189 = vadd.f32 0.0, %v2188
    %v2190 = vpop.f32.mrf.mxu0
    %v2191 = vadd.f32 0.0, %v2190
    %2192 = vdwg.mxu0
    %2193 = vmatpush.bf16.msra.mxu0 0
    %2194 = vmatpush.bf16.msra.mxu0 0
    %2195 = vmatpush.bf16.msra.mxu0 0
    %2196 = vmatpush.bf16.msra.mxu0 0
    %2197 = vmatpush.bf16.msra.mxu0 0
    %2198 = vmatpush.bf16.msra.mxu0 0
    %2199 = vmatpush.bf16.msra.mxu0 0
    %2200 = vmatpush.bf16.msra.mxu0 %v229
    %2201 = vmatmul.bf16.gmra.mxu0 %v1983
    %v2202 = vpop.f32.mrf.mxu0
    %v2203 = vadd.f32 %v2154, %v2202
    %v2204 = vpop.f32.mrf.mxu0
    %v2205 = vadd.f32 %v2156, %v2204
    %2206 = vmatmul.bf16.gmra.mxu0 %v1986
    %v2207 = vpop.f32.mrf.mxu0
    %v2208 = vadd.f32 %v2159, %v2207
    %v2209 = vpop.f32.mrf.mxu0
    %v2210 = vadd.f32 %v2161, %v2209
    %2211 = vmatmul.bf16.gmra.mxu0 %v1989
    %v2212 = vpop.f32.mrf.mxu0
    %v2213 = vadd.f32 %v2164, %v2212
    %v2214 = vpop.f32.mrf.mxu0
    %v2215 = vadd.f32 %v2166, %v2214
    %2216 = vmatmul.bf16.gmra.mxu0 %v1992
    %v2217 = vpop.f32.mrf.mxu0
    %v2218 = vadd.f32 %v2169, %v2217
    %v2219 = vpop.f32.mrf.mxu0
    %v2220 = vadd.f32 %v2171, %v2219
    %2221 = vmatmul.bf16.gmra.mxu0 %v1995
    %v2222 = vpop.f32.mrf.mxu0
    %v2223 = vadd.f32 %v2174, %v2222
    %v2224 = vpop.f32.mrf.mxu0
    %v2225 = vadd.f32 %v2176, %v2224
    %2226 = vmatmul.bf16.gmra.mxu0 %v1998
    %v2227 = vpop.f32.mrf.mxu0
    %v2228 = vadd.f32 %v2179, %v2227
    %v2229 = vpop.f32.mrf.mxu0
    %v2230 = vadd.f32 %v2181, %v2229
    %2231 = vmatmul.bf16.gmra.mxu0 %v2001
    %v2232 = vpop.f32.mrf.mxu0
    %v2233 = vadd.f32 %v2184, %v2232
    %v2234 = vpop.f32.mrf.mxu0
    %v2235 = vadd.f32 %v2186, %v2234
    %2236 = vmatmul.bf16.gmra.mxu0 %v2004
    %v2237 = vpop.f32.mrf.mxu0
    %v2238 = vadd.f32 %v2189, %v2237
    %v2239 = vpop.f32.mrf.mxu0
    %v2240 = vadd.f32 %v2191, %v2239
    %2241 = vdwg.mxu0
    %v2242 = vmul.f32 %v2128, %v2128
    %v2243 = vmul.f32 %v2129, %v2129
    %v2244 = vmul.f32 %v2130, %v2130
    %v2245 = vmul.f32 %v2131, %v2131
    %v2246 = vmul.f32 %v2132, %v2132
    %v2247 = vmul.f32 %v2133, %v2133
    %v2248 = vmul.f32 %v2134, %v2134
    %v2249 = vmul.f32 %v2135, %v2135
    %v2250 = vmul.f32 %v2136, %v2136
    %v2251 = vmul.f32 %v2137, %v2137
    %v2252 = vmul.f32 %v2138, %v2138
    %v2253 = vmul.f32 %v2139, %v2139
    %v2254 = vmul.f32 %v2140, %v2140
    %v2255 = vmul.f32 %v2141, %v2141
    %v2256 = vmul.f32 %v2142, %v2142
    %v2257 = vmul.f32 %v2143, %v2143
    %v2258 = vmul.f32 %v2203, %v2203
    %v2259 = vmul.f32 %v2205, %v2205
    %v2260 = vmul.f32 %v2208, %v2208
    %v2261 = vmul.f32 %v2210, %v2210
    %v2262 = vmul.f32 %v2213, %v2213
    %v2263 = vmul.f32 %v2215, %v2215
    %v2264 = vmul.f32 %v2218, %v2218
    %v2265 = vmul.f32 %v2220, %v2220
    %v2266 = vmul.f32 %v2223, %v2223
    %v2267 = vmul.f32 %v2225, %v2225
    %v2268 = vmul.f32 %v2228, %v2228
    %v2269 = vmul.f32 %v2230, %v2230
    %v2270 = vmul.f32 %v2233, %v2233
    %v2271 = vmul.f32 %v2235, %v2235
    %v2272 = vmul.f32 %v2238, %v2238
    %v2273 = vmul.f32 %v2240, %v2240
    %v2274 = vadd.f32 %v2242, %v2258
    %v2275 = vadd.f32 %v2243, %v2259
    %v2276 = vadd.f32 %v2244, %v2260
    %v2277 = vadd.f32 %v2245, %v2261
    %v2278 = vadd.f32 %v2246, %v2262
    %v2279 = vadd.f32 %v2247, %v2263
    %v2280 = vadd.f32 %v2248, %v2264
    %v2281 = vadd.f32 %v2249, %v2265
    %v2282 = vadd.f32 %v2250, %v2266
    %v2283 = vadd.f32 %v2251, %v2267
    %v2284 = vadd.f32 %v2252, %v2268
    %v2285 = vadd.f32 %v2253, %v2269
    %v2286 = vadd.f32 %v2254, %v2270
    %v2287 = vadd.f32 %v2255, %v2271
    %v2288 = vadd.f32 %v2256, %v2272
    %v2289 = vadd.f32 %v2257, %v2273
    %v2290 = vrsqrt.pop %v2274
    %v2291 = vmul.f32 %v2290, %v2274
    %v2292 = vmul.f32 %v2291, %v2290
    %v2293 = vmul.f32 0.5, %v2292
    %v2294 = vsub.f32 1.5, %v2293
    %v2295 = vmul.f32 %v2290, %v2294
    %v2296 = vmul.f32 %v2274, %v2295
    %vm2297 = vcmp.eq.f32.partialorder %v2274, inf
    %v2298 = vsel %vm2297, %v2274, %v2296
    %vm2299 = vcmp.eq.f32.partialorder %v2274, 0.0
    %v2300 = vand.u32 %v2274, 2147483648
    %v2301 = vsel %vm2299, %v2300, %v2298
    %v2302 = vrsqrt.pop %v2275
    %v2303 = vmul.f32 %v2302, %v2275
    %v2304 = vmul.f32 %v2303, %v2302
    %v2305 = vmul.f32 0.5, %v2304
    %v2306 = vsub.f32 1.5, %v2305
    %v2307 = vmul.f32 %v2302, %v2306
    %v2308 = vmul.f32 %v2275, %v2307
    %vm2309 = vcmp.eq.f32.partialorder %v2275, inf
    %v2310 = vsel %vm2309, %v2275, %v2308
    %vm2311 = vcmp.eq.f32.partialorder %v2275, 0.0
    %v2312 = vand.u32 %v2275, 2147483648
    %v2313 = vsel %vm2311, %v2312, %v2310
    %v2314 = vrsqrt.pop %v2276
    %v2315 = vmul.f32 %v2314, %v2276
    %v2316 = vmul.f32 %v2315, %v2314
    %v2317 = vmul.f32 0.5, %v2316
    %v2318 = vsub.f32 1.5, %v2317
    %v2319 = vmul.f32 %v2314, %v2318
    %v2320 = vmul.f32 %v2276, %v2319
    %vm2321 = vcmp.eq.f32.partialorder %v2276, inf
    %v2322 = vsel %vm2321, %v2276, %v2320
    %vm2323 = vcmp.eq.f32.partialorder %v2276, 0.0
    %v2324 = vand.u32 %v2276, 2147483648
    %v2325 = vsel %vm2323, %v2324, %v2322
    %v2326 = vrsqrt.pop %v2277
    %v2327 = vmul.f32 %v2326, %v2277
    %v2328 = vmul.f32 %v2327, %v2326
    %v2329 = vmul.f32 0.5, %v2328
    %v2330 = vsub.f32 1.5, %v2329
    %v2331 = vmul.f32 %v2326, %v2330
    %v2332 = vmul.f32 %v2277, %v2331
    %vm2333 = vcmp.eq.f32.partialorder %v2277, inf
    %v2334 = vsel %vm2333, %v2277, %v2332
    %vm2335 = vcmp.eq.f32.partialorder %v2277, 0.0
    %v2336 = vand.u32 %v2277, 2147483648
    %v2337 = vsel %vm2335, %v2336, %v2334
    %v2338 = vrsqrt.pop %v2278
    %v2339 = vmul.f32 %v2338, %v2278
    %v2340 = vmul.f32 %v2339, %v2338
    %v2341 = vmul.f32 0.5, %v2340
    %v2342 = vsub.f32 1.5, %v2341
    %v2343 = vmul.f32 %v2338, %v2342
    %v2344 = vmul.f32 %v2278, %v2343
    %vm2345 = vcmp.eq.f32.partialorder %v2278, inf
    %v2346 = vsel %vm2345, %v2278, %v2344
    %vm2347 = vcmp.eq.f32.partialorder %v2278, 0.0
    %v2348 = vand.u32 %v2278, 2147483648
    %v2349 = vsel %vm2347, %v2348, %v2346
    %v2350 = vrsqrt.pop %v2279
    %v2351 = vmul.f32 %v2350, %v2279
    %v2352 = vmul.f32 %v2351, %v2350
    %v2353 = vmul.f32 0.5, %v2352
    %v2354 = vsub.f32 1.5, %v2353
    %v2355 = vmul.f32 %v2350, %v2354
    %v2356 = vmul.f32 %v2279, %v2355
    %vm2357 = vcmp.eq.f32.partialorder %v2279, inf
    %v2358 = vsel %vm2357, %v2279, %v2356
    %vm2359 = vcmp.eq.f32.partialorder %v2279, 0.0
    %v2360 = vand.u32 %v2279, 2147483648
    %v2361 = vsel %vm2359, %v2360, %v2358
    %v2362 = vrsqrt.pop %v2280
    %v2363 = vmul.f32 %v2362, %v2280
    %v2364 = vmul.f32 %v2363, %v2362
    %v2365 = vmul.f32 0.5, %v2364
    %v2366 = vsub.f32 1.5, %v2365
    %v2367 = vmul.f32 %v2362, %v2366
    %v2368 = vmul.f32 %v2280, %v2367
    %vm2369 = vcmp.eq.f32.partialorder %v2280, inf
    %v2370 = vsel %vm2369, %v2280, %v2368
    %vm2371 = vcmp.eq.f32.partialorder %v2280, 0.0
    %v2372 = vand.u32 %v2280, 2147483648
    %v2373 = vsel %vm2371, %v2372, %v2370
    %v2374 = vrsqrt.pop %v2281
    %v2375 = vmul.f32 %v2374, %v2281
    %v2376 = vmul.f32 %v2375, %v2374
    %v2377 = vmul.f32 0.5, %v2376
    %v2378 = vsub.f32 1.5, %v2377
    %v2379 = vmul.f32 %v2374, %v2378
    %v2380 = vmul.f32 %v2281, %v2379
    %vm2381 = vcmp.eq.f32.partialorder %v2281, inf
    %v2382 = vsel %vm2381, %v2281, %v2380
    %vm2383 = vcmp.eq.f32.partialorder %v2281, 0.0
    %v2384 = vand.u32 %v2281, 2147483648
    %v2385 = vsel %vm2383, %v2384, %v2382
    %v2386 = vrsqrt.pop %v2282
    %v2387 = vmul.f32 %v2386, %v2282
    %v2388 = vmul.f32 %v2387, %v2386
    %v2389 = vmul.f32 0.5, %v2388
    %v2390 = vsub.f32 1.5, %v2389
    %v2391 = vmul.f32 %v2386, %v2390
    %v2392 = vmul.f32 %v2282, %v2391
    %vm2393 = vcmp.eq.f32.partialorder %v2282, inf
    %v2394 = vsel %vm2393, %v2282, %v2392
    %vm2395 = vcmp.eq.f32.partialorder %v2282, 0.0
    %v2396 = vand.u32 %v2282, 2147483648
    %v2397 = vsel %vm2395, %v2396, %v2394
    %v2398 = vrsqrt.pop %v2283
    %v2399 = vmul.f32 %v2398, %v2283
    %v2400 = vmul.f32 %v2399, %v2398
    %v2401 = vmul.f32 0.5, %v2400
    %v2402 = vsub.f32 1.5, %v2401
    %v2403 = vmul.f32 %v2398, %v2402
    %v2404 = vmul.f32 %v2283, %v2403
    %vm2405 = vcmp.eq.f32.partialorder %v2283, inf
    %v2406 = vsel %vm2405, %v2283, %v2404
    %vm2407 = vcmp.eq.f32.partialorder %v2283, 0.0
    %v2408 = vand.u32 %v2283, 2147483648
    %v2409 = vsel %vm2407, %v2408, %v2406
    %v2410 = vrsqrt.pop %v2284
    %v2411 = vmul.f32 %v2410, %v2284
    %v2412 = vmul.f32 %v2411, %v2410
    %v2413 = vmul.f32 0.5, %v2412
    %v2414 = vsub.f32 1.5, %v2413
    %v2415 = vmul.f32 %v2410, %v2414
    %v2416 = vmul.f32 %v2284, %v2415
    %vm2417 = vcmp.eq.f32.partialorder %v2284, inf
    %v2418 = vsel %vm2417, %v2284, %v2416
    %vm2419 = vcmp.eq.f32.partialorder %v2284, 0.0
    %v2420 = vand.u32 %v2284, 2147483648
    %v2421 = vsel %vm2419, %v2420, %v2418
    %v2422 = vrsqrt.pop %v2285
    %v2423 = vmul.f32 %v2422, %v2285
    %v2424 = vmul.f32 %v2423, %v2422
    %v2425 = vmul.f32 0.5, %v2424
    %v2426 = vsub.f32 1.5, %v2425
    %v2427 = vmul.f32 %v2422, %v2426
    %v2428 = vmul.f32 %v2285, %v2427
    %vm2429 = vcmp.eq.f32.partialorder %v2285, inf
    %v2430 = vsel %vm2429, %v2285, %v2428
    %vm2431 = vcmp.eq.f32.partialorder %v2285, 0.0
    %v2432 = vand.u32 %v2285, 2147483648
    %v2433 = vsel %vm2431, %v2432, %v2430
    %v2434 = vrsqrt.pop %v2286
    %v2435 = vmul.f32 %v2434, %v2286
    %v2436 = vmul.f32 %v2435, %v2434
    %v2437 = vmul.f32 0.5, %v2436
    %v2438 = vsub.f32 1.5, %v2437
    %v2439 = vmul.f32 %v2434, %v2438
    %v2440 = vmul.f32 %v2286, %v2439
    %vm2441 = vcmp.eq.f32.partialorder %v2286, inf
    %v2442 = vsel %vm2441, %v2286, %v2440
    %vm2443 = vcmp.eq.f32.partialorder %v2286, 0.0
    %v2444 = vand.u32 %v2286, 2147483648
    %v2445 = vsel %vm2443, %v2444, %v2442
    %v2446 = vrsqrt.pop %v2287
    %v2447 = vmul.f32 %v2446, %v2287
    %v2448 = vmul.f32 %v2447, %v2446
    %v2449 = vmul.f32 0.5, %v2448
    %v2450 = vsub.f32 1.5, %v2449
    %v2451 = vmul.f32 %v2446, %v2450
    %v2452 = vmul.f32 %v2287, %v2451
    %vm2453 = vcmp.eq.f32.partialorder %v2287, inf
    %v2454 = vsel %vm2453, %v2287, %v2452
    %vm2455 = vcmp.eq.f32.partialorder %v2287, 0.0
    %v2456 = vand.u32 %v2287, 2147483648
    %v2457 = vsel %vm2455, %v2456, %v2454
    %v2458 = vrsqrt.pop %v2288
    %v2459 = vmul.f32 %v2458, %v2288
    %v2460 = vmul.f32 %v2459, %v2458
    %v2461 = vmul.f32 0.5, %v2460
    %v2462 = vsub.f32 1.5, %v2461
    %v2463 = vmul.f32 %v2458, %v2462
    %v2464 = vmul.f32 %v2288, %v2463
    %vm2465 = vcmp.eq.f32.partialorder %v2288, inf
    %v2466 = vsel %vm2465, %v2288, %v2464
    %vm2467 = vcmp.eq.f32.partialorder %v2288, 0.0
    %v2468 = vand.u32 %v2288, 2147483648
    %v2469 = vsel %vm2467, %v2468, %v2466
    %v2470 = vrsqrt.pop %v2289
    %v2471 = vmul.f32 %v2470, %v2289
    %v2472 = vmul.f32 %v2471, %v2470
    %v2473 = vmul.f32 0.5, %v2472
    %v2474 = vsub.f32 1.5, %v2473
    %v2475 = vmul.f32 %v2470, %v2474
    %v2476 = vmul.f32 %v2289, %v2475
    %vm2477 = vcmp.eq.f32.partialorder %v2289, inf
    %v2478 = vsel %vm2477, %v2289, %v2476
    %vm2479 = vcmp.eq.f32.partialorder %v2289, 0.0
    %v2480 = vand.u32 %v2289, 2147483648
    %v2481 = vsel %vm2479, %v2480, %v2478
    %v2482 = vsub.f32 %v1127, %v2301
    %v2483 = vsub.f32 %v1139, %v2313
    %v2484 = vsub.f32 %v1151, %v2325
    %v2485 = vsub.f32 %v1163, %v2337
    %v2486 = vsub.f32 %v1175, %v2349
    %v2487 = vsub.f32 %v1187, %v2361
    %v2488 = vsub.f32 %v1199, %v2373
    %v2489 = vsub.f32 %v1211, %v2385
    %v2490 = vsub.f32 %v1223, %v2397
    %v2491 = vsub.f32 %v1235, %v2409
    %v2492 = vsub.f32 %v1247, %v2421
    %v2493 = vsub.f32 %v1259, %v2433
    %v2494 = vsub.f32 %v1271, %v2445
    %v2495 = vsub.f32 %v1283, %v2457
    %v2496 = vsub.f32 %v1295, %v2469
    %v2497 = vsub.f32 %v1307, %v2481
    %v2498 = vand.u32 2147483647, %v2482
    %v2499 = vand.u32 2147483647, %v2483
    %v2500 = vand.u32 2147483647, %v2484
    %v2501 = vand.u32 2147483647, %v2485
    %v2502 = vand.u32 2147483647, %v2486
    %v2503 = vand.u32 2147483647, %v2487
    %v2504 = vand.u32 2147483647, %v2488
    %v2505 = vand.u32 2147483647, %v2489
    %v2506 = vand.u32 2147483647, %v2490
    %v2507 = vand.u32 2147483647, %v2491
    %v2508 = vand.u32 2147483647, %v2492
    %v2509 = vand.u32 2147483647, %v2493
    %v2510 = vand.u32 2147483647, %v2494
    %v2511 = vand.u32 2147483647, %v2495
    %v2512 = vand.u32 2147483647, %v2496
    %v2513 = vand.u32 2147483647, %v2497
    %v2514 = vmul.f32 %v2498, %v1127
    %v2515 = vmul.f32 %v2499, %v1139
    %v2516 = vmul.f32 %v2500, %v1151
    %v2517 = vmul.f32 %v2501, %v1163
    %v2518 = vmul.f32 %v2502, %v1175
    %v2519 = vmul.f32 %v2503, %v1187
    %v2520 = vmul.f32 %v2504, %v1199
    %v2521 = vmul.f32 %v2505, %v1211
    %v2522 = vmul.f32 %v2506, %v1223
    %v2523 = vmul.f32 %v2507, %v1235
    %v2524 = vmul.f32 %v2508, %v1247
    %v2525 = vmul.f32 %v2509, %v1259
    %v2526 = vmul.f32 %v2510, %v1271
    %v2527 = vmul.f32 %v2511, %v1283
    %v2528 = vmul.f32 %v2512, %v1295
    %v2529 = vmul.f32 %v2513, %v1307
    %v2530 = vsel %vm151, %v2514, 0.0
    %2531 = vadd.xlane.f32.xlu0 %v2530
    %v2532 = vpop.xlane.xlu0 %2531
    %v2533 = vsel %vm151, %v2515, 0.0
    %2534 = vadd.xlane.f32.xlu0 %v2533
    %v2535 = vpop.xlane.xlu0 %2534
    %v2536 = vsel %vm151, %v2516, 0.0
    %2537 = vadd.xlane.f32.xlu0 %v2536
    %v2538 = vpop.xlane.xlu0 %2537
    %v2539 = vsel %vm151, %v2517, 0.0
    %2540 = vadd.xlane.f32.xlu0 %v2539
    %v2541 = vpop.xlane.xlu0 %2540
    %v2542 = vsel %vm151, %v2518, 0.0
    %2543 = vadd.xlane.f32.xlu0 %v2542
    %v2544 = vpop.xlane.xlu0 %2543
    %v2545 = vsel %vm151, %v2519, 0.0
    %2546 = vadd.xlane.f32.xlu0 %v2545
    %v2547 = vpop.xlane.xlu0 %2546
    %v2548 = vsel %vm151, %v2520, 0.0
    %2549 = vadd.xlane.f32.xlu0 %v2548
    %v2550 = vpop.xlane.xlu0 %2549
    %v2551 = vsel %vm151, %v2521, 0.0
    %2552 = vadd.xlane.f32.xlu0 %v2551
    %v2553 = vpop.xlane.xlu0 %2552
    %v2554 = vsel %vm151, %v2522, 0.0
    %2555 = vadd.xlane.f32.xlu0 %v2554
    %v2556 = vpop.xlane.xlu0 %2555
    %v2557 = vsel %vm151, %v2523, 0.0
    %2558 = vadd.xlane.f32.xlu0 %v2557
    %v2559 = vpop.xlane.xlu0 %2558
    %v2560 = vsel %vm151, %v2524, 0.0
    %2561 = vadd.xlane.f32.xlu0 %v2560
    %v2562 = vpop.xlane.xlu0 %2561
    %v2563 = vsel %vm151, %v2525, 0.0
    %2564 = vadd.xlane.f32.xlu0 %v2563
    %v2565 = vpop.xlane.xlu0 %2564
    %v2566 = vsel %vm151, %v2526, 0.0
    %2567 = vadd.xlane.f32.xlu0 %v2566
    %v2568 = vpop.xlane.xlu0 %2567
    %v2569 = vsel %vm151, %v2527, 0.0
    %2570 = vadd.xlane.f32.xlu0 %v2569
    %v2571 = vpop.xlane.xlu0 %2570
    %v2572 = vsel %vm151, %v2528, 0.0
    %2573 = vadd.xlane.f32.xlu0 %v2572
    %v2574 = vpop.xlane.xlu0 %2573
    %v2575 = vsel %vm151, %v2529, 0.0
    %2576 = vadd.xlane.f32.xlu0 %v2575
    %v2577 = vpop.xlane.xlu0 %2576
    %v2578 = vld [vmem:[#allocation2] sm:$0xff]
    %v2579 = vld [vmem:[#allocation2 + $0x8] sm:$0xff]
    %v2580 = vld [vmem:[#allocation2 + $0x10] sm:$0xff]
    %v2581 = vld [vmem:[#allocation2 + $0x18] sm:$0xff]
    %v2582 = vld [vmem:[#allocation2 + $0x20] sm:$0xff]
    %v2583 = vld [vmem:[#allocation2 + $0x28] sm:$0xff]
    %v2584 = vld [vmem:[#allocation2 + $0x30] sm:$0xff]
    %v2585 = vld [vmem:[#allocation2 + $0x38] sm:$0xff]
    %v2586 = vld [vmem:[#allocation2 + $0x40] sm:$0xff]
    %v2587 = vld [vmem:[#allocation2 + $0x48] sm:$0xff]
    %v2588 = vld [vmem:[#allocation2 + $0x50] sm:$0xff]
    %v2589 = vld [vmem:[#allocation2 + $0x58] sm:$0xff]
    %v2590 = vld [vmem:[#allocation2 + $0x60] sm:$0xff]
    %v2591 = vld [vmem:[#allocation2 + $0x68] sm:$0xff]
    %v2592 = vld [vmem:[#allocation2 + $0x70] sm:$0xff]
    %v2593 = vld [vmem:[#allocation2 + $0x78] sm:$0xff]
    %v2594 = vadd.f32 %v2578, %v2532
    %v2595 = vadd.f32 %v2579, %v2535
    %v2596 = vadd.f32 %v2580, %v2538
    %v2597 = vadd.f32 %v2581, %v2541
    %v2598 = vadd.f32 %v2582, %v2544
    %v2599 = vadd.f32 %v2583, %v2547
    %v2600 = vadd.f32 %v2584, %v2550
    %v2601 = vadd.f32 %v2585, %v2553
    %v2602 = vadd.f32 %v2586, %v2556
    %v2603 = vadd.f32 %v2587, %v2559
    %v2604 = vadd.f32 %v2588, %v2562
    %v2605 = vadd.f32 %v2589, %v2565
    %v2606 = vadd.f32 %v2590, %v2568
    %v2607 = vadd.f32 %v2591, %v2571
    %v2608 = vadd.f32 %v2592, %v2574
    %v2609 = vadd.f32 %v2593, %v2577
    %vm2610 = vcmask 7168
    %2611 = vst.msk [vmem:[#allocation2] sm:$0xff] %vm2610, %v2594
    %2612 = vst.msk [vmem:[#allocation2 + $0x8] sm:$0xff] %vm2610, %v2595
    %2613 = vst.msk [vmem:[#allocation2 + $0x10] sm:$0xff] %vm2610, %v2596
    %2614 = vst.msk [vmem:[#allocation2 + $0x18] sm:$0xff] %vm2610, %v2597
    %2615 = vst.msk [vmem:[#allocation2 + $0x20] sm:$0xff] %vm2610, %v2598
    %2616 = vst.msk [vmem:[#allocation2 + $0x28] sm:$0xff] %vm2610, %v2599
    %2617 = vst.msk [vmem:[#allocation2 + $0x30] sm:$0xff] %vm2610, %v2600
    %2618 = vst.msk [vmem:[#allocation2 + $0x38] sm:$0xff] %vm2610, %v2601
    %2619 = vst.msk [vmem:[#allocation2 + $0x40] sm:$0xff] %vm2610, %v2602
    %2620 = vst.msk [vmem:[#allocation2 + $0x48] sm:$0xff] %vm2610, %v2603
    %2621 = vst.msk [vmem:[#allocation2 + $0x50] sm:$0xff] %vm2610, %v2604
    %2622 = vst.msk [vmem:[#allocation2 + $0x58] sm:$0xff] %vm2610, %v2605
    %2623 = vst.msk [vmem:[#allocation2 + $0x60] sm:$0xff] %vm2610, %v2606
    %2624 = vst.msk [vmem:[#allocation2 + $0x68] sm:$0xff] %vm2610, %v2607
    %2625 = vst.msk [vmem:[#allocation2 + $0x70] sm:$0xff] %vm2610, %v2608
    %2626 = vst.msk [vmem:[#allocation2 + $0x78] sm:$0xff] %vm2610, %v2609
    // Predicated region
    $region38: #{tpu_custom_call.1} parent=1 // pred_check
      %p2627 = pneg %p96
    $region39: #{tpu_custom_call.1} parent=1 // pred_check_branch
      %2629 = sbr.rel (%p2627) target = $region41
    $region40: #{tpu_custom_call.1} parent=1 // pred_region
      %v2630 = vld [vmem:[#allocation2] sm:$0xff]
      %v2631 = vld [vmem:[#allocation2 + $0x8] sm:$0xff]
      %v2632 = vld [vmem:[#allocation2 + $0x10] sm:$0xff]
      %v2633 = vld [vmem:[#allocation2 + $0x18] sm:$0xff]
      %v2634 = vld [vmem:[#allocation2 + $0x20] sm:$0xff]
      %v2635 = vld [vmem:[#allocation2 + $0x28] sm:$0xff]
      %v2636 = vld [vmem:[#allocation2 + $0x30] sm:$0xff]
      %v2637 = vld [vmem:[#allocation2 + $0x38] sm:$0xff]
      %v2638 = vld [vmem:[#allocation2 + $0x40] sm:$0xff]
      %v2639 = vld [vmem:[#allocation2 + $0x48] sm:$0xff]
      %v2640 = vld [vmem:[#allocation2 + $0x50] sm:$0xff]
      %v2641 = vld [vmem:[#allocation2 + $0x58] sm:$0xff]
      %v2642 = vld [vmem:[#allocation2 + $0x60] sm:$0xff]
      %v2643 = vld [vmem:[#allocation2 + $0x68] sm:$0xff]
      %v2644 = vld [vmem:[#allocation2 + $0x70] sm:$0xff]
      %v2645 = vld [vmem:[#allocation2 + $0x78] sm:$0xff]
      %v2646 = vsel %vm2610, %v2630, 0.0
      %v2647 = vsel %vm2610, %v2631, 0.0
      %v2648 = vadd.f32 %v2646, %v2647
      %v2649 = vsel %vm2610, %v2632, 0.0
      %v2650 = vadd.f32 %v2648, %v2649
      %v2651 = vsel %vm2610, %v2633, 0.0
      %v2652 = vadd.f32 %v2650, %v2651
      %v2653 = vsel %vm2610, %v2634, 0.0
      %v2654 = vadd.f32 %v2652, %v2653
      %v2655 = vsel %vm2610, %v2635, 0.0
      %v2656 = vadd.f32 %v2654, %v2655
      %v2657 = vsel %vm2610, %v2636, 0.0
      %v2658 = vadd.f32 %v2656, %v2657
      %v2659 = vsel %vm2610, %v2637, 0.0
      %v2660 = vadd.f32 %v2658, %v2659
      %v2661 = vsel %vm2610, %v2638, 0.0
      %v2662 = vadd.f32 %v2660, %v2661
      %v2663 = vsel %vm2610, %v2639, 0.0
      %v2664 = vadd.f32 %v2662, %v2663
      %v2665 = vsel %vm2610, %v2640, 0.0
      %v2666 = vadd.f32 %v2664, %v2665
      %v2667 = vsel %vm2610, %v2641, 0.0
      %v2668 = vadd.f32 %v2666, %v2667
      %v2669 = vsel %vm2610, %v2642, 0.0
      %v2670 = vadd.f32 %v2668, %v2669
      %v2671 = vsel %vm2610, %v2643, 0.0
      %v2672 = vadd.f32 %v2670, %v2671
      %v2673 = vsel %vm2610, %v2644, 0.0
      %v2674 = vadd.f32 %v2672, %v2673
      %v2675 = vsel %vm2610, %v2645, 0.0
      %v2676 = vadd.f32 %v2674, %v2675
      %v2677 = vrot.slane %v2676, 4
      %v2678 = vadd.f32 %v2676, %v2677
      %v2679 = vrot.slane %v2678, 2
      %v2680 = vadd.f32 %v2678, %v2679
      %v2681 = vrot.slane %v2680, 1
      %v2682 = vadd.f32 %v2680, %v2681
      %vm2683 = vcmask 0
      %2684 = vst.msk [vmem:[#allocation11] sm:$0x1] %vm2683, %v2682
    $region41: #{tpu_custom_call.1} parent=1 // pred_fallthru
      _
    // Predicated region
    $region42: #{tpu_custom_call.1} parent=1 // pred_check
      _
    $region43: #{tpu_custom_call.1} parent=1 // pred_check_branch
      %2686 = sbr.rel (0) target = $region45
    $region44: #{tpu_custom_call.1} parent=1 // pred_region
      %2688 = vsyncadd [#allocation5], 0
      %s2690 = sshll.u32 [#allocation11], 4
      %s2691 = int_to_ptr.vmem [resolvable:$true] %s2690
      %s2692 = sshll.u32 %s4, 4
      %s2693 = int_to_ptr.hbm [resolvable:$true] %s2692
      %2695 = dma.vmem_to_hbm [thread:$0]  %s2691, 16, %s2693, [#allocation5]
    $region45: #{tpu_custom_call.1} parent=1 // pred_fallthru
      _
    // Predicated region
    $region46: #{tpu_custom_call.1} parent=1 // pred_check
      _
    $region47: #{tpu_custom_call.1} parent=1 // pred_check_branch
      %2697 = sbr.rel (0) target = $region49
    $region48: #{tpu_custom_call.1} parent=1 // pred_region
      %2699 = dma.done [#allocation5], 16
    $region49: #{tpu_custom_call.1} parent=1 // pred_fallthru
      _
    %2700 = vsyncpa [#allocation4], 1
    %2701 = vsyncpa [#allocation7], 1
    %2702 = vsyncpa [#allocation10], 1
    %2703 = vsyncpa [#allocation5], 1

</llo_original>
